<compile_context>
chip_gen: v7x
topology: tpu7x:2x2x1
jax: 0.10.0
libtpu: 0.0.40
codegen_flags: <defaults>
</compile_context>

<pallas_src>
import jax
import jax.numpy as jnp
from jax.experimental import pallas as pl
from jax.experimental.pallas import tpu as pltpu

# ----------------------------- model config (scaled-down ViT) -----------------------------
IMG = 64
PATCH = 16
IN_CHANS = 3
EMBED_DIM = 64
DEPTH = 2
NUM_HEADS = 4
MLP_RATIO = 4
NUM_CLASSES = 10
LN_EPS = 1e-6

HEAD_DIM = EMBED_DIM // NUM_HEADS                 # 16
HIDDEN = EMBED_DIM * MLP_RATIO                    # 256
NUM_PATCHES = (IMG // PATCH) * (IMG // PATCH)     # 16
SEQ = NUM_PATCHES + 1                             # 17 tokens (cls + patches)
SEQ_PAD = ((SEQ + 7) // 8) * 8                    # 24 (sublane aligned)
PATCH_DIM = IN_CHANS * PATCH * PATCH              # 768
NC_PAD = 128                                      # lane-dense logits (sliced to 10 outside)
ATTN_SCALE = HEAD_DIM ** -0.5
NEG_INF = -1e30


# ------------------------------------ in-kernel helpers ------------------------------------
def _ln(x, g, b, eps=LN_EPS):
    # x: [M, D] f32, g/b: [1, D] f32
    mean = jnp.mean(x, axis=-1, keepdims=True)
    var = jnp.mean((x - mean) ** 2, axis=-1, keepdims=True)
    return (x - mean) * jax.lax.rsqrt(var + eps) * g + b


def _gelu(x):
    # exact erf GELU (torch.nn.GELU default)
    return 0.5 * x * (1.0 + jax.lax.erf(x * 0.7071067811865476))


# ----------------------------------- fused Pallas kernel -----------------------------------
def _fused_vit_kernel(patch_ref, pemb_w_ref, base_ref, amask_ref,
                      ln1_g_ref, ln1_b_ref, qkv_w_ref, qkv_b_ref,
                      proj_w_ref, proj_b_ref, ln2_g_ref, ln2_b_ref,
                      fc1_w_ref, fc1_b_ref, fc2_w_ref, fc2_b_ref,
                      pool_ref, fng_ref, fnb_ref, head_w_ref, head_b_ref,
                      o_ref, x_state):
    # grid = (batch_block, depth); token state [TB*SEQ_PAD, D] lives in VMEM across depth.
    d = pl.program_id(1)

    # ---- depth 0: patch embedding (cls token / pos embed / bias folded into `base`) ----
    @pl.when(d == 0)
    def _():
        emb = jnp.dot(patch_ref[...], pemb_w_ref[...],
                      preferred_element_type=jnp.float32)          # [M, D]
        x_state[...] = emb + base_ref[...]

    x = x_state[...]                                               # [M, D] f32
    m_tok = x.shape[0]

    # ---------------- MHSA (pre-LN) ----------------
    h = _ln(x, ln1_g_ref[0], ln1_b_ref[0])
    qkv = jnp.dot(h.astype(jnp.bfloat16), qkv_w_ref[0],
                  preferred_element_type=jnp.float32) + qkv_b_ref[0]   # [M, 3D]

    amask = amask_ref[...]                                         # batch-block-diag + key-pad
    pw = proj_w_ref[0]                                             # [D, D] bf16
    attn = jnp.zeros((m_tok, EMBED_DIM), jnp.float32)
    for hh in range(NUM_HEADS):
        lo = hh * HEAD_DIM
        q = qkv[:, lo:lo + HEAD_DIM] * ATTN_SCALE
        k = qkv[:, EMBED_DIM + lo:EMBED_DIM + lo + HEAD_DIM]
        v = qkv[:, 2 * EMBED_DIM + lo:2 * EMBED_DIM + lo + HEAD_DIM]
        # one [M, M] score matmul per head over the whole batch block; cross-batch and
        # padded-key entries are killed by the additive mask.
        s = jax.lax.dot_general(q, k, (((1,), (1,)), ((), ())),
                                preferred_element_type=jnp.float32)
        s = s + amask
        s = s - jnp.max(s, axis=-1, keepdims=True)
        p = jnp.exp(s)
        p = p * pl.reciprocal(jnp.sum(p, axis=-1, keepdims=True), approx=True)
        o_h = jnp.dot(p, v, preferred_element_type=jnp.float32)       # [M, Dh]
        # fold the output projection into the head loop (avoids lane-dim concat)
        attn = attn + jnp.dot(o_h.astype(jnp.bfloat16), pw[lo:lo + HEAD_DIM, :],
                              preferred_element_type=jnp.float32)
    x = x + attn + proj_b_ref[0]

    # ---------------- MLP (pre-LN, erf GELU) ----------------
    h2 = _ln(x, ln2_g_ref[0], ln2_b_ref[0])
    h2 = jnp.dot(h2.astype(jnp.bfloat16), fc1_w_ref[0],
                 preferred_element_type=jnp.float32) + fc1_b_ref[0]
    h2 = _gelu(h2)
    h2 = jnp.dot(h2.astype(jnp.bfloat16), fc2_w_ref[0],
                 preferred_element_type=jnp.float32) + fc2_b_ref[0]
    x = x + h2

    x_state[...] = x

    # ---- last depth: global_pool mean(patch tokens) + fc_norm + head (lane-padded) ----
    @pl.when(d == pl.num_programs(1) - 1)
    def _():
        pooled = jnp.dot(pool_ref[...], x, preferred_element_type=jnp.float32)   # [TB, D]
        y = _ln(pooled, fng_ref[...], fnb_ref[...])
        logits = jnp.dot(y.astype(jnp.bfloat16), head_w_ref[...],
                         preferred_element_type=jnp.float32) + head_b_ref[...]   # [TB, 128]
        o_ref[...] = logits.astype(o_ref.dtype)


# ------------------------------------ parameters -------------------------------------------
def init_params(key):
    def nrm(k, shape, std=0.02):
        return (std * jax.random.normal(k, shape)).astype(jnp.float32)

    kit = iter(jax.random.split(key, 64))
    D = EMBED_DIM

    params = {
        "patch_w": nrm(next(kit), (PATCH_DIM, D)),
        "patch_b": jnp.zeros((D,), jnp.float32),
        "cls_token": nrm(next(kit), (1, 1, D)),
        "pos_embed": nrm(next(kit), (1, NUM_PATCHES + 1, D)),
        "fc_norm_g": jnp.ones((D,), jnp.float32),
        "fc_norm_b": jnp.zeros((D,), jnp.float32),
        "head_w": nrm(next(kit), (D, NUM_CLASSES)),
        "head_b": jnp.zeros((NUM_CLASSES,), jnp.float32),
        "blocks": [],
    }
    for _ in range(DEPTH):
        params["blocks"].append(dict(
            ln1_g=jnp.ones((D,), jnp.float32), ln1_b=jnp.zeros((D,), jnp.float32),
            qkv_w=nrm(next(kit), (D, 3 * D)), qkv_b=jnp.zeros((3 * D,), jnp.float32),
            proj_w=nrm(next(kit), (D, D)), proj_b=jnp.zeros((D,), jnp.float32),
            ln2_g=jnp.ones((D,), jnp.float32), ln2_b=jnp.zeros((D,), jnp.float32),
            fc1_w=nrm(next(kit), (D, HIDDEN)), fc1_b=jnp.zeros((HIDDEN,), jnp.float32),
            fc2_w=nrm(next(kit), (HIDDEN, D)), fc2_b=jnp.zeros((D,), jnp.float32),
        ))
    return params


def prepare_params(params):
    """One-time layout prep: stack block weights over depth, cast MXU weights to bf16,
    fold cls/pos-embed/patch-bias into an additive base tile, lane-pad the head."""
    D = EMBED_DIM
    blocks = params["blocks"]

    def stack_mat(name):          # [DEPTH, in, out] bf16 (MXU operand)
        return jnp.stack([b[name] for b in blocks], axis=0).astype(jnp.bfloat16)

    def stack_vec(name):          # [DEPTH, 1, out] f32 (added post-accumulation)
        return jnp.stack([b[name].reshape(1, -1) for b in blocks], axis=0)

    stacked = dict(
        ln1_g=stack_vec("ln1_g"), ln1_b=stack_vec("ln1_b"),
        qkv_w=stack_mat("qkv_w"), qkv_b=stack_vec("qkv_b"),
        proj_w=stack_mat("proj_w"), proj_b=stack_vec("proj_b"),
        ln2_g=stack_vec("ln2_g"), ln2_b=stack_vec("ln2_b"),
        fc1_w=stack_mat("fc1_w"), fc1_b=stack_vec("fc1_b"),
        fc2_w=stack_mat("fc2_w"), fc2_b=stack_vec("fc2_b"),
    )

    # base[0] = cls + pos[0]; base[1:SEQ] = pos[1:] + patch_bias; padded rows = 0
    base = jnp.zeros((SEQ_PAD, D), jnp.float32)
    base = base.at[0, :].set(params["cls_token"][0, 0, :] + params["pos_embed"][0, 0, :])
    base = base.at[1:SEQ, :].set(params["pos_embed"][0, 1:, :] + params["patch_b"][None, :])

    head_w = jnp.zeros((D, NC_PAD), jnp.float32).at[:, :NUM_CLASSES].set(params["head_w"])
    head_b = jnp.zeros((1, NC_PAD), jnp.float32).at[:, :NUM_CLASSES].set(params["head_b"])

    return dict(
        patch_w=params["patch_w"].astype(jnp.bfloat16),
        base=base,
        fc_norm_g=params["fc_norm_g"].reshape(1, D),
        fc_norm_b=params["fc_norm_b"].reshape(1, D),
        head_w=head_w.astype(jnp.bfloat16),
        head_b=head_b,
        blocks=stacked,
    )


def _pick_tb(batch):
    # Batch-block size: amortize weight DMA / fill MXU rows. Keep it simple: one block
    # for small batches, 8 (keeps >=2 blocks for megacore) when it divides evenly.
    if batch > 8 and batch % 8 == 0:
        return 8
    return batch


# ------------------------------------- forward ---------------------------------------------
def radar_model_forward(prepped, radar):
    """radar: NCHW [B, C, H, W] float32 -> logits [B, NUM_CLASSES]."""
    B, C, H, W = radar.shape
    assert C == IN_CHANS and H == IMG and W == IMG
    P, D, H3, HID = PATCH, EMBED_DIM, 3 * EMBED_DIM, HIDDEN
    nh, nw = H // P, W // P
    N = nh * nw
    assert N == NUM_PATCHES

    TB = _pick_tb(B)
    NB = B // TB
    M = TB * SEQ_PAD                                   # tokens per batch block

    # patchify (== conv16x16/stride16 unfold) + bf16 cast; rows 0 / >= SEQ stay zero.
    # TODO(synk): for real-size IMG=224, move patch extraction into the kernel via an
    # index_map over (patch_row, patch_col) to avoid this XLA-side transpose copy.
    patches = radar.reshape(B, C, nh, P, nw, P)
    patches = jnp.transpose(patches, (0, 2, 4, 1, 3, 5)).reshape(B, N, C * P * P)
    patches = jnp.pad(patches, ((0, 0), (1, SEQ_PAD - 1 - N), (0, 0)))
    patches = patches.astype(jnp.bfloat16).reshape(B * SEQ_PAD, PATCH_DIM)

    # additive base tile tiled over the batch block
    base = jnp.tile(prepped["base"], (TB, 1))                                   # [M, D]

    # additive attention mask: 0 for (same batch element AND valid key), else -1e30
    qb = jax.lax.broadcasted_iota(jnp.int32, (M, M), 0) // SEQ_PAD
    kcol = jax.lax.broadcasted_iota(jnp.int32, (M, M), 1)
    ok = (qb == kcol // SEQ_PAD) & ((kcol % SEQ_PAD) < SEQ)
    amask = jnp.where(ok, 0.0, NEG_INF).astype(jnp.float32)                     # [M, M]

    # per-batch-block mean-pool matrix over patch tokens (rows 1..SEQ-1 of each element)
    prow = jax.lax.broadcasted_iota(jnp.int32, (TB, M), 0)
    pcol = jax.lax.broadcasted_iota(jnp.int32, (TB, M), 1)
    psel = (pcol // SEQ_PAD == prow) & ((pcol % SEQ_PAD) >= 1) & ((pcol % SEQ_PAD) < SEQ)
    pool = psel.astype(jnp.float32) * (1.0 / NUM_PATCHES)                       # [TB, M]

    blk = prepped["blocks"]
    wspec = lambda ni, no: pl.BlockSpec((1, ni, no), lambda b, d: (d, 0, 0))
    vspec = lambda n: pl.BlockSpec((1, 1, n), lambda b, d: (d, 0, 0))
    cspec = lambda r, c: pl.BlockSpec((r, c), lambda b, d: (0, 0))

    logits = pl.pallas_call(
        _fused_vit_kernel,
        out_shape=jax.ShapeDtypeStruct((B, NC_PAD), jnp.float32),
        grid=(NB, DEPTH),
        in_specs=[
            pl.BlockSpec((M, PATCH_DIM), lambda b, d: (b, 0)),     # patches (bf16)
            cspec(PATCH_DIM, D),                                   # patch embed weight
            cspec(M, D),                                           # base (cls/pos/bias)
            cspec(M, M),                                           # additive attn mask
            vspec(D), vspec(D),                                    # ln1 g, b
            wspec(D, H3), vspec(H3),                               # qkv w, b
            wspec(D, D), vspec(D),                                 # proj w, b
            vspec(D), vspec(D),                                    # ln2 g, b
            wspec(D, HID), vspec(HID),                             # fc1 w, b
            wspec(HID, D), vspec(D),                               # fc2 w, b
            cspec(TB, M),                                          # pool matrix
            cspec(1, D), cspec(1, D),                              # fc_norm g, b
            cspec(D, NC_PAD), cspec(1, NC_PAD),                    # head w, b
        ],
        out_specs=pl.BlockSpec((TB, NC_PAD), lambda b, d: (b, 0)),
        scratch_shapes=[pltpu.VMEM((M, D), jnp.float32)],
        compiler_params=pltpu.CompilerParams(
            dimension_semantics=("parallel", "arbitrary")),
    )(patches, prepped["patch_w"], base, amask,
      blk["ln1_g"], blk["ln1_b"], blk["qkv_w"], blk["qkv_b"],
      blk["proj_w"], blk["proj_b"], blk["ln2_g"], blk["ln2_b"],
      blk["fc1_w"], blk["fc1_b"], blk["fc2_w"], blk["fc2_b"],
      pool, prepped["fc_norm_g"], prepped["fc_norm_b"],
      prepped["head_w"], prepped["head_b"])

    return logits[:, :NUM_CLASSES]


# TODO(synk): load_model() (MAE pretrained .pth checkpoint loading) has no in-script
# equivalent; deterministic synthetic weights are used instead.

if __name__ == "__main__":
    key = jax.random.PRNGKey(0)
    k_in, k_par = jax.random.split(key)
    radar = jax.random.normal(k_in, (2, IN_CHANS, IMG, IMG), dtype=jnp.float32)

    params = init_params(k_par)
    prepped = prepare_params(params)

    fwd = jax.jit(radar_model_forward)
    logits = fwd(prepped, radar)
    jax.block_until_ready(logits)
    assert logits.shape == (2, NUM_CLASSES), logits.shape
    assert bool(jnp.all(jnp.isfinite(logits)))
    print("KERNEL_OK")
</pallas_src>

<mosaic_0001>
module attributes {stable_mosaic.version = 11 : i64} {
  func.func @_fused_vit_kernel(%arg0: i32, %arg1: i32, %arg2: memref<48x768xbf16, #tpu.memory_space<vmem>>, %arg3: memref<768x64xbf16, #tpu.memory_space<vmem>>, %arg4: memref<48x64xf32, #tpu.memory_space<vmem>>, %arg5: memref<48x48xf32, #tpu.memory_space<vmem>>, %arg6: memref<1x1x64xf32, #tpu.memory_space<vmem>>, %arg7: memref<1x1x64xf32, #tpu.memory_space<vmem>>, %arg8: memref<1x64x192xbf16, #tpu.memory_space<vmem>>, %arg9: memref<1x1x192xf32, #tpu.memory_space<vmem>>, %arg10: memref<1x64x64xbf16, #tpu.memory_space<vmem>>, %arg11: memref<1x1x64xf32, #tpu.memory_space<vmem>>, %arg12: memref<1x1x64xf32, #tpu.memory_space<vmem>>, %arg13: memref<1x1x64xf32, #tpu.memory_space<vmem>>, %arg14: memref<1x64x256xbf16, #tpu.memory_space<vmem>>, %arg15: memref<1x1x256xf32, #tpu.memory_space<vmem>>, %arg16: memref<1x256x64xbf16, #tpu.memory_space<vmem>>, %arg17: memref<1x1x64xf32, #tpu.memory_space<vmem>>, %arg18: memref<2x48xf32, #tpu.memory_space<vmem>>, %arg19: memref<1x64xf32, #tpu.memory_space<vmem>>, %arg20: memref<1x64xf32, #tpu.memory_space<vmem>>, %arg21: memref<64x128xbf16, #tpu.memory_space<vmem>>, %arg22: memref<1x128xf32, #tpu.memory_space<vmem>>, %arg23: memref<2x128xf32, #tpu.memory_space<vmem>>, %arg24: memref<48x64xf32, #tpu.memory_space<vmem>>) attributes {dimension_semantics = [#tpu.dimension_semantics<parallel>, #tpu.dimension_semantics<arbitrary>], iteration_bounds = array<i64: 1, 2>, scalar_prefetch = 0 : i64, scratch_operands = 1 : i64, tpu.core_type = #tpu.core_type<tc>, window_params = [{transform_indices = @transform_0, window_bounds = array<i64: 48, 768>}, {pipeline_mode = #tpu.pipeline_mode<synchronous>, transform_indices = @transform_1, window_bounds = array<i64: 768, 64>}, {pipeline_mode = #tpu.pipeline_mode<synchronous>, transform_indices = @transform_2, window_bounds = array<i64: 48, 64>}, {pipeline_mode = #tpu.pipeline_mode<synchronous>, transform_indices = @transform_3, window_bounds = array<i64: 48, 48>}, {transform_indices = @transform_4, window_bounds = array<i64: 1, 1, 64>}, {transform_indices = @transform_5, window_bounds = array<i64: 1, 1, 64>}, {transform_indices = @transform_6, window_bounds = array<i64: 1, 64, 192>}, {transform_indices = @transform_7, window_bounds = array<i64: 1, 1, 192>}, {transform_indices = @transform_8, window_bounds = array<i64: 1, 64, 64>}, {transform_indices = @transform_9, window_bounds = array<i64: 1, 1, 64>}, {transform_indices = @transform_10, window_bounds = array<i64: 1, 1, 64>}, {transform_indices = @transform_11, window_bounds = array<i64: 1, 1, 64>}, {transform_indices = @transform_12, window_bounds = array<i64: 1, 64, 256>}, {transform_indices = @transform_13, window_bounds = array<i64: 1, 1, 256>}, {transform_indices = @transform_14, window_bounds = array<i64: 1, 256, 64>}, {transform_indices = @transform_15, window_bounds = array<i64: 1, 1, 64>}, {pipeline_mode = #tpu.pipeline_mode<synchronous>, transform_indices = @transform_16, window_bounds = array<i64: 2, 48>}, {pipeline_mode = #tpu.pipeline_mode<synchronous>, transform_indices = @transform_17, window_bounds = array<i64: 1, 64>}, {pipeline_mode = #tpu.pipeline_mode<synchronous>, transform_indices = @transform_18, window_bounds = array<i64: 1, 64>}, {pipeline_mode = #tpu.pipeline_mode<synchronous>, transform_indices = @transform_19, window_bounds = array<i64: 64, 128>}, {pipeline_mode = #tpu.pipeline_mode<synchronous>, transform_indices = @transform_20, window_bounds = array<i64: 1, 128>}, {transform_indices = @transform_21, window_bounds = array<i64: 2, 128>}]} {
    %c0_i32 = arith.constant 0 : i32
    %0 = arith.cmpi eq, %arg1, %c0_i32 : i32
    %1 = arith.extui %0 : i1 to i32
    %c0_i32_0 = arith.constant 0 : i32
    %2 = arith.cmpi ne, %1, %c0_i32_0 : i32
    scf.if %2 {
      %c0_83 = arith.constant 0 : index
      %c0_84 = arith.constant 0 : index
      %190 = vector.load %arg2[%c0_83, %c0_84] : memref<48x768xbf16, #tpu.memory_space<vmem>>, vector<48x768xbf16>
      %c0_85 = arith.constant 0 : index
      %c0_86 = arith.constant 0 : index
      %191 = vector.load %arg3[%c0_85, %c0_86] : memref<768x64xbf16, #tpu.memory_space<vmem>>, vector<768x64xbf16>
      %cst_87 = arith.constant dense<0.000000e+00> : vector<48x64xf32>
      %192 = tpu.matmul %190, %191, %cst_87 {dimension_numbers = #tpu.dot_dimension_numbers<[1], [0], [0], [1], [0, 0, 1, 1], [], []>} : vector<48x768xbf16>, vector<768x64xbf16>, vector<48x64xf32> -> vector<48x64xf32>
      %c0_88 = arith.constant 0 : index
      %c0_89 = arith.constant 0 : index
      %193 = vector.load %arg4[%c0_88, %c0_89] : memref<48x64xf32, #tpu.memory_space<vmem>>, vector<48x64xf32>
      %194 = arith.addf %192, %193 : vector<48x64xf32>
      %c0_90 = arith.constant 0 : index
      %c0_91 = arith.constant 0 : index
      %195 = vector.load %arg24[%c0_90, %c0_91] : memref<48x64xf32, #tpu.memory_space<vmem>>, vector<48x64xf32>
      tpu.vector_store %arg24[%c0_90, %c0_91], %194 {strides = array<i32>} : memref<48x64xf32, #tpu.memory_space<vmem>>, vector<48x64xf32>,
    } else {
    }
    %c0 = arith.constant 0 : index
    %c0_1 = arith.constant 0 : index
    %3 = vector.load %arg24[%c0, %c0_1] : memref<48x64xf32, #tpu.memory_space<vmem>>, vector<48x64xf32>
    %c0_2 = arith.constant 0 : index
    %c0_3 = arith.constant 0 : index
    %c0_4 = arith.constant 0 : index
    %4 = vector.load %arg6[%c0_2, %c0_3, %c0_4] : memref<1x1x64xf32, #tpu.memory_space<vmem>>, vector<1x1x64xf32>
    %5 = vector.shape_cast %4 : vector<1x1x64xf32> to vector<1x64xf32>
    %c0_5 = arith.constant 0 : index
    %c0_6 = arith.constant 0 : index
    %c0_7 = arith.constant 0 : index
    %6 = vector.load %arg7[%c0_5, %c0_6, %c0_7] : memref<1x1x64xf32, #tpu.memory_space<vmem>>, vector<1x1x64xf32>
    %7 = vector.shape_cast %6 : vector<1x1x64xf32> to vector<1x64xf32>
    %cst = arith.constant dense<0.000000e+00> : vector<48xf32>
    %8 = vector.multi_reduction <add>, %3, %cst [1] : vector<48x64xf32> to vector<48xf32>
    %9 = vector.shape_cast %8 : vector<48xf32> to vector<48x1xf32>
    %cst_8 = arith.constant 6.400000e+01 : f32
    %10 = vector.broadcast %cst_8 : f32 to vector<48x1xf32>
    %11 = arith.divf %9, %10 : vector<48x1xf32>
    %12 = vector.broadcast %11 : vector<48x1xf32> to vector<48x64xf32>
    %13 = arith.subf %3, %12 : vector<48x64xf32>
    %14 = arith.mulf %13, %13 : vector<48x64xf32>
    %cst_9 = arith.constant dense<0.000000e+00> : vector<48xf32>
    %15 = vector.multi_reduction <add>, %14, %cst_9 [1] : vector<48x64xf32> to vector<48xf32>
    %16 = vector.shape_cast %15 : vector<48xf32> to vector<48x1xf32>
    %cst_10 = arith.constant 6.400000e+01 : f32
    %17 = vector.broadcast %cst_10 : f32 to vector<48x1xf32>
    %18 = arith.divf %16, %17 : vector<48x1xf32>
    %19 = vector.broadcast %11 : vector<48x1xf32> to vector<48x64xf32>
    %20 = arith.subf %3, %19 : vector<48x64xf32>
    %cst_11 = arith.constant 9.99999997E-7 : f32
    %21 = vector.broadcast %cst_11 : f32 to vector<48x1xf32>
    %22 = arith.addf %18, %21 : vector<48x1xf32>
    %23 = math.rsqrt %22 : vector<48x1xf32>
    %24 = vector.broadcast %23 : vector<48x1xf32> to vector<48x64xf32>
    %25 = arith.mulf %20, %24 : vector<48x64xf32>
    %26 = vector.broadcast %5 : vector<1x64xf32> to vector<48x64xf32>
    %27 = arith.mulf %25, %26 : vector<48x64xf32>
    %28 = vector.broadcast %7 : vector<1x64xf32> to vector<48x64xf32>
    %29 = arith.addf %27, %28 : vector<48x64xf32>
    %30 = arith.truncf %29 : vector<48x64xf32> to vector<48x64xbf16>
    %c0_12 = arith.constant 0 : index
    %c0_13 = arith.constant 0 : index
    %c0_14 = arith.constant 0 : index
    %31 = vector.load %arg8[%c0_12, %c0_13, %c0_14] : memref<1x64x192xbf16, #tpu.memory_space<vmem>>, vector<1x64x192xbf16>
    %32 = vector.shape_cast %31 : vector<1x64x192xbf16> to vector<64x192xbf16>
    %cst_15 = arith.constant dense<0.000000e+00> : vector<48x192xf32>
    %33 = tpu.matmul %30, %32, %cst_15 {dimension_numbers = #tpu.dot_dimension_numbers<[1], [0], [0], [1], [0, 0, 1, 1], [], []>} : vector<48x64xbf16>, vector<64x192xbf16>, vector<48x192xf32> -> vector<48x192xf32>
    %c0_16 = arith.constant 0 : index
    %c0_17 = arith.constant 0 : index
    %c0_18 = arith.constant 0 : index
    %34 = vector.load %arg9[%c0_16, %c0_17, %c0_18] : memref<1x1x192xf32, #tpu.memory_space<vmem>>, vector<1x1x192xf32>
    %35 = vector.shape_cast %34 : vector<1x1x192xf32> to vector<1x192xf32>
    %36 = vector.broadcast %35 : vector<1x192xf32> to vector<48x192xf32>
    %37 = arith.addf %33, %36 : vector<48x192xf32>
    %c0_19 = arith.constant 0 : index
    %c0_20 = arith.constant 0 : index
    %38 = vector.load %arg5[%c0_19, %c0_20] : memref<48x48xf32, #tpu.memory_space<vmem>>, vector<48x48xf32>
    %c0_21 = arith.constant 0 : index
    %c0_22 = arith.constant 0 : index
    %c0_23 = arith.constant 0 : index
    %39 = vector.load %arg10[%c0_21, %c0_22, %c0_23] : memref<1x64x64xbf16, #tpu.memory_space<vmem>>, vector<1x64x64xbf16>
    %40 = vector.shape_cast %39 : vector<1x64x64xbf16> to vector<64x64xbf16>
    %cst_24 = arith.constant 0.000000e+00 : f32
    %41 = vector.broadcast %cst_24 : f32 to vector<48x64xf32>
    %42 = vector.extract_strided_slice %37 {offsets = [0, 0], sizes = [48, 16], strides = [1, 1]} : vector<48x192xf32> to vector<48x16xf32>
    %cst_25 = arith.constant 2.500000e-01 : f32
    %43 = vector.broadcast %cst_25 : f32 to vector<48x16xf32>
    %44 = arith.mulf %42, %43 : vector<48x16xf32>
    %45 = vector.extract_strided_slice %37 {offsets = [0, 64], sizes = [48, 16], strides = [1, 1]} : vector<48x192xf32> to vector<48x16xf32>
    %46 = vector.extract_strided_slice %37 {offsets = [0, 128], sizes = [48, 16], strides = [1, 1]} : vector<48x192xf32> to vector<48x16xf32>
    %cst_26 = arith.constant dense<0.000000e+00> : vector<48x48xf32>
    %47 = tpu.matmul %44, %45, %cst_26 {dimension_numbers = #tpu.dot_dimension_numbers<[1], [1], [0], [0], [0, 0, 1, 0], [], []>} : vector<48x16xf32>, vector<48x16xf32>, vector<48x48xf32> -> vector<48x48xf32>
    %48 = arith.addf %47, %38 : vector<48x48xf32>
    %cst_27 = arith.constant dense<0xFF800000> : vector<48xf32>
    %49 = vector.multi_reduction <maximumf>, %48, %cst_27 [1] : vector<48x48xf32> to vector<48xf32>
    %50 = vector.shape_cast %49 : vector<48xf32> to vector<48x1xf32>
    %51 = vector.broadcast %50 : vector<48x1xf32> to vector<48x48xf32>
    %52 = arith.subf %48, %51 : vector<48x48xf32>
    %53 = math.exp %52 : vector<48x48xf32>
    %cst_28 = arith.constant dense<0.000000e+00> : vector<48xf32>
    %54 = vector.multi_reduction <add>, %53, %cst_28 [1] : vector<48x48xf32> to vector<48xf32>
    %55 = vector.shape_cast %54 : vector<48xf32> to vector<48x1xf32>
    %56 = tpu.reciprocal %55 {approx = true} : vector<48x1xf32> -> vector<48x1xf32>
    %57 = vector.broadcast %56 : vector<48x1xf32> to vector<48x48xf32>
    %58 = arith.mulf %53, %57 : vector<48x48xf32>
    %cst_29 = arith.constant dense<0.000000e+00> : vector<48x16xf32>
    %59 = tpu.matmul %58, %46, %cst_29 {dimension_numbers = #tpu.dot_dimension_numbers<[1], [0], [0], [1], [0, 0, 1, 1], [], []>} : vector<48x48xf32>, vector<48x16xf32>, vector<48x16xf32> -> vector<48x16xf32>
    %60 = arith.truncf %59 : vector<48x16xf32> to vector<48x16xbf16>
    %61 = vector.extract_strided_slice %40 {offsets = [0, 0], sizes = [16, 64], strides = [1, 1]} : vector<64x64xbf16> to vector<16x64xbf16>
    %cst_30 = arith.constant dense<0.000000e+00> : vector<48x64xf32>
    %62 = tpu.matmul %60, %61, %cst_30 {dimension_numbers = #tpu.dot_dimension_numbers<[1], [0], [0], [1], [0, 0, 1, 1], [], []>} : vector<48x16xbf16>, vector<16x64xbf16>, vector<48x64xf32> -> vector<48x64xf32>
    %63 = arith.addf %41, %62 : vector<48x64xf32>
    %64 = vector.extract_strided_slice %37 {offsets = [0, 16], sizes = [48, 16], strides = [1, 1]} : vector<48x192xf32> to vector<48x16xf32>
    %cst_31 = arith.constant 2.500000e-01 : f32
    %65 = vector.broadcast %cst_31 : f32 to vector<48x16xf32>
    %66 = arith.mulf %64, %65 : vector<48x16xf32>
    %67 = vector.extract_strided_slice %37 {offsets = [0, 80], sizes = [48, 16], strides = [1, 1]} : vector<48x192xf32> to vector<48x16xf32>
    %68 = vector.extract_strided_slice %37 {offsets = [0, 144], sizes = [48, 16], strides = [1, 1]} : vector<48x192xf32> to vector<48x16xf32>
    %cst_32 = arith.constant dense<0.000000e+00> : vector<48x48xf32>
    %69 = tpu.matmul %66, %67, %cst_32 {dimension_numbers = #tpu.dot_dimension_numbers<[1], [1], [0], [0], [0, 0, 1, 0], [], []>} : vector<48x16xf32>, vector<48x16xf32>, vector<48x48xf32> -> vector<48x48xf32>
    %70 = arith.addf %69, %38 : vector<48x48xf32>
    %cst_33 = arith.constant dense<0xFF800000> : vector<48xf32>
    %71 = vector.multi_reduction <maximumf>, %70, %cst_33 [1] : vector<48x48xf32> to vector<48xf32>
    %72 = vector.shape_cast %71 : vector<48xf32> to vector<48x1xf32>
    %73 = vector.broadcast %72 : vector<48x1xf32> to vector<48x48xf32>
    %74 = arith.subf %70, %73 : vector<48x48xf32>
    %75 = math.exp %74 : vector<48x48xf32>
    %cst_34 = arith.constant dense<0.000000e+00> : vector<48xf32>
    %76 = vector.multi_reduction <add>, %75, %cst_34 [1] : vector<48x48xf32> to vector<48xf32>
    %77 = vector.shape_cast %76 : vector<48xf32> to vector<48x1xf32>
    %78 = tpu.reciprocal %77 {approx = true} : vector<48x1xf32> -> vector<48x1xf32>
    %79 = vector.broadcast %78 : vector<48x1xf32> to vector<48x48xf32>
    %80 = arith.mulf %75, %79 : vector<48x48xf32>
    %cst_35 = arith.constant dense<0.000000e+00> : vector<48x16xf32>
    %81 = tpu.matmul %80, %68, %cst_35 {dimension_numbers = #tpu.dot_dimension_numbers<[1], [0], [0], [1], [0, 0, 1, 1], [], []>} : vector<48x48xf32>, vector<48x16xf32>, vector<48x16xf32> -> vector<48x16xf32>
    %82 = arith.truncf %81 : vector<48x16xf32> to vector<48x16xbf16>
    %83 = vector.extract_strided_slice %40 {offsets = [16, 0], sizes = [16, 64], strides = [1, 1]} : vector<64x64xbf16> to vector<16x64xbf16>
    %cst_36 = arith.constant dense<0.000000e+00> : vector<48x64xf32>
    %84 = tpu.matmul %82, %83, %cst_36 {dimension_numbers = #tpu.dot_dimension_numbers<[1], [0], [0], [1], [0, 0, 1, 1], [], []>} : vector<48x16xbf16>, vector<16x64xbf16>, vector<48x64xf32> -> vector<48x64xf32>
    %85 = arith.addf %63, %84 : vector<48x64xf32>
    %86 = vector.extract_strided_slice %37 {offsets = [0, 32], sizes = [48, 16], strides = [1, 1]} : vector<48x192xf32> to vector<48x16xf32>
    %cst_37 = arith.constant 2.500000e-01 : f32
    %87 = vector.broadcast %cst_37 : f32 to vector<48x16xf32>
    %88 = arith.mulf %86, %87 : vector<48x16xf32>
    %89 = vector.extract_strided_slice %37 {offsets = [0, 96], sizes = [48, 16], strides = [1, 1]} : vector<48x192xf32> to vector<48x16xf32>
    %90 = vector.extract_strided_slice %37 {offsets = [0, 160], sizes = [48, 16], strides = [1, 1]} : vector<48x192xf32> to vector<48x16xf32>
    %cst_38 = arith.constant dense<0.000000e+00> : vector<48x48xf32>
    %91 = tpu.matmul %88, %89, %cst_38 {dimension_numbers = #tpu.dot_dimension_numbers<[1], [1], [0], [0], [0, 0, 1, 0], [], []>} : vector<48x16xf32>, vector<48x16xf32>, vector<48x48xf32> -> vector<48x48xf32>
    %92 = arith.addf %91, %38 : vector<48x48xf32>
    %cst_39 = arith.constant dense<0xFF800000> : vector<48xf32>
    %93 = vector.multi_reduction <maximumf>, %92, %cst_39 [1] : vector<48x48xf32> to vector<48xf32>
    %94 = vector.shape_cast %93 : vector<48xf32> to vector<48x1xf32>
    %95 = vector.broadcast %94 : vector<48x1xf32> to vector<48x48xf32>
    %96 = arith.subf %92, %95 : vector<48x48xf32>
    %97 = math.exp %96 : vector<48x48xf32>
    %cst_40 = arith.constant dense<0.000000e+00> : vector<48xf32>
    %98 = vector.multi_reduction <add>, %97, %cst_40 [1] : vector<48x48xf32> to vector<48xf32>
    %99 = vector.shape_cast %98 : vector<48xf32> to vector<48x1xf32>
    %100 = tpu.reciprocal %99 {approx = true} : vector<48x1xf32> -> vector<48x1xf32>
    %101 = vector.broadcast %100 : vector<48x1xf32> to vector<48x48xf32>
    %102 = arith.mulf %97, %101 : vector<48x48xf32>
    %cst_41 = arith.constant dense<0.000000e+00> : vector<48x16xf32>
    %103 = tpu.matmul %102, %90, %cst_41 {dimension_numbers = #tpu.dot_dimension_numbers<[1], [0], [0], [1], [0, 0, 1, 1], [], []>} : vector<48x48xf32>, vector<48x16xf32>, vector<48x16xf32> -> vector<48x16xf32>
    %104 = arith.truncf %103 : vector<48x16xf32> to vector<48x16xbf16>
    %105 = vector.extract_strided_slice %40 {offsets = [32, 0], sizes = [16, 64], strides = [1, 1]} : vector<64x64xbf16> to vector<16x64xbf16>
    %cst_42 = arith.constant dense<0.000000e+00> : vector<48x64xf32>
    %106 = tpu.matmul %104, %105, %cst_42 {dimension_numbers = #tpu.dot_dimension_numbers<[1], [0], [0], [1], [0, 0, 1, 1], [], []>} : vector<48x16xbf16>, vector<16x64xbf16>, vector<48x64xf32> -> vector<48x64xf32>
    %107 = arith.addf %85, %106 : vector<48x64xf32>
    %108 = vector.extract_strided_slice %37 {offsets = [0, 48], sizes = [48, 16], strides = [1, 1]} : vector<48x192xf32> to vector<48x16xf32>
    %cst_43 = arith.constant 2.500000e-01 : f32
    %109 = vector.broadcast %cst_43 : f32 to vector<48x16xf32>
    %110 = arith.mulf %108, %109 : vector<48x16xf32>
    %111 = vector.extract_strided_slice %37 {offsets = [0, 112], sizes = [48, 16], strides = [1, 1]} : vector<48x192xf32> to vector<48x16xf32>
    %112 = vector.extract_strided_slice %37 {offsets = [0, 176], sizes = [48, 16], strides = [1, 1]} : vector<48x192xf32> to vector<48x16xf32>
    %cst_44 = arith.constant dense<0.000000e+00> : vector<48x48xf32>
    %113 = tpu.matmul %110, %111, %cst_44 {dimension_numbers = #tpu.dot_dimension_numbers<[1], [1], [0], [0], [0, 0, 1, 0], [], []>} : vector<48x16xf32>, vector<48x16xf32>, vector<48x48xf32> -> vector<48x48xf32>
    %114 = arith.addf %113, %38 : vector<48x48xf32>
    %cst_45 = arith.constant dense<0xFF800000> : vector<48xf32>
    %115 = vector.multi_reduction <maximumf>, %114, %cst_45 [1] : vector<48x48xf32> to vector<48xf32>
    %116 = vector.shape_cast %115 : vector<48xf32> to vector<48x1xf32>
    %117 = vector.broadcast %116 : vector<48x1xf32> to vector<48x48xf32>
    %118 = arith.subf %114, %117 : vector<48x48xf32>
    %119 = math.exp %118 : vector<48x48xf32>
    %cst_46 = arith.constant dense<0.000000e+00> : vector<48xf32>
    %120 = vector.multi_reduction <add>, %119, %cst_46 [1] : vector<48x48xf32> to vector<48xf32>
    %121 = vector.shape_cast %120 : vector<48xf32> to vector<48x1xf32>
    %122 = tpu.reciprocal %121 {approx = true} : vector<48x1xf32> -> vector<48x1xf32>
    %123 = vector.broadcast %122 : vector<48x1xf32> to vector<48x48xf32>
    %124 = arith.mulf %119, %123 : vector<48x48xf32>
    %cst_47 = arith.constant dense<0.000000e+00> : vector<48x16xf32>
    %125 = tpu.matmul %124, %112, %cst_47 {dimension_numbers = #tpu.dot_dimension_numbers<[1], [0], [0], [1], [0, 0, 1, 1], [], []>} : vector<48x48xf32>, vector<48x16xf32>, vector<48x16xf32> -> vector<48x16xf32>
    %126 = arith.truncf %125 : vector<48x16xf32> to vector<48x16xbf16>
    %127 = vector.extract_strided_slice %40 {offsets = [48, 0], sizes = [16, 64], strides = [1, 1]} : vector<64x64xbf16> to vector<16x64xbf16>
    %cst_48 = arith.constant dense<0.000000e+00> : vector<48x64xf32>
    %128 = tpu.matmul %126, %127, %cst_48 {dimension_numbers = #tpu.dot_dimension_numbers<[1], [0], [0], [1], [0, 0, 1, 1], [], []>} : vector<48x16xbf16>, vector<16x64xbf16>, vector<48x64xf32> -> vector<48x64xf32>
    %129 = arith.addf %107, %128 : vector<48x64xf32>
    %130 = arith.addf %3, %129 : vector<48x64xf32>
    %c0_49 = arith.constant 0 : index
    %c0_50 = arith.constant 0 : index
    %c0_51 = arith.constant 0 : index
    %131 = vector.load %arg11[%c0_49, %c0_50, %c0_51] : memref<1x1x64xf32, #tpu.memory_space<vmem>>, vector<1x1x64xf32>
    %132 = vector.shape_cast %131 : vector<1x1x64xf32> to vector<1x64xf32>
    %133 = vector.broadcast %132 : vector<1x64xf32> to vector<48x64xf32>
    %134 = arith.addf %130, %133 : vector<48x64xf32>
    %c0_52 = arith.constant 0 : index
    %c0_53 = arith.constant 0 : index
    %c0_54 = arith.constant 0 : index
    %135 = vector.load %arg12[%c0_52, %c0_53, %c0_54] : memref<1x1x64xf32, #tpu.memory_space<vmem>>, vector<1x1x64xf32>
    %136 = vector.shape_cast %135 : vector<1x1x64xf32> to vector<1x64xf32>
    %c0_55 = arith.constant 0 : index
    %c0_56 = arith.constant 0 : index
    %c0_57 = arith.constant 0 : index
    %137 = vector.load %arg13[%c0_55, %c0_56, %c0_57] : memref<1x1x64xf32, #tpu.memory_space<vmem>>, vector<1x1x64xf32>
    %138 = vector.shape_cast %137 : vector<1x1x64xf32> to vector<1x64xf32>
    %cst_58 = arith.constant dense<0.000000e+00> : vector<48xf32>
    %139 = vector.multi_reduction <add>, %134, %cst_58 [1] : vector<48x64xf32> to vector<48xf32>
    %140 = vector.shape_cast %139 : vector<48xf32> to vector<48x1xf32>
    %cst_59 = arith.constant 6.400000e+01 : f32
    %141 = vector.broadcast %cst_59 : f32 to vector<48x1xf32>
    %142 = arith.divf %140, %141 : vector<48x1xf32>
    %143 = vector.broadcast %142 : vector<48x1xf32> to vector<48x64xf32>
    %144 = arith.subf %134, %143 : vector<48x64xf32>
    %145 = arith.mulf %144, %144 : vector<48x64xf32>
    %cst_60 = arith.constant dense<0.000000e+00> : vector<48xf32>
    %146 = vector.multi_reduction <add>, %145, %cst_60 [1] : vector<48x64xf32> to vector<48xf32>
    %147 = vector.shape_cast %146 : vector<48xf32> to vector<48x1xf32>
    %cst_61 = arith.constant 6.400000e+01 : f32
    %148 = vector.broadcast %cst_61 : f32 to vector<48x1xf32>
    %149 = arith.divf %147, %148 : vector<48x1xf32>
    %150 = vector.broadcast %142 : vector<48x1xf32> to vector<48x64xf32>
    %151 = arith.subf %134, %150 : vector<48x64xf32>
    %cst_62 = arith.constant 9.99999997E-7 : f32
    %152 = vector.broadcast %cst_62 : f32 to vector<48x1xf32>
    %153 = arith.addf %149, %152 : vector<48x1xf32>
    %154 = math.rsqrt %153 : vector<48x1xf32>
    %155 = vector.broadcast %154 : vector<48x1xf32> to vector<48x64xf32>
    %156 = arith.mulf %151, %155 : vector<48x64xf32>
    %157 = vector.broadcast %136 : vector<1x64xf32> to vector<48x64xf32>
    %158 = arith.mulf %156, %157 : vector<48x64xf32>
    %159 = vector.broadcast %138 : vector<1x64xf32> to vector<48x64xf32>
    %160 = arith.addf %158, %159 : vector<48x64xf32>
    %161 = arith.truncf %160 : vector<48x64xf32> to vector<48x64xbf16>
    %c0_63 = arith.constant 0 : index
    %c0_64 = arith.constant 0 : index
    %c0_65 = arith.constant 0 : index
    %162 = vector.load %arg14[%c0_63, %c0_64, %c0_65] : memref<1x64x256xbf16, #tpu.memory_space<vmem>>, vector<1x64x256xbf16>
    %163 = vector.shape_cast %162 : vector<1x64x256xbf16> to vector<64x256xbf16>
    %cst_66 = arith.constant dense<0.000000e+00> : vector<48x256xf32>
    %164 = tpu.matmul %161, %163, %cst_66 {dimension_numbers = #tpu.dot_dimension_numbers<[1], [0], [0], [1], [0, 0, 1, 1], [], []>} : vector<48x64xbf16>, vector<64x256xbf16>, vector<48x256xf32> -> vector<48x256xf32>
    %c0_67 = arith.constant 0 : index
    %c0_68 = arith.constant 0 : index
    %c0_69 = arith.constant 0 : index
    %165 = vector.load %arg15[%c0_67, %c0_68, %c0_69] : memref<1x1x256xf32, #tpu.memory_space<vmem>>, vector<1x1x256xf32>
    %166 = vector.shape_cast %165 : vector<1x1x256xf32> to vector<1x256xf32>
    %167 = vector.broadcast %166 : vector<1x256xf32> to vector<48x256xf32>
    %168 = arith.addf %164, %167 : vector<48x256xf32>
    %cst_70 = arith.constant 5.000000e-01 : f32
    %169 = vector.broadcast %cst_70 : f32 to vector<48x256xf32>
    %170 = arith.mulf %169, %168 : vector<48x256xf32>
    %cst_71 = arith.constant 0.707106769 : f32
    %171 = vector.broadcast %cst_71 : f32 to vector<48x256xf32>
    %172 = arith.mulf %168, %171 : vector<48x256xf32>
    %173 = math.erf %172 : vector<48x256xf32>
    %cst_72 = arith.constant 1.000000e+00 : f32
    %174 = vector.broadcast %cst_72 : f32 to vector<48x256xf32>
    %175 = arith.addf %174, %173 : vector<48x256xf32>
    %176 = arith.mulf %170, %175 : vector<48x256xf32>
    %177 = arith.truncf %176 : vector<48x256xf32> to vector<48x256xbf16>
    %c0_73 = arith.constant 0 : index
    %c0_74 = arith.constant 0 : index
    %c0_75 = arith.constant 0 : index
    %178 = vector.load %arg16[%c0_73, %c0_74, %c0_75] : memref<1x256x64xbf16, #tpu.memory_space<vmem>>, vector<1x256x64xbf16>
    %179 = vector.shape_cast %178 : vector<1x256x64xbf16> to vector<256x64xbf16>
    %cst_76 = arith.constant dense<0.000000e+00> : vector<48x64xf32>
    %180 = tpu.matmul %177, %179, %cst_76 {dimension_numbers = #tpu.dot_dimension_numbers<[1], [0], [0], [1], [0, 0, 1, 1], [], []>} : vector<48x256xbf16>, vector<256x64xbf16>, vector<48x64xf32> -> vector<48x64xf32>
    %c0_77 = arith.constant 0 : index
    %c0_78 = arith.constant 0 : index
    %c0_79 = arith.constant 0 : index
    %181 = vector.load %arg17[%c0_77, %c0_78, %c0_79] : memref<1x1x64xf32, #tpu.memory_space<vmem>>, vector<1x1x64xf32>
    %182 = vector.shape_cast %181 : vector<1x1x64xf32> to vector<1x64xf32>
    %183 = vector.broadcast %182 : vector<1x64xf32> to vector<48x64xf32>
    %184 = arith.addf %180, %183 : vector<48x64xf32>
    %185 = arith.addf %134, %184 : vector<48x64xf32>
    %c0_80 = arith.constant 0 : index
    %c0_81 = arith.constant 0 : index
    %186 = vector.load %arg24[%c0_80, %c0_81] : memref<48x64xf32, #tpu.memory_space<vmem>>, vector<48x64xf32>
    tpu.vector_store %arg24[%c0_80, %c0_81], %185 {strides = array<i32>} : memref<48x64xf32, #tpu.memory_space<vmem>>, vector<48x64xf32>,
    %c1_i32 = arith.constant 1 : i32
    %187 = arith.cmpi eq, %arg1, %c1_i32 : i32
    %188 = arith.extui %187 : i1 to i32
    %c0_i32_82 = arith.constant 0 : i32
    %189 = arith.cmpi ne, %188, %c0_i32_82 : i32
    scf.if %189 {
      %c0_83 = arith.constant 0 : index
      %c0_84 = arith.constant 0 : index
      %190 = vector.load %arg18[%c0_83, %c0_84] : memref<2x48xf32, #tpu.memory_space<vmem>>, vector<2x48xf32>
      %cst_85 = arith.constant dense<0.000000e+00> : vector<2x64xf32>
      %191 = tpu.matmul %190, %185, %cst_85 {dimension_numbers = #tpu.dot_dimension_numbers<[1], [0], [0], [1], [0, 0, 1, 1], [], []>} : vector<2x48xf32>, vector<48x64xf32>, vector<2x64xf32> -> vector<2x64xf32>
      %c0_86 = arith.constant 0 : index
      %c0_87 = arith.constant 0 : index
      %192 = vector.load %arg19[%c0_86, %c0_87] : memref<1x64xf32, #tpu.memory_space<vmem>>, vector<1x64xf32>
      %c0_88 = arith.constant 0 : index
      %c0_89 = arith.constant 0 : index
      %193 = vector.load %arg20[%c0_88, %c0_89] : memref<1x64xf32, #tpu.memory_space<vmem>>, vector<1x64xf32>
      %cst_90 = arith.constant dense<0.000000e+00> : vector<2xf32>
      %194 = vector.multi_reduction <add>, %191, %cst_90 [1] : vector<2x64xf32> to vector<2xf32>
      %195 = vector.shape_cast %194 : vector<2xf32> to vector<2x1xf32>
      %cst_91 = arith.constant 6.400000e+01 : f32
      %196 = vector.broadcast %cst_91 : f32 to vector<2x1xf32>
      %197 = arith.divf %195, %196 : vector<2x1xf32>
      %198 = vector.broadcast %197 : vector<2x1xf32> to vector<2x64xf32>
      %199 = arith.subf %191, %198 : vector<2x64xf32>
      %200 = arith.mulf %199, %199 : vector<2x64xf32>
      %cst_92 = arith.constant dense<0.000000e+00> : vector<2xf32>
      %201 = vector.multi_reduction <add>, %200, %cst_92 [1] : vector<2x64xf32> to vector<2xf32>
      %202 = vector.shape_cast %201 : vector<2xf32> to vector<2x1xf32>
      %cst_93 = arith.constant 6.400000e+01 : f32
      %203 = vector.broadcast %cst_93 : f32 to vector<2x1xf32>
      %204 = arith.divf %202, %203 : vector<2x1xf32>
      %205 = vector.broadcast %197 : vector<2x1xf32> to vector<2x64xf32>
      %206 = arith.subf %191, %205 : vector<2x64xf32>
      %cst_94 = arith.constant 9.99999997E-7 : f32
      %207 = vector.broadcast %cst_94 : f32 to vector<2x1xf32>
      %208 = arith.addf %204, %207 : vector<2x1xf32>
      %209 = math.rsqrt %208 : vector<2x1xf32>
      %210 = vector.broadcast %209 : vector<2x1xf32> to vector<2x64xf32>
      %211 = arith.mulf %206, %210 : vector<2x64xf32>
      %212 = vector.broadcast %192 : vector<1x64xf32> to vector<2x64xf32>
      %213 = arith.mulf %211, %212 : vector<2x64xf32>
      %214 = vector.broadcast %193 : vector<1x64xf32> to vector<2x64xf32>
      %215 = arith.addf %213, %214 : vector<2x64xf32>
      %216 = arith.truncf %215 : vector<2x64xf32> to vector<2x64xbf16>
      %c0_95 = arith.constant 0 : index
      %c0_96 = arith.constant 0 : index
      %217 = vector.load %arg21[%c0_95, %c0_96] : memref<64x128xbf16, #tpu.memory_space<vmem>>, vector<64x128xbf16>
      %cst_97 = arith.constant dense<0.000000e+00> : vector<2x128xf32>
      %218 = tpu.matmul %216, %217, %cst_97 {dimension_numbers = #tpu.dot_dimension_numbers<[1], [0], [0], [1], [0, 0, 1, 1], [], []>} : vector<2x64xbf16>, vector<64x128xbf16>, vector<2x128xf32> -> vector<2x128xf32>
      %c0_98 = arith.constant 0 : index
      %c0_99 = arith.constant 0 : index
      %219 = vector.load %arg22[%c0_98, %c0_99] : memref<1x128xf32, #tpu.memory_space<vmem>>, vector<1x128xf32>
      %220 = vector.broadcast %219 : vector<1x128xf32> to vector<2x128xf32>
      %221 = arith.addf %218, %220 : vector<2x128xf32>
      %c0_100 = arith.constant 0 : index
      %c0_101 = arith.constant 0 : index
      %222 = vector.load %arg23[%c0_100, %c0_101] : memref<2x128xf32, #tpu.memory_space<vmem>>, vector<2x128xf32>
      tpu.vector_store %arg23[%c0_100, %c0_101], %221 {strides = array<i32>} : memref<2x128xf32, #tpu.memory_space<vmem>>, vector<2x128xf32>,
    } else {
    }
    return
  }
  func.func @transform_0(%arg0: i32, %arg1: i32) -> (i32, i32) {
    %c0_i32 = arith.constant 0 : i32
    %c0_i32_0 = arith.constant 0 : i32
    return %arg0, %c0_i32 : i32, i32
  }
  func.func @transform_1(%arg0: i32, %arg1: i32) -> (i32, i32) {
    %c0_i32 = arith.constant 0 : i32
    %c0_i32_0 = arith.constant 0 : i32
    %c0_i32_1 = arith.constant 0 : i32
    return %c0_i32, %c0_i32_0 : i32, i32
  }
  func.func @transform_2(%arg0: i32, %arg1: i32) -> (i32, i32) {
    %c0_i32 = arith.constant 0 : i32
    %c0_i32_0 = arith.constant 0 : i32
    %c0_i32_1 = arith.constant 0 : i32
    return %c0_i32, %c0_i32_0 : i32, i32
  }
  func.func @transform_3(%arg0: i32, %arg1: i32) -> (i32, i32) {
    %c0_i32 = arith.constant 0 : i32
    %c0_i32_0 = arith.constant 0 : i32
    %c0_i32_1 = arith.constant 0 : i32
    return %c0_i32, %c0_i32_0 : i32, i32
  }
  func.func @transform_4(%arg0: i32, %arg1: i32) -> (i32, i32, i32) {
    %c0_i32 = arith.constant 0 : i32
    %c0_i32_0 = arith.constant 0 : i32
    %c0_i32_1 = arith.constant 0 : i32
    return %arg1, %c0_i32, %c0_i32_0 : i32, i32, i32
  }
  func.func @transform_5(%arg0: i32, %arg1: i32) -> (i32, i32, i32) {
    %c0_i32 = arith.constant 0 : i32
    %c0_i32_0 = arith.constant 0 : i32
    %c0_i32_1 = arith.constant 0 : i32
    return %arg1, %c0_i32, %c0_i32_0 : i32, i32, i32
  }
  func.func @transform_6(%arg0: i32, %arg1: i32) -> (i32, i32, i32) {
    %c0_i32 = arith.constant 0 : i32
    %c0_i32_0 = arith.constant 0 : i32
    %c0_i32_1 = arith.constant 0 : i32
    return %arg1, %c0_i32, %c0_i32_0 : i32, i32, i32
  }
  func.func @transform_7(%arg0: i32, %arg1: i32) -> (i32, i32, i32) {
    %c0_i32 = arith.constant 0 : i32
    %c0_i32_0 = arith.constant 0 : i32
    %c0_i32_1 = arith.constant 0 : i32
    return %arg1, %c0_i32, %c0_i32_0 : i32, i32, i32
  }
  func.func @transform_8(%arg0: i32, %arg1: i32) -> (i32, i32, i32) {
    %c0_i32 = arith.constant 0 : i32
    %c0_i32_0 = arith.constant 0 : i32
    %c0_i32_1 = arith.constant 0 : i32
    return %arg1, %c0_i32, %c0_i32_0 : i32, i32, i32
  }
  func.func @transform_9(%arg0: i32, %arg1: i32) -> (i32, i32, i32) {
    %c0_i32 = arith.constant 0 : i32
    %c0_i32_0 = arith.constant 0 : i32
    %c0_i32_1 = arith.constant 0 : i32
    return %arg1, %c0_i32, %c0_i32_0 : i32, i32, i32
  }
  func.func @transform_10(%arg0: i32, %arg1: i32) -> (i32, i32, i32) {
    %c0_i32 = arith.constant 0 : i32
    %c0_i32_0 = arith.constant 0 : i32
    %c0_i32_1 = arith.constant 0 : i32
    return %arg1, %c0_i32, %c0_i32_0 : i32, i32, i32
  }
  func.func @transform_11(%arg0: i32, %arg1: i32) -> (i32, i32, i32) {
    %c0_i32 = arith.constant 0 : i32
    %c0_i32_0 = arith.constant 0 : i32
    %c0_i32_1 = arith.constant 0 : i32
    return %arg1, %c0_i32, %c0_i32_0 : i32, i32, i32
  }
  func.func @transform_12(%arg0: i32, %arg1: i32) -> (i32, i32, i32) {
    %c0_i32 = arith.constant 0 : i32
    %c0_i32_0 = arith.constant 0 : i32
    %c0_i32_1 = arith.constant 0 : i32
    return %arg1, %c0_i32, %c0_i32_0 : i32, i32, i32
  }
  func.func @transform_13(%arg0: i32, %arg1: i32) -> (i32, i32, i32) {
    %c0_i32 = arith.constant 0 : i32
    %c0_i32_0 = arith.constant 0 : i32
    %c0_i32_1 = arith.constant 0 : i32
    return %arg1, %c0_i32, %c0_i32_0 : i32, i32, i32
  }
  func.func @transform_14(%arg0: i32, %arg1: i32) -> (i32, i32, i32) {
    %c0_i32 = arith.constant 0 : i32
    %c0_i32_0 = arith.constant 0 : i32
    %c0_i32_1 = arith.constant 0 : i32
    return %arg1, %c0_i32, %c0_i32_0 : i32, i32, i32
  }
  func.func @transform_15(%arg0: i32, %arg1: i32) -> (i32, i32, i32) {
    %c0_i32 = arith.constant 0 : i32
    %c0_i32_0 = arith.constant 0 : i32
    %c0_i32_1 = arith.constant 0 : i32
    return %arg1, %c0_i32, %c0_i32_0 : i32, i32, i32
  }
  func.func @transform_16(%arg0: i32, %arg1: i32) -> (i32, i32) {
    %c0_i32 = arith.constant 0 : i32
    %c0_i32_0 = arith.constant 0 : i32
    %c0_i32_1 = arith.constant 0 : i32
    return %c0_i32, %c0_i32_0 : i32, i32
  }
  func.func @transform_17(%arg0: i32, %arg1: i32) -> (i32, i32) {
    %c0_i32 = arith.constant 0 : i32
    %c0_i32_0 = arith.constant 0 : i32
    %c0_i32_1 = arith.constant 0 : i32
    return %c0_i32, %c0_i32_0 : i32, i32
  }
  func.func @transform_18(%arg0: i32, %arg1: i32) -> (i32, i32) {
    %c0_i32 = arith.constant 0 : i32
    %c0_i32_0 = arith.constant 0 : i32
    %c0_i32_1 = arith.constant 0 : i32
    return %c0_i32, %c0_i32_0 : i32, i32
  }
  func.func @transform_19(%arg0: i32, %arg1: i32) -> (i32, i32) {
    %c0_i32 = arith.constant 0 : i32
    %c0_i32_0 = arith.constant 0 : i32
    %c0_i32_1 = arith.constant 0 : i32
    return %c0_i32, %c0_i32_0 : i32, i32
  }
  func.func @transform_20(%arg0: i32, %arg1: i32) -> (i32, i32) {
    %c0_i32 = arith.constant 0 : i32
    %c0_i32_0 = arith.constant 0 : i32
    %c0_i32_1 = arith.constant 0 : i32
    return %c0_i32, %c0_i32_0 : i32, i32
  }
  func.func @transform_21(%arg0: i32, %arg1: i32) -> (i32, i32) {
    %c0_i32 = arith.constant 0 : i32
    %c0_i32_0 = arith.constant 0 : i32
    return %arg0, %c0_i32 : i32, i32
  }
}

</mosaic_0001>

<llo_original>
// kernel: radar_model_forward.1
$region0: #{radar_model_forward.1}
  #allocation0 [shape = 'u32[]', space=smem, size = 0x4, offset = 0x4, fixed_abs, tag = 'smem constant byte address 0x4 - core index']
  #allocation1 [shape = 'u32[144,128]{1,0:T(1,128)}', space=vmem, size = 0x12000, scoped, tag = 'internal scratch']
  #allocation2 [shape = 'f32[48,64]{1,0:T(8,128)}', space=vmem, size = 0x6000, scoped, tag = 'scratch operand']
  %s0 = inlined_call_operand.vmem [shape: bf16[48,768], index: 0, kind: input, shape index: {}]
  %s1 = inlined_call_operand.vmem [shape: bf16[768,64], index: 1, kind: input, shape index: {}]
  %s2 = inlined_call_operand.vmem [shape: f32[48,64], index: 2, kind: input, shape index: {}]
  %s3 = inlined_call_operand.vmem [shape: f32[48,48], index: 3, kind: input, shape index: {}]
  %s4 = inlined_call_operand.vmem [shape: f32[2,1,64], index: 4, kind: input, shape index: {}]
  %s5 = inlined_call_operand.vmem [shape: f32[2,1,64], index: 5, kind: input, shape index: {}]
  %s6 = inlined_call_operand.vmem [shape: bf16[2,64,192], index: 6, kind: input, shape index: {}]
  %s7 = inlined_call_operand.vmem [shape: f32[2,1,192], index: 7, kind: input, shape index: {}]
  %s8 = inlined_call_operand.vmem [shape: bf16[2,64,64], index: 8, kind: input, shape index: {}]
  %s9 = inlined_call_operand.vmem [shape: f32[2,1,64], index: 9, kind: input, shape index: {}]
  %s10 = inlined_call_operand.vmem [shape: f32[2,1,64], index: 10, kind: input, shape index: {}]
  %s11 = inlined_call_operand.vmem [shape: f32[2,1,64], index: 11, kind: input, shape index: {}]
  %s12 = inlined_call_operand.vmem [shape: bf16[2,64,256], index: 12, kind: input, shape index: {}]
  %s13 = inlined_call_operand.vmem [shape: f32[2,1,256], index: 13, kind: input, shape index: {}]
  %s14 = inlined_call_operand.vmem [shape: bf16[2,256,64], index: 14, kind: input, shape index: {}]
  %s15 = inlined_call_operand.vmem [shape: f32[2,1,64], index: 15, kind: input, shape index: {}]
  %s16 = inlined_call_operand.vmem [shape: f32[2,48], index: 16, kind: input, shape index: {}]
  %s17 = inlined_call_operand.vmem [shape: f32[1,64], index: 17, kind: input, shape index: {}]
  %s18 = inlined_call_operand.vmem [shape: f32[1,64], index: 18, kind: input, shape index: {}]
  %s19 = inlined_call_operand.vmem [shape: bf16[64,128], index: 19, kind: input, shape index: {}]
  %s20 = inlined_call_operand.vmem [shape: f32[1,128], index: 20, kind: input, shape index: {}]
  %s21 = inlined_call_operand.hbm [shape: f32[2,128], index: 21, kind: output, shape index: {}]
  %s22 = sld [smem:[#allocation0]]
  $region125: #{radar_model_forward.1} parent=0
    _
  %s24 = ssub.s32 1, %s22
  %s25 = scalar_select 0, %s24, %s22
  $region1: #{radar_model_forward.1} parent=0
    #allocation3 [shape = 'u8[1024]{0}', space=vmem, size = 0x400, scoped, tag = 'output window, operand 0, single buffered']
    #allocation4 [shape = 's32[2]{0}', space=sflag, size = 0x8, scoped, tag = 'scoped memory for radar_model_forward.1']
    %26 = vsyncpa [#allocation4], 0
    loop: start=0, step=1, limit=4
    $region2: #{radar_model_forward.1} parent=1 // loop_pre_header
      _
    $region3: #{radar_model_forward.1} parent=1 // loop_header
      %s28 = sphi 0, %s32
      %p29 = scmp.ge.s32.totalorder %s28, 4
      %s35 = sphi 0, %s47
      %s36 = sphi 0, %s43
      %s37 = sphi 0, %s35
      %s38 = sphi 0, %s36
      %s39 = sphi 0, %s37
      %s40 = sphi 0, %s38
      %s50 = sphi 0, %s52
      %s53 = sphi 0, %s50
      %s54 = sphi 0, %s53
      %s70 = sphi 0, %s54
      %s74 = sphi 0, %s74
      %s76 = sphi 0, %s74
      %s77 = sphi 0, %s76
      %s91 = sphi 0, %s77
      %s95 = sphi 0, %s95
      %s97 = sphi 0, %s95
      %s98 = sphi 0, %s97
      %s112 = sphi 0, %s98
      %s116 = sphi 0, %s116
      %s118 = sphi 0, %s116
      %s119 = sphi 0, %s118
      %s133 = sphi 0, %s119
      %s139 = sphi 0, %s141
      %s142 = sphi 0, %s139
      %s143 = sphi 0, %s142
      %s159 = sphi 0, %s143
      %s165 = sphi 0, %s167
      %s168 = sphi 0, %s165
      %s169 = sphi 0, %s168
      %s185 = sphi 0, %s169
      %s191 = sphi 0, %s193
      %s194 = sphi 0, %s191
      %s195 = sphi 0, %s194
      %s211 = sphi 0, %s195
      %s217 = sphi 0, %s219
      %s220 = sphi 0, %s217
      %s221 = sphi 0, %s220
      %s237 = sphi 0, %s221
      %s243 = sphi 0, %s245
      %s246 = sphi 0, %s243
      %s247 = sphi 0, %s246
      %s263 = sphi 0, %s247
      %s269 = sphi 0, %s271
      %s272 = sphi 0, %s269
      %s273 = sphi 0, %s272
      %s289 = sphi 0, %s273
      %s295 = sphi 0, %s297
      %s298 = sphi 0, %s295
      %s299 = sphi 0, %s298
      %s315 = sphi 0, %s299
      %s321 = sphi 0, %s323
      %s324 = sphi 0, %s321
      %s325 = sphi 0, %s324
      %s341 = sphi 0, %s325
      %s347 = sphi 0, %s349
      %s350 = sphi 0, %s347
      %s351 = sphi 0, %s350
      %s367 = sphi 0, %s351
      %s373 = sphi 0, %s375
      %s376 = sphi 0, %s373
      %s377 = sphi 0, %s376
      %s393 = sphi 0, %s377
      %s399 = sphi 0, %s401
      %s402 = sphi 0, %s399
      %s403 = sphi 0, %s402
      %s419 = sphi 0, %s403
      %s425 = sphi 0, %s427
      %s428 = sphi 0, %s425
      %s429 = sphi 0, %s428
      %s445 = sphi 0, %s429
      %s449 = sphi 0, %s449
      %s451 = sphi 0, %s449
      %s452 = sphi 0, %s451
      %s466 = sphi 0, %s452
      %s470 = sphi 0, %s470
      %s472 = sphi 0, %s470
      %s473 = sphi 0, %s472
      %s487 = sphi 0, %s473
      %s491 = sphi 0, %s491
      %s493 = sphi 0, %s491
      %s494 = sphi 0, %s493
      %s508 = sphi 0, %s494
      %s512 = sphi 0, %s512
      %s514 = sphi 0, %s512
      %s515 = sphi 0, %s514
      %s529 = sphi 0, %s515
      %s533 = sphi 0, %s533
      %s535 = sphi 0, %s533
      %s536 = sphi 0, %s535
      %s550 = sphi 0, %s536
      %s556 = sphi 0, %s558
      %s559 = sphi 0, %s556
      %s560 = sphi 0, %s559
      %s576 = sphi 0, %s560
    $region4: #{radar_model_forward.1} parent=1 // loop_header_branch
      %31 = sbr.rel (%p29) target = $region8
    $region5: #{radar_model_forward.1} parent=1 // loop_body
      %s33 = ssub.s32 %s28, 1
      %s34 = ssub.s32 %s28, 2
      %s41 = sadd.s32 1, %s36
      %p42 = scmp.ge.s32.totalorder %s41, 2
      %s43 = scalar_select %p42, 0, %s41
      %s44 = sadd.s32 1, %s35
      %s45 = scalar_select %p42, %s44, %s35
      %p46 = scmp.ge.s32.totalorder %s45, 1
      %s47 = scalar_select %p46, 0, %s45
      %s48 = ssub.s32 %s35, %s47
      %p49 = scmp.eq.s32.totalorder %s48, 0
      %s51 = sadd.s32 %s50, 1
      %s52 = scalar_select %p49, %s50, %s51
      %p55 = pneg %p49
      %p56 = scmp.eq.s32.totalorder %s28, 1
      %p57 = por %p55, %p56
      %p58 = scmp.ne.s32.totalorder %s50, %s53
      %p59 = scmp.eq.s32.totalorder %s28, 0
      %p60 = por %p58, %p59
      %p61 = scmp.ne.s32.totalorder %s50, %s53
      %p62 = scmp.eq.s32.totalorder %s33, 1
      %p63 = por %p61, %p62
      %p64 = scmp.ne.s32.totalorder %s53, %s54
      %p65 = scmp.eq.s32.totalorder %s33, 0
      %p66 = por %p64, %p65
      %p67 = scmp.ne.s32.totalorder %s53, %s54
      %p68 = scmp.eq.s32.totalorder %s34, 1
      %p69 = por %p67, %p68
      %p71 = scmp.ne.s32.totalorder %s54, %s70
      %p72 = scmp.eq.s32.totalorder %s34, 0
      %p73 = por %p71, %p72
      %s75 = sadd.s32 %s74, 1
      %p78 = scmp.eq.s32.totalorder %s28, 1
      %p79 = scmp.ne.s32.totalorder %s74, %s76
      %p80 = scmp.eq.s32.totalorder %s28, 0
      %p81 = por %p79, %p80
      %p82 = scmp.ne.s32.totalorder %s74, %s76
      %p83 = scmp.eq.s32.totalorder %s33, 1
      %p84 = por %p82, %p83
      %p85 = scmp.ne.s32.totalorder %s76, %s77
      %p86 = scmp.eq.s32.totalorder %s33, 0
      %p87 = por %p85, %p86
      %p88 = scmp.ne.s32.totalorder %s76, %s77
      %p89 = scmp.eq.s32.totalorder %s34, 1
      %p90 = por %p88, %p89
      %p92 = scmp.ne.s32.totalorder %s77, %s91
      %p93 = scmp.eq.s32.totalorder %s34, 0
      %p94 = por %p92, %p93
      %s96 = sadd.s32 %s95, 1
      %p99 = scmp.eq.s32.totalorder %s28, 1
      %p100 = scmp.ne.s32.totalorder %s95, %s97
      %p101 = scmp.eq.s32.totalorder %s28, 0
      %p102 = por %p100, %p101
      %p103 = scmp.ne.s32.totalorder %s95, %s97
      %p104 = scmp.eq.s32.totalorder %s33, 1
      %p105 = por %p103, %p104
      %p106 = scmp.ne.s32.totalorder %s97, %s98
      %p107 = scmp.eq.s32.totalorder %s33, 0
      %p108 = por %p106, %p107
      %p109 = scmp.ne.s32.totalorder %s97, %s98
      %p110 = scmp.eq.s32.totalorder %s34, 1
      %p111 = por %p109, %p110
      %p113 = scmp.ne.s32.totalorder %s98, %s112
      %p114 = scmp.eq.s32.totalorder %s34, 0
      %p115 = por %p113, %p114
      %s117 = sadd.s32 %s116, 1
      %p120 = scmp.eq.s32.totalorder %s28, 1
      %p121 = scmp.ne.s32.totalorder %s116, %s118
      %p122 = scmp.eq.s32.totalorder %s28, 0
      %p123 = por %p121, %p122
      %p124 = scmp.ne.s32.totalorder %s116, %s118
      %p125 = scmp.eq.s32.totalorder %s33, 1
      %p126 = por %p124, %p125
      %p127 = scmp.ne.s32.totalorder %s118, %s119
      %p128 = scmp.eq.s32.totalorder %s33, 0
      %p129 = por %p127, %p128
      %p130 = scmp.ne.s32.totalorder %s118, %s119
      %p131 = scmp.eq.s32.totalorder %s34, 1
      %p132 = por %p130, %p131
      %p134 = scmp.ne.s32.totalorder %s119, %s133
      %p135 = scmp.eq.s32.totalorder %s34, 0
      %p136 = por %p134, %p135
      %s137 = ssub.s32 %s36, %s43
      %p138 = scmp.eq.s32.totalorder %s137, 0
      %s140 = sadd.s32 %s139, 1
      %s141 = scalar_select %p138, %s139, %s140
      %p144 = pneg %p138
      %p145 = scmp.eq.s32.totalorder %s28, 1
      %p146 = por %p144, %p145
      %p147 = scmp.ne.s32.totalorder %s139, %s142
      %p148 = scmp.eq.s32.totalorder %s28, 0
      %p149 = por %p147, %p148
      %p150 = scmp.ne.s32.totalorder %s139, %s142
      %p151 = scmp.eq.s32.totalorder %s33, 1
      %p152 = por %p150, %p151
      %p153 = scmp.ne.s32.totalorder %s142, %s143
      %p154 = scmp.eq.s32.totalorder %s33, 0
      %p155 = por %p153, %p154
      %p156 = scmp.ne.s32.totalorder %s142, %s143
      %p157 = scmp.eq.s32.totalorder %s34, 1
      %p158 = por %p156, %p157
      %p160 = scmp.ne.s32.totalorder %s143, %s159
      %p161 = scmp.eq.s32.totalorder %s34, 0
      %p162 = por %p160, %p161
      %s163 = ssub.s32 %s36, %s43
      %p164 = scmp.eq.s32.totalorder %s163, 0
      %s166 = sadd.s32 %s165, 1
      %s167 = scalar_select %p164, %s165, %s166
      %p170 = pneg %p164
      %p171 = scmp.eq.s32.totalorder %s28, 1
      %p172 = por %p170, %p171
      %p173 = scmp.ne.s32.totalorder %s165, %s168
      %p174 = scmp.eq.s32.totalorder %s28, 0
      %p175 = por %p173, %p174
      %p176 = scmp.ne.s32.totalorder %s165, %s168
      %p177 = scmp.eq.s32.totalorder %s33, 1
      %p178 = por %p176, %p177
      %p179 = scmp.ne.s32.totalorder %s168, %s169
      %p180 = scmp.eq.s32.totalorder %s33, 0
      %p181 = por %p179, %p180
      %p182 = scmp.ne.s32.totalorder %s168, %s169
      %p183 = scmp.eq.s32.totalorder %s34, 1
      %p184 = por %p182, %p183
      %p186 = scmp.ne.s32.totalorder %s169, %s185
      %p187 = scmp.eq.s32.totalorder %s34, 0
      %p188 = por %p186, %p187
      %s189 = ssub.s32 %s36, %s43
      %p190 = scmp.eq.s32.totalorder %s189, 0
      %s192 = sadd.s32 %s191, 1
      %s193 = scalar_select %p190, %s191, %s192
      %p196 = pneg %p190
      %p197 = scmp.eq.s32.totalorder %s28, 1
      %p198 = por %p196, %p197
      %p199 = scmp.ne.s32.totalorder %s191, %s194
      %p200 = scmp.eq.s32.totalorder %s28, 0
      %p201 = por %p199, %p200
      %p202 = scmp.ne.s32.totalorder %s191, %s194
      %p203 = scmp.eq.s32.totalorder %s33, 1
      %p204 = por %p202, %p203
      %p205 = scmp.ne.s32.totalorder %s194, %s195
      %p206 = scmp.eq.s32.totalorder %s33, 0
      %p207 = por %p205, %p206
      %p208 = scmp.ne.s32.totalorder %s194, %s195
      %p209 = scmp.eq.s32.totalorder %s34, 1
      %p210 = por %p208, %p209
      %p212 = scmp.ne.s32.totalorder %s195, %s211
      %p213 = scmp.eq.s32.totalorder %s34, 0
      %p214 = por %p212, %p213
      %s215 = ssub.s32 %s36, %s43
      %p216 = scmp.eq.s32.totalorder %s215, 0
      %s218 = sadd.s32 %s217, 1
      %s219 = scalar_select %p216, %s217, %s218
      %p222 = pneg %p216
      %p223 = scmp.eq.s32.totalorder %s28, 1
      %p224 = por %p222, %p223
      %p225 = scmp.ne.s32.totalorder %s217, %s220
      %p226 = scmp.eq.s32.totalorder %s28, 0
      %p227 = por %p225, %p226
      %p228 = scmp.ne.s32.totalorder %s217, %s220
      %p229 = scmp.eq.s32.totalorder %s33, 1
      %p230 = por %p228, %p229
      %p231 = scmp.ne.s32.totalorder %s220, %s221
      %p232 = scmp.eq.s32.totalorder %s33, 0
      %p233 = por %p231, %p232
      %p234 = scmp.ne.s32.totalorder %s220, %s221
      %p235 = scmp.eq.s32.totalorder %s34, 1
      %p236 = por %p234, %p235
      %p238 = scmp.ne.s32.totalorder %s221, %s237
      %p239 = scmp.eq.s32.totalorder %s34, 0
      %p240 = por %p238, %p239
      %s241 = ssub.s32 %s36, %s43
      %p242 = scmp.eq.s32.totalorder %s241, 0
      %s244 = sadd.s32 %s243, 1
      %s245 = scalar_select %p242, %s243, %s244
      %p248 = pneg %p242
      %p249 = scmp.eq.s32.totalorder %s28, 1
      %p250 = por %p248, %p249
      %p251 = scmp.ne.s32.totalorder %s243, %s246
      %p252 = scmp.eq.s32.totalorder %s28, 0
      %p253 = por %p251, %p252
      %p254 = scmp.ne.s32.totalorder %s243, %s246
      %p255 = scmp.eq.s32.totalorder %s33, 1
      %p256 = por %p254, %p255
      %p257 = scmp.ne.s32.totalorder %s246, %s247
      %p258 = scmp.eq.s32.totalorder %s33, 0
      %p259 = por %p257, %p258
      %p260 = scmp.ne.s32.totalorder %s246, %s247
      %p261 = scmp.eq.s32.totalorder %s34, 1
      %p262 = por %p260, %p261
      %p264 = scmp.ne.s32.totalorder %s247, %s263
      %p265 = scmp.eq.s32.totalorder %s34, 0
      %p266 = por %p264, %p265
      %s267 = ssub.s32 %s36, %s43
      %p268 = scmp.eq.s32.totalorder %s267, 0
      %s270 = sadd.s32 %s269, 1
      %s271 = scalar_select %p268, %s269, %s270
      %p274 = pneg %p268
      %p275 = scmp.eq.s32.totalorder %s28, 1
      %p276 = por %p274, %p275
      %p277 = scmp.ne.s32.totalorder %s269, %s272
      %p278 = scmp.eq.s32.totalorder %s28, 0
      %p279 = por %p277, %p278
      %p280 = scmp.ne.s32.totalorder %s269, %s272
      %p281 = scmp.eq.s32.totalorder %s33, 1
      %p282 = por %p280, %p281
      %p283 = scmp.ne.s32.totalorder %s272, %s273
      %p284 = scmp.eq.s32.totalorder %s33, 0
      %p285 = por %p283, %p284
      %p286 = scmp.ne.s32.totalorder %s272, %s273
      %p287 = scmp.eq.s32.totalorder %s34, 1
      %p288 = por %p286, %p287
      %p290 = scmp.ne.s32.totalorder %s273, %s289
      %p291 = scmp.eq.s32.totalorder %s34, 0
      %p292 = por %p290, %p291
      %s293 = ssub.s32 %s36, %s43
      %p294 = scmp.eq.s32.totalorder %s293, 0
      %s296 = sadd.s32 %s295, 1
      %s297 = scalar_select %p294, %s295, %s296
      %p300 = pneg %p294
      %p301 = scmp.eq.s32.totalorder %s28, 1
      %p302 = por %p300, %p301
      %p303 = scmp.ne.s32.totalorder %s295, %s298
      %p304 = scmp.eq.s32.totalorder %s28, 0
      %p305 = por %p303, %p304
      %p306 = scmp.ne.s32.totalorder %s295, %s298
      %p307 = scmp.eq.s32.totalorder %s33, 1
      %p308 = por %p306, %p307
      %p309 = scmp.ne.s32.totalorder %s298, %s299
      %p310 = scmp.eq.s32.totalorder %s33, 0
      %p311 = por %p309, %p310
      %p312 = scmp.ne.s32.totalorder %s298, %s299
      %p313 = scmp.eq.s32.totalorder %s34, 1
      %p314 = por %p312, %p313
      %p316 = scmp.ne.s32.totalorder %s299, %s315
      %p317 = scmp.eq.s32.totalorder %s34, 0
      %p318 = por %p316, %p317
      %s319 = ssub.s32 %s36, %s43
      %p320 = scmp.eq.s32.totalorder %s319, 0
      %s322 = sadd.s32 %s321, 1
      %s323 = scalar_select %p320, %s321, %s322
      %p326 = pneg %p320
      %p327 = scmp.eq.s32.totalorder %s28, 1
      %p328 = por %p326, %p327
      %p329 = scmp.ne.s32.totalorder %s321, %s324
      %p330 = scmp.eq.s32.totalorder %s28, 0
      %p331 = por %p329, %p330
      %p332 = scmp.ne.s32.totalorder %s321, %s324
      %p333 = scmp.eq.s32.totalorder %s33, 1
      %p334 = por %p332, %p333
      %p335 = scmp.ne.s32.totalorder %s324, %s325
      %p336 = scmp.eq.s32.totalorder %s33, 0
      %p337 = por %p335, %p336
      %p338 = scmp.ne.s32.totalorder %s324, %s325
      %p339 = scmp.eq.s32.totalorder %s34, 1
      %p340 = por %p338, %p339
      %p342 = scmp.ne.s32.totalorder %s325, %s341
      %p343 = scmp.eq.s32.totalorder %s34, 0
      %p344 = por %p342, %p343
      %s345 = ssub.s32 %s36, %s43
      %p346 = scmp.eq.s32.totalorder %s345, 0
      %s348 = sadd.s32 %s347, 1
      %s349 = scalar_select %p346, %s347, %s348
      %p352 = pneg %p346
      %p353 = scmp.eq.s32.totalorder %s28, 1
      %p354 = por %p352, %p353
      %p355 = scmp.ne.s32.totalorder %s347, %s350
      %p356 = scmp.eq.s32.totalorder %s28, 0
      %p357 = por %p355, %p356
      %p358 = scmp.ne.s32.totalorder %s347, %s350
      %p359 = scmp.eq.s32.totalorder %s33, 1
      %p360 = por %p358, %p359
      %p361 = scmp.ne.s32.totalorder %s350, %s351
      %p362 = scmp.eq.s32.totalorder %s33, 0
      %p363 = por %p361, %p362
      %p364 = scmp.ne.s32.totalorder %s350, %s351
      %p365 = scmp.eq.s32.totalorder %s34, 1
      %p366 = por %p364, %p365
      %p368 = scmp.ne.s32.totalorder %s351, %s367
      %p369 = scmp.eq.s32.totalorder %s34, 0
      %p370 = por %p368, %p369
      %s371 = ssub.s32 %s36, %s43
      %p372 = scmp.eq.s32.totalorder %s371, 0
      %s374 = sadd.s32 %s373, 1
      %s375 = scalar_select %p372, %s373, %s374
      %p378 = pneg %p372
      %p379 = scmp.eq.s32.totalorder %s28, 1
      %p380 = por %p378, %p379
      %p381 = scmp.ne.s32.totalorder %s373, %s376
      %p382 = scmp.eq.s32.totalorder %s28, 0
      %p383 = por %p381, %p382
      %p384 = scmp.ne.s32.totalorder %s373, %s376
      %p385 = scmp.eq.s32.totalorder %s33, 1
      %p386 = por %p384, %p385
      %p387 = scmp.ne.s32.totalorder %s376, %s377
      %p388 = scmp.eq.s32.totalorder %s33, 0
      %p389 = por %p387, %p388
      %p390 = scmp.ne.s32.totalorder %s376, %s377
      %p391 = scmp.eq.s32.totalorder %s34, 1
      %p392 = por %p390, %p391
      %p394 = scmp.ne.s32.totalorder %s377, %s393
      %p395 = scmp.eq.s32.totalorder %s34, 0
      %p396 = por %p394, %p395
      %s397 = ssub.s32 %s36, %s43
      %p398 = scmp.eq.s32.totalorder %s397, 0
      %s400 = sadd.s32 %s399, 1
      %s401 = scalar_select %p398, %s399, %s400
      %p404 = pneg %p398
      %p405 = scmp.eq.s32.totalorder %s28, 1
      %p406 = por %p404, %p405
      %p407 = scmp.ne.s32.totalorder %s399, %s402
      %p408 = scmp.eq.s32.totalorder %s28, 0
      %p409 = por %p407, %p408
      %p410 = scmp.ne.s32.totalorder %s399, %s402
      %p411 = scmp.eq.s32.totalorder %s33, 1
      %p412 = por %p410, %p411
      %p413 = scmp.ne.s32.totalorder %s402, %s403
      %p414 = scmp.eq.s32.totalorder %s33, 0
      %p415 = por %p413, %p414
      %p416 = scmp.ne.s32.totalorder %s402, %s403
      %p417 = scmp.eq.s32.totalorder %s34, 1
      %p418 = por %p416, %p417
      %p420 = scmp.ne.s32.totalorder %s403, %s419
      %p421 = scmp.eq.s32.totalorder %s34, 0
      %p422 = por %p420, %p421
      %s423 = ssub.s32 %s36, %s43
      %p424 = scmp.eq.s32.totalorder %s423, 0
      %s426 = sadd.s32 %s425, 1
      %s427 = scalar_select %p424, %s425, %s426
      %p430 = pneg %p424
      %p431 = scmp.eq.s32.totalorder %s28, 1
      %p432 = por %p430, %p431
      %p433 = scmp.ne.s32.totalorder %s425, %s428
      %p434 = scmp.eq.s32.totalorder %s28, 0
      %p435 = por %p433, %p434
      %p436 = scmp.ne.s32.totalorder %s425, %s428
      %p437 = scmp.eq.s32.totalorder %s33, 1
      %p438 = por %p436, %p437
      %p439 = scmp.ne.s32.totalorder %s428, %s429
      %p440 = scmp.eq.s32.totalorder %s33, 0
      %p441 = por %p439, %p440
      %p442 = scmp.ne.s32.totalorder %s428, %s429
      %p443 = scmp.eq.s32.totalorder %s34, 1
      %p444 = por %p442, %p443
      %p446 = scmp.ne.s32.totalorder %s429, %s445
      %p447 = scmp.eq.s32.totalorder %s34, 0
      %p448 = por %p446, %p447
      %s450 = sadd.s32 %s449, 1
      %p453 = scmp.eq.s32.totalorder %s28, 1
      %p454 = scmp.ne.s32.totalorder %s449, %s451
      %p455 = scmp.eq.s32.totalorder %s28, 0
      %p456 = por %p454, %p455
      %p457 = scmp.ne.s32.totalorder %s449, %s451
      %p458 = scmp.eq.s32.totalorder %s33, 1
      %p459 = por %p457, %p458
      %p460 = scmp.ne.s32.totalorder %s451, %s452
      %p461 = scmp.eq.s32.totalorder %s33, 0
      %p462 = por %p460, %p461
      %p463 = scmp.ne.s32.totalorder %s451, %s452
      %p464 = scmp.eq.s32.totalorder %s34, 1
      %p465 = por %p463, %p464
      %p467 = scmp.ne.s32.totalorder %s452, %s466
      %p468 = scmp.eq.s32.totalorder %s34, 0
      %p469 = por %p467, %p468
      %s471 = sadd.s32 %s470, 1
      %p474 = scmp.eq.s32.totalorder %s28, 1
      %p475 = scmp.ne.s32.totalorder %s470, %s472
      %p476 = scmp.eq.s32.totalorder %s28, 0
      %p477 = por %p475, %p476
      %p478 = scmp.ne.s32.totalorder %s470, %s472
      %p479 = scmp.eq.s32.totalorder %s33, 1
      %p480 = por %p478, %p479
      %p481 = scmp.ne.s32.totalorder %s472, %s473
      %p482 = scmp.eq.s32.totalorder %s33, 0
      %p483 = por %p481, %p482
      %p484 = scmp.ne.s32.totalorder %s472, %s473
      %p485 = scmp.eq.s32.totalorder %s34, 1
      %p486 = por %p484, %p485
      %p488 = scmp.ne.s32.totalorder %s473, %s487
      %p489 = scmp.eq.s32.totalorder %s34, 0
      %p490 = por %p488, %p489
      %s492 = sadd.s32 %s491, 1
      %p495 = scmp.eq.s32.totalorder %s28, 1
      %p496 = scmp.ne.s32.totalorder %s491, %s493
      %p497 = scmp.eq.s32.totalorder %s28, 0
      %p498 = por %p496, %p497
      %p499 = scmp.ne.s32.totalorder %s491, %s493
      %p500 = scmp.eq.s32.totalorder %s33, 1
      %p501 = por %p499, %p500
      %p502 = scmp.ne.s32.totalorder %s493, %s494
      %p503 = scmp.eq.s32.totalorder %s33, 0
      %p504 = por %p502, %p503
      %p505 = scmp.ne.s32.totalorder %s493, %s494
      %p506 = scmp.eq.s32.totalorder %s34, 1
      %p507 = por %p505, %p506
      %p509 = scmp.ne.s32.totalorder %s494, %s508
      %p510 = scmp.eq.s32.totalorder %s34, 0
      %p511 = por %p509, %p510
      %s513 = sadd.s32 %s512, 1
      %p516 = scmp.eq.s32.totalorder %s28, 1
      %p517 = scmp.ne.s32.totalorder %s512, %s514
      %p518 = scmp.eq.s32.totalorder %s28, 0
      %p519 = por %p517, %p518
      %p520 = scmp.ne.s32.totalorder %s512, %s514
      %p521 = scmp.eq.s32.totalorder %s33, 1
      %p522 = por %p520, %p521
      %p523 = scmp.ne.s32.totalorder %s514, %s515
      %p524 = scmp.eq.s32.totalorder %s33, 0
      %p525 = por %p523, %p524
      %p526 = scmp.ne.s32.totalorder %s514, %s515
      %p527 = scmp.eq.s32.totalorder %s34, 1
      %p528 = por %p526, %p527
      %p530 = scmp.ne.s32.totalorder %s515, %s529
      %p531 = scmp.eq.s32.totalorder %s34, 0
      %p532 = por %p530, %p531
      %s534 = sadd.s32 %s533, 1
      %p537 = scmp.eq.s32.totalorder %s28, 1
      %p538 = scmp.ne.s32.totalorder %s533, %s535
      %p539 = scmp.eq.s32.totalorder %s28, 0
      %p540 = por %p538, %p539
      %p541 = scmp.ne.s32.totalorder %s533, %s535
      %p542 = scmp.eq.s32.totalorder %s33, 1
      %p543 = por %p541, %p542
      %p544 = scmp.ne.s32.totalorder %s535, %s536
      %p545 = scmp.eq.s32.totalorder %s33, 0
      %p546 = por %p544, %p545
      %p547 = scmp.ne.s32.totalorder %s535, %s536
      %p548 = scmp.eq.s32.totalorder %s34, 1
      %p549 = por %p547, %p548
      %p551 = scmp.ne.s32.totalorder %s536, %s550
      %p552 = scmp.eq.s32.totalorder %s34, 0
      %p553 = por %p551, %p552
      %s554 = ssub.s32 %s35, %s47
      %p555 = scmp.eq.s32.totalorder %s554, 0
      %s557 = sadd.s32 %s556, 1
      %s558 = scalar_select %p555, %s556, %s557
      %p561 = pneg %p555
      %p562 = scmp.eq.s32.totalorder %s28, 1
      %p563 = por %p561, %p562
      %p564 = scmp.ne.s32.totalorder %s556, %s559
      %p565 = scmp.eq.s32.totalorder %s28, 0
      %p566 = por %p564, %p565
      %p567 = scmp.ne.s32.totalorder %s556, %s559
      %p568 = scmp.eq.s32.totalorder %s33, 1
      %p569 = por %p567, %p568
      %p570 = scmp.ne.s32.totalorder %s559, %s560
      %p571 = scmp.eq.s32.totalorder %s33, 0
      %p572 = por %p570, %p571
      %p573 = scmp.ne.s32.totalorder %s559, %s560
      %p574 = scmp.eq.s32.totalorder %s34, 1
      %p575 = por %p573, %p574
      %p577 = scmp.ne.s32.totalorder %s560, %s576
      %p578 = scmp.eq.s32.totalorder %s34, 0
      %p579 = por %p577, %p578
      %p580 = scmp.le.s32.totalorder 1, %s28
      %p581 = scmp.lt.s32.totalorder %s28, 3
      %p582 = pnand %p580, %p581
      %p583 = pneg %p582
      // Predicated region
      $region9: #{radar_model_forward.1} parent=5 // pred_check
        _
      $region10: #{radar_model_forward.1} parent=5 // pred_check_branch
        %585 = sbr.rel (%p582) target = $region12
      $region11: #{radar_model_forward.1} parent=5 // pred_region
        %s586 = ssub.s32 %s28, 1
        // Predicated region
        $region13: #{radar_model_forward.1} parent=11 // pred_check
          %p587 = pneg %p66
        $region14: #{radar_model_forward.1} parent=11 // pred_check_branch
          %589 = sbr.rel (%p587) target = $region16
        $region15: #{radar_model_forward.1} parent=11 // pred_region
          %s590 = smul.u32 6, %s37
          %p591 = scmp.lt.s32.totalorder %s590, 5
          %s592 = scalar_select %p591, %s590, 5
          %s593 = smul.addr %s592, 6
          %s594 = smul.addr %s593, 4
          %s595 = scalar_lea.vmem %s0, %s594
          %s596 = smul.u32 6, %s37
        $region16: #{radar_model_forward.1} parent=11 // pred_fallthru
          _
        // Predicated region
        $region17: #{radar_model_forward.1} parent=11 // pred_check
          %p597 = pneg %p87
        $region18: #{radar_model_forward.1} parent=11 // pred_check_branch
          %599 = sbr.rel (%p597) target = $region20
        $region19: #{radar_model_forward.1} parent=11 // pred_region
          _
        $region20: #{radar_model_forward.1} parent=11 // pred_fallthru
          _
        // Predicated region
        $region21: #{radar_model_forward.1} parent=11 // pred_check
          %p600 = pneg %p108
        $region22: #{radar_model_forward.1} parent=11 // pred_check_branch
          %602 = sbr.rel (%p600) target = $region24
        $region23: #{radar_model_forward.1} parent=11 // pred_region
          _
        $region24: #{radar_model_forward.1} parent=11 // pred_fallthru
          _
        // Predicated region
        $region25: #{radar_model_forward.1} parent=11 // pred_check
          %p603 = pneg %p129
        $region26: #{radar_model_forward.1} parent=11 // pred_check_branch
          %605 = sbr.rel (%p603) target = $region28
        $region27: #{radar_model_forward.1} parent=11 // pred_region
          _
        $region28: #{radar_model_forward.1} parent=11 // pred_fallthru
          _
        // Predicated region
        $region29: #{radar_model_forward.1} parent=11 // pred_check
          %p606 = pneg %p462
        $region30: #{radar_model_forward.1} parent=11 // pred_check_branch
          %608 = sbr.rel (%p606) target = $region32
        $region31: #{radar_model_forward.1} parent=11 // pred_region
          _
        $region32: #{radar_model_forward.1} parent=11 // pred_fallthru
          _
        // Predicated region
        $region33: #{radar_model_forward.1} parent=11 // pred_check
          %p609 = pneg %p483
        $region34: #{radar_model_forward.1} parent=11 // pred_check_branch
          %611 = sbr.rel (%p609) target = $region36
        $region35: #{radar_model_forward.1} parent=11 // pred_region
          _
        $region36: #{radar_model_forward.1} parent=11 // pred_fallthru
          _
        // Predicated region
        $region37: #{radar_model_forward.1} parent=11 // pred_check
          %p612 = pneg %p504
        $region38: #{radar_model_forward.1} parent=11 // pred_check_branch
          %614 = sbr.rel (%p612) target = $region40
        $region39: #{radar_model_forward.1} parent=11 // pred_region
          _
        $region40: #{radar_model_forward.1} parent=11 // pred_fallthru
          _
        // Predicated region
        $region41: #{radar_model_forward.1} parent=11 // pred_check
          %p615 = pneg %p525
        $region42: #{radar_model_forward.1} parent=11 // pred_check_branch
          %617 = sbr.rel (%p615) target = $region44
        $region43: #{radar_model_forward.1} parent=11 // pred_region
          _
        $region44: #{radar_model_forward.1} parent=11 // pred_fallthru
          _
        // Predicated region
        $region45: #{radar_model_forward.1} parent=11 // pred_check
          %p618 = pneg %p546
        $region46: #{radar_model_forward.1} parent=11 // pred_check_branch
          %620 = sbr.rel (%p618) target = $region48
        $region47: #{radar_model_forward.1} parent=11 // pred_region
          _
        $region48: #{radar_model_forward.1} parent=11 // pred_fallthru
          _
      $region12: #{radar_model_forward.1} parent=5 // pred_fallthru
        _
      %p621 = scmp.lt.s32.totalorder %s28, 2
      // Predicated region
      $region49: #{radar_model_forward.1} parent=5 // pred_check
        %p622 = pneg %p621
      $region50: #{radar_model_forward.1} parent=5 // pred_check_branch
        %624 = sbr.rel (%p622) target = $region52
      $region51: #{radar_model_forward.1} parent=5 // pred_region
        // Predicated region
        $region53: #{radar_model_forward.1} parent=51 // pred_check
          %p625 = pneg %p149
        $region54: #{radar_model_forward.1} parent=51 // pred_check_branch
          %627 = sbr.rel (%p625) target = $region56
        $region55: #{radar_model_forward.1} parent=51 // pred_region
          %p628 = scmp.lt.s32.totalorder %s36, 1
          %s629 = scalar_select %p628, %s36, 1
          %s630 = scalar_lea.vmem %s4, %s629
        $region56: #{radar_model_forward.1} parent=51 // pred_fallthru
          _
        // Predicated region
        $region57: #{radar_model_forward.1} parent=51 // pred_check
          %p631 = pneg %p175
        $region58: #{radar_model_forward.1} parent=51 // pred_check_branch
          %633 = sbr.rel (%p631) target = $region60
        $region59: #{radar_model_forward.1} parent=51 // pred_region
          %p634 = scmp.lt.s32.totalorder %s36, 1
          %s635 = scalar_select %p634, %s36, 1
          %s636 = scalar_lea.vmem %s5, %s635
        $region60: #{radar_model_forward.1} parent=51 // pred_fallthru
          _
        // Predicated region
        $region61: #{radar_model_forward.1} parent=51 // pred_check
          %p637 = pneg %p201
        $region62: #{radar_model_forward.1} parent=51 // pred_check_branch
          %639 = sbr.rel (%p637) target = $region64
        $region63: #{radar_model_forward.1} parent=51 // pred_region
          %p640 = scmp.lt.s32.totalorder %s36, 1
          %s641 = scalar_select %p640, %s36, 1
          %s642 = smul.addr %s641, 16
          %s643 = smul.addr %s642, 4
          %s644 = scalar_lea.vmem %s6, %s643
        $region64: #{radar_model_forward.1} parent=51 // pred_fallthru
          _
        // Predicated region
        $region65: #{radar_model_forward.1} parent=51 // pred_check
          %p645 = pneg %p227
        $region66: #{radar_model_forward.1} parent=51 // pred_check_branch
          %647 = sbr.rel (%p645) target = $region68
        $region67: #{radar_model_forward.1} parent=51 // pred_region
          %p648 = scmp.lt.s32.totalorder %s36, 1
          %s649 = scalar_select %p648, %s36, 1
          %s650 = smul.addr %s649, 2
          %s651 = scalar_lea.vmem %s7, %s650
        $region68: #{radar_model_forward.1} parent=51 // pred_fallthru
          _
        // Predicated region
        $region69: #{radar_model_forward.1} parent=51 // pred_check
          %p652 = pneg %p253
        $region70: #{radar_model_forward.1} parent=51 // pred_check_branch
          %654 = sbr.rel (%p652) target = $region72
        $region71: #{radar_model_forward.1} parent=51 // pred_region
          %p655 = scmp.lt.s32.totalorder %s36, 1
          %s656 = scalar_select %p655, %s36, 1
          %s657 = smul.addr %s656, 8
          %s658 = smul.addr %s657, 4
          %s659 = scalar_lea.vmem %s8, %s658
        $region72: #{radar_model_forward.1} parent=51 // pred_fallthru
          _
        // Predicated region
        $region73: #{radar_model_forward.1} parent=51 // pred_check
          %p660 = pneg %p279
        $region74: #{radar_model_forward.1} parent=51 // pred_check_branch
          %662 = sbr.rel (%p660) target = $region76
        $region75: #{radar_model_forward.1} parent=51 // pred_region
          %p663 = scmp.lt.s32.totalorder %s36, 1
          %s664 = scalar_select %p663, %s36, 1
          %s665 = scalar_lea.vmem %s9, %s664
        $region76: #{radar_model_forward.1} parent=51 // pred_fallthru
          _
        // Predicated region
        $region77: #{radar_model_forward.1} parent=51 // pred_check
          %p666 = pneg %p305
        $region78: #{radar_model_forward.1} parent=51 // pred_check_branch
          %668 = sbr.rel (%p666) target = $region80
        $region79: #{radar_model_forward.1} parent=51 // pred_region
          %p669 = scmp.lt.s32.totalorder %s36, 1
          %s670 = scalar_select %p669, %s36, 1
          %s671 = scalar_lea.vmem %s10, %s670
        $region80: #{radar_model_forward.1} parent=51 // pred_fallthru
          _
        // Predicated region
        $region81: #{radar_model_forward.1} parent=51 // pred_check
          %p672 = pneg %p331
        $region82: #{radar_model_forward.1} parent=51 // pred_check_branch
          %674 = sbr.rel (%p672) target = $region84
        $region83: #{radar_model_forward.1} parent=51 // pred_region
          %p675 = scmp.lt.s32.totalorder %s36, 1
          %s676 = scalar_select %p675, %s36, 1
          %s677 = scalar_lea.vmem %s11, %s676
        $region84: #{radar_model_forward.1} parent=51 // pred_fallthru
          _
        // Predicated region
        $region85: #{radar_model_forward.1} parent=51 // pred_check
          %p678 = pneg %p357
        $region86: #{radar_model_forward.1} parent=51 // pred_check_branch
          %680 = sbr.rel (%p678) target = $region88
        $region87: #{radar_model_forward.1} parent=51 // pred_region
          %p681 = scmp.lt.s32.totalorder %s36, 1
          %s682 = scalar_select %p681, %s36, 1
          %s683 = smul.addr %s682, 16
          %s684 = smul.addr %s683, 4
          %s685 = scalar_lea.vmem %s12, %s684
        $region88: #{radar_model_forward.1} parent=51 // pred_fallthru
          _
        // Predicated region
        $region89: #{radar_model_forward.1} parent=51 // pred_check
          %p686 = pneg %p383
        $region90: #{radar_model_forward.1} parent=51 // pred_check_branch
          %688 = sbr.rel (%p686) target = $region92
        $region91: #{radar_model_forward.1} parent=51 // pred_region
          %p689 = scmp.lt.s32.totalorder %s36, 1
          %s690 = scalar_select %p689, %s36, 1
          %s691 = smul.addr %s690, 2
          %s692 = scalar_lea.vmem %s13, %s691
        $region92: #{radar_model_forward.1} parent=51 // pred_fallthru
          _
        // Predicated region
        $region93: #{radar_model_forward.1} parent=51 // pred_check
          %p693 = pneg %p409
        $region94: #{radar_model_forward.1} parent=51 // pred_check_branch
          %695 = sbr.rel (%p693) target = $region96
        $region95: #{radar_model_forward.1} parent=51 // pred_region
          %p696 = scmp.lt.s32.totalorder %s36, 1
          %s697 = scalar_select %p696, %s36, 1
          %s698 = smul.addr %s697, 32
          %s699 = smul.addr %s698, 4
          %s700 = scalar_lea.vmem %s14, %s699
        $region96: #{radar_model_forward.1} parent=51 // pred_fallthru
          _
        // Predicated region
        $region97: #{radar_model_forward.1} parent=51 // pred_check
          %p701 = pneg %p435
        $region98: #{radar_model_forward.1} parent=51 // pred_check_branch
          %703 = sbr.rel (%p701) target = $region100
        $region99: #{radar_model_forward.1} parent=51 // pred_region
          %p704 = scmp.lt.s32.totalorder %s36, 1
          %s705 = scalar_select %p704, %s36, 1
          %s706 = scalar_lea.vmem %s15, %s705
        $region100: #{radar_model_forward.1} parent=51 // pred_fallthru
          _
      $region52: #{radar_model_forward.1} parent=5 // pred_fallthru
        _
      %p707 = scmp.le.s32.totalorder 1, %s28
      %p708 = scmp.lt.s32.totalorder %s28, 3
      %p709 = pnand %p707, %p708
      %p710 = pneg %p709
      // Predicated region
      $region101: #{radar_model_forward.1} parent=5 // pred_check
        _
      $region102: #{radar_model_forward.1} parent=5 // pred_check_branch
        %712 = sbr.rel (%p709) target = $region104
      $region103: #{radar_model_forward.1} parent=5 // pred_region
        %s713 = ssub.s32 %s28, 1
        %s714 = smul.u32 6, %s37
        %p715 = scmp.lt.s32.totalorder %s714, 5
        %s716 = scalar_select %p715, %s714, 5
        %s717 = smul.addr %s716, 6
        %s718 = smul.addr %s717, 4
        %s719 = scalar_lea.vmem %s0, %s718
        %p720 = pneg %p66
        %p721 = pneg %p63
        %p722 = pneg %p87
        %p723 = pneg %p84
        %p724 = pneg %p108
        %p725 = pneg %p105
        %p726 = pneg %p129
        %p727 = pneg %p126
        %p728 = scmp.lt.s32.totalorder %s38, 1
        %s729 = scalar_select %p728, %s38, 1
        %s730 = scalar_lea.vmem %s4, %s729
        %p731 = pneg %p155
        %p732 = pneg %p152
        %p733 = scmp.lt.s32.totalorder %s38, 1
        %s734 = scalar_select %p733, %s38, 1
        %s735 = scalar_lea.vmem %s5, %s734
        %p736 = pneg %p181
        %p737 = pneg %p178
        %p738 = scmp.lt.s32.totalorder %s38, 1
        %s739 = scalar_select %p738, %s38, 1
        %s740 = smul.addr %s739, 16
        %s741 = smul.addr %s740, 4
        %s742 = scalar_lea.vmem %s6, %s741
        %p743 = pneg %p207
        %p744 = pneg %p204
        %p745 = scmp.lt.s32.totalorder %s38, 1
        %s746 = scalar_select %p745, %s38, 1
        %s747 = smul.addr %s746, 2
        %s748 = scalar_lea.vmem %s7, %s747
        %p749 = pneg %p233
        %p750 = pneg %p230
        %p751 = scmp.lt.s32.totalorder %s38, 1
        %s752 = scalar_select %p751, %s38, 1
        %s753 = smul.addr %s752, 8
        %s754 = smul.addr %s753, 4
        %s755 = scalar_lea.vmem %s8, %s754
        %p756 = pneg %p259
        %p757 = pneg %p256
        %p758 = scmp.lt.s32.totalorder %s38, 1
        %s759 = scalar_select %p758, %s38, 1
        %s760 = scalar_lea.vmem %s9, %s759
        %p761 = pneg %p285
        %p762 = pneg %p282
        %p763 = scmp.lt.s32.totalorder %s38, 1
        %s764 = scalar_select %p763, %s38, 1
        %s765 = scalar_lea.vmem %s10, %s764
        %p766 = pneg %p311
        %p767 = pneg %p308
        %p768 = scmp.lt.s32.totalorder %s38, 1
        %s769 = scalar_select %p768, %s38, 1
        %s770 = scalar_lea.vmem %s11, %s769
        %p771 = pneg %p337
        %p772 = pneg %p334
        %p773 = scmp.lt.s32.totalorder %s38, 1
        %s774 = scalar_select %p773, %s38, 1
        %s775 = smul.addr %s774, 16
        %s776 = smul.addr %s775, 4
        %s777 = scalar_lea.vmem %s12, %s776
        %p778 = pneg %p363
        %p779 = pneg %p360
        %p780 = scmp.lt.s32.totalorder %s38, 1
        %s781 = scalar_select %p780, %s38, 1
        %s782 = smul.addr %s781, 2
        %s783 = scalar_lea.vmem %s13, %s782
        %p784 = pneg %p389
        %p785 = pneg %p386
        %p786 = scmp.lt.s32.totalorder %s38, 1
        %s787 = scalar_select %p786, %s38, 1
        %s788 = smul.addr %s787, 32
        %s789 = smul.addr %s788, 4
        %s790 = scalar_lea.vmem %s14, %s789
        %p791 = pneg %p415
        %p792 = pneg %p412
        %p793 = scmp.lt.s32.totalorder %s38, 1
        %s794 = scalar_select %p793, %s38, 1
        %s795 = scalar_lea.vmem %s15, %s794
        %p796 = pneg %p441
        %p797 = pneg %p438
        %p798 = pneg %p462
        %p799 = pneg %p459
        %p800 = pneg %p483
        %p801 = pneg %p480
        %p802 = pneg %p504
        %p803 = pneg %p501
        %p804 = pneg %p525
        %p805 = pneg %p522
        %p806 = pneg %p546
        %p807 = pneg %p543
        %p808 = pneg %p572
        %p809 = pneg %p569
        %s810 = smul.u32 6, %s37
        %p811 = scmp.lt.s32.totalorder %s810, 5
        %s812 = scalar_select %p811, %s810, 5
        %s813 = smul.addr %s812, 6
        %s814 = smul.addr %s813, 4
        %s815 = scalar_lea.vmem %s0, %s814
        %s816 = smul.u32 6, %s37
        %p817 = scmp.lt.s32.totalorder %s38, 1
        %s818 = scalar_select %p817, %s38, 1
        %s819 = scalar_lea.vmem %s4, %s818
        %p820 = scmp.lt.s32.totalorder %s38, 1
        %s821 = scalar_select %p820, %s38, 1
        %s822 = scalar_lea.vmem %s5, %s821
        %p823 = scmp.lt.s32.totalorder %s38, 1
        %s824 = scalar_select %p823, %s38, 1
        %s825 = smul.addr %s824, 16
        %s826 = smul.addr %s825, 4
        %s827 = scalar_lea.vmem %s6, %s826
        %p828 = scmp.lt.s32.totalorder %s38, 1
        %s829 = scalar_select %p828, %s38, 1
        %s830 = smul.addr %s829, 2
        %s831 = scalar_lea.vmem %s7, %s830
        %p832 = scmp.lt.s32.totalorder %s38, 1
        %s833 = scalar_select %p832, %s38, 1
        %s834 = smul.addr %s833, 8
        %s835 = smul.addr %s834, 4
        %s836 = scalar_lea.vmem %s8, %s835
        %p837 = scmp.lt.s32.totalorder %s38, 1
        %s838 = scalar_select %p837, %s38, 1
        %s839 = scalar_lea.vmem %s9, %s838
        %p840 = scmp.lt.s32.totalorder %s38, 1
        %s841 = scalar_select %p840, %s38, 1
        %s842 = scalar_lea.vmem %s10, %s841
        %p843 = scmp.lt.s32.totalorder %s38, 1
        %s844 = scalar_select %p843, %s38, 1
        %s845 = scalar_lea.vmem %s11, %s844
        %p846 = scmp.lt.s32.totalorder %s38, 1
        %s847 = scalar_select %p846, %s38, 1
        %s848 = smul.addr %s847, 16
        %s849 = smul.addr %s848, 4
        %s850 = scalar_lea.vmem %s12, %s849
        %p851 = scmp.lt.s32.totalorder %s38, 1
        %s852 = scalar_select %p851, %s38, 1
        %s853 = smul.addr %s852, 2
        %s854 = scalar_lea.vmem %s13, %s853
        %p855 = scmp.lt.s32.totalorder %s38, 1
        %s856 = scalar_select %p855, %s38, 1
        %s857 = smul.addr %s856, 32
        %s858 = smul.addr %s857, 4
        %s859 = scalar_lea.vmem %s14, %s858
        %p860 = scmp.lt.s32.totalorder %s38, 1
        %s861 = scalar_select %p860, %s38, 1
        %s862 = scalar_lea.vmem %s15, %s861
        %p864 = scmp.eq.s32.totalorder %s38, 0
        // Predicated region
        $region105: #{radar_model_forward.1} parent=103 // pred_check
          %p865 = pneg %p864
        $region106: #{radar_model_forward.1} parent=103 // pred_check_branch
          %867 = sbr.rel (%p865) target = $region108
        $region107: #{radar_model_forward.1} parent=103 // pred_region
          %v868 = vld [vmem:[%s815] sm:$0xff]
          %v869 = vld [vmem:[%s815 + $0x8] sm:$0xff]
          %v870 = vld [vmem:[%s815 + $0x10] sm:$0xff]
          %v871 = vld [vmem:[%s815 + $0x18] sm:$0xff]
          %v872 = vld [vmem:[%s815 + $0x20] sm:$0xff]
          %v873 = vld [vmem:[%s815 + $0x28] sm:$0xff]
          %v874 = vld [vmem:[%s815 + $0x30] sm:$0xff]
          %v875 = vld [vmem:[%s815 + $0x38] sm:$0xff]
          %v876 = vld [vmem:[%s815 + $0x40] sm:$0xff]
          %v877 = vld [vmem:[%s815 + $0x48] sm:$0xff]
          %v878 = vld [vmem:[%s815 + $0x50] sm:$0xff]
          %v879 = vld [vmem:[%s815 + $0x58] sm:$0xff]
          %v880 = vld [vmem:[%s815 + $0x60] sm:$0xff]
          %v881 = vld [vmem:[%s815 + $0x68] sm:$0xff]
          %v882 = vld [vmem:[%s815 + $0x70] sm:$0xff]
          %v883 = vld [vmem:[%s815 + $0x78] sm:$0xff]
          %v884 = vld [vmem:[%s815 + $0x80] sm:$0xff]
          %v885 = vld [vmem:[%s815 + $0x88] sm:$0xff]
          %v886 = vld [vmem:[%s1] sm:$0xf]
          %v887 = vld [vmem:[%s1 + $0x4] sm:$0xf]
          %v888 = vld [vmem:[%s1 + $0x8] sm:$0xf]
          %v889 = vld [vmem:[%s1 + $0xc] sm:$0xf]
          %v890 = vld [vmem:[%s1 + $0x10] sm:$0xf]
          %v891 = vld [vmem:[%s1 + $0x14] sm:$0xf]
          %v892 = vld [vmem:[%s1 + $0x18] sm:$0xf]
          %v893 = vld [vmem:[%s1 + $0x1c] sm:$0xf]
          %v894 = vld [vmem:[%s1 + $0x20] sm:$0xf]
          %v895 = vld [vmem:[%s1 + $0x24] sm:$0xf]
          %v896 = vld [vmem:[%s1 + $0x28] sm:$0xf]
          %v897 = vld [vmem:[%s1 + $0x2c] sm:$0xf]
          %v898 = vld [vmem:[%s1 + $0x30] sm:$0xf]
          %v899 = vld [vmem:[%s1 + $0x34] sm:$0xf]
          %v900 = vld [vmem:[%s1 + $0x38] sm:$0xf]
          %v901 = vld [vmem:[%s1 + $0x3c] sm:$0xf]
          %v902 = vld [vmem:[%s1 + $0x40] sm:$0xf]
          %v903 = vld [vmem:[%s1 + $0x44] sm:$0xf]
          %v904 = vld [vmem:[%s1 + $0x48] sm:$0xf]
          %v905 = vld [vmem:[%s1 + $0x4c] sm:$0xf]
          %v906 = vld [vmem:[%s1 + $0x50] sm:$0xf]
          %v907 = vld [vmem:[%s1 + $0x54] sm:$0xf]
          %v908 = vld [vmem:[%s1 + $0x58] sm:$0xf]
          %v909 = vld [vmem:[%s1 + $0x5c] sm:$0xf]
          %v910 = vld [vmem:[%s1 + $0x60] sm:$0xf]
          %v911 = vld [vmem:[%s1 + $0x64] sm:$0xf]
          %v912 = vld [vmem:[%s1 + $0x68] sm:$0xf]
          %v913 = vld [vmem:[%s1 + $0x6c] sm:$0xf]
          %v914 = vld [vmem:[%s1 + $0x70] sm:$0xf]
          %v915 = vld [vmem:[%s1 + $0x74] sm:$0xf]
          %v916 = vld [vmem:[%s1 + $0x78] sm:$0xf]
          %v917 = vld [vmem:[%s1 + $0x7c] sm:$0xf]
          %v918 = vld [vmem:[%s1 + $0x80] sm:$0xf]
          %v919 = vld [vmem:[%s1 + $0x84] sm:$0xf]
          %v920 = vld [vmem:[%s1 + $0x88] sm:$0xf]
          %v921 = vld [vmem:[%s1 + $0x8c] sm:$0xf]
          %v922 = vld [vmem:[%s1 + $0x90] sm:$0xf]
          %v923 = vld [vmem:[%s1 + $0x94] sm:$0xf]
          %v924 = vld [vmem:[%s1 + $0x98] sm:$0xf]
          %v925 = vld [vmem:[%s1 + $0x9c] sm:$0xf]
          %v926 = vld [vmem:[%s1 + $0xa0] sm:$0xf]
          %v927 = vld [vmem:[%s1 + $0xa4] sm:$0xf]
          %v928 = vld [vmem:[%s1 + $0xa8] sm:$0xf]
          %v929 = vld [vmem:[%s1 + $0xac] sm:$0xf]
          %v930 = vld [vmem:[%s1 + $0xb0] sm:$0xf]
          %v931 = vld [vmem:[%s1 + $0xb4] sm:$0xf]
          %v932 = vld [vmem:[%s1 + $0xb8] sm:$0xf]
          %v933 = vld [vmem:[%s1 + $0xbc] sm:$0xf]
          %v934 = vld [vmem:[%s1 + $0xc0] sm:$0xf]
          %v935 = vld [vmem:[%s1 + $0xc4] sm:$0xf]
          %v936 = vld [vmem:[%s1 + $0xc8] sm:$0xf]
          %v937 = vld [vmem:[%s1 + $0xcc] sm:$0xf]
          %v938 = vld [vmem:[%s1 + $0xd0] sm:$0xf]
          %v939 = vld [vmem:[%s1 + $0xd4] sm:$0xf]
          %v940 = vld [vmem:[%s1 + $0xd8] sm:$0xf]
          %v941 = vld [vmem:[%s1 + $0xdc] sm:$0xf]
          %v942 = vld [vmem:[%s1 + $0xe0] sm:$0xf]
          %v943 = vld [vmem:[%s1 + $0xe4] sm:$0xf]
          %v944 = vld [vmem:[%s1 + $0xe8] sm:$0xf]
          %v945 = vld [vmem:[%s1 + $0xec] sm:$0xf]
          %v946 = vld [vmem:[%s1 + $0xf0] sm:$0xf]
          %v947 = vld [vmem:[%s1 + $0xf4] sm:$0xf]
          %v948 = vld [vmem:[%s1 + $0xf8] sm:$0xf]
          %v949 = vld [vmem:[%s1 + $0xfc] sm:$0xf]
          %v950 = vld [vmem:[%s1 + $0x100] sm:$0xf]
          %v951 = vld [vmem:[%s1 + $0x104] sm:$0xf]
          %v952 = vld [vmem:[%s1 + $0x108] sm:$0xf]
          %v953 = vld [vmem:[%s1 + $0x10c] sm:$0xf]
          %v954 = vld [vmem:[%s1 + $0x110] sm:$0xf]
          %v955 = vld [vmem:[%s1 + $0x114] sm:$0xf]
          %v956 = vld [vmem:[%s1 + $0x118] sm:$0xf]
          %v957 = vld [vmem:[%s1 + $0x11c] sm:$0xf]
          %v958 = vld [vmem:[%s1 + $0x120] sm:$0xf]
          %v959 = vld [vmem:[%s1 + $0x124] sm:$0xf]
          %v960 = vld [vmem:[%s1 + $0x128] sm:$0xf]
          %v961 = vld [vmem:[%s1 + $0x12c] sm:$0xf]
          %v962 = vld [vmem:[%s1 + $0x130] sm:$0xf]
          %v963 = vld [vmem:[%s1 + $0x134] sm:$0xf]
          %v964 = vld [vmem:[%s1 + $0x138] sm:$0xf]
          %v965 = vld [vmem:[%s1 + $0x13c] sm:$0xf]
          %v966 = vld [vmem:[%s1 + $0x140] sm:$0xf]
          %v967 = vld [vmem:[%s1 + $0x144] sm:$0xf]
          %v968 = vld [vmem:[%s1 + $0x148] sm:$0xf]
          %v969 = vld [vmem:[%s1 + $0x14c] sm:$0xf]
          %v970 = vld [vmem:[%s1 + $0x150] sm:$0xf]
          %v971 = vld [vmem:[%s1 + $0x154] sm:$0xf]
          %v972 = vld [vmem:[%s1 + $0x158] sm:$0xf]
          %v973 = vld [vmem:[%s1 + $0x15c] sm:$0xf]
          %v974 = vld [vmem:[%s1 + $0x160] sm:$0xf]
          %v975 = vld [vmem:[%s1 + $0x164] sm:$0xf]
          %v976 = vld [vmem:[%s1 + $0x168] sm:$0xf]
          %v977 = vld [vmem:[%s1 + $0x16c] sm:$0xf]
          %v978 = vld [vmem:[%s1 + $0x170] sm:$0xf]
          %v979 = vld [vmem:[%s1 + $0x174] sm:$0xf]
          %v980 = vld [vmem:[%s1 + $0x178] sm:$0xf]
          %v981 = vld [vmem:[%s1 + $0x17c] sm:$0xf]
          %v982 = vld [vmem:[%s2] sm:$0xff]
          %v983 = vld [vmem:[%s2 + $0x8] sm:$0xff]
          %v984 = vld [vmem:[%s2 + $0x10] sm:$0xff]
          %v985 = vld [vmem:[%s2 + $0x18] sm:$0xff]
          %v986 = vld [vmem:[%s2 + $0x20] sm:$0xff]
          %v987 = vld [vmem:[%s2 + $0x28] sm:$0xff]
          %v1006 = vunpack.c.l.b16 %v868
          %v1007 = vunpack.c.h.b16 %v868
          %v1008 = vunpack.c.l.b16 %v869
          %v1009 = vunpack.c.h.b16 %v869
          %v1010 = vunpack.c.l.b16 %v870
          %v1011 = vunpack.c.h.b16 %v870
          %v1012 = vunpack.c.l.b16 %v871
          %v1013 = vunpack.c.h.b16 %v871
          %v1014 = vunpack.c.l.b16 %v872
          %v1015 = vunpack.c.h.b16 %v872
          %v1016 = vunpack.c.l.b16 %v873
          %v1017 = vunpack.c.h.b16 %v873
          %v1018 = vunpack.c.l.b16 %v874
          %v1019 = vunpack.c.h.b16 %v874
          %v1020 = vunpack.c.l.b16 %v875
          %v1021 = vunpack.c.h.b16 %v875
          %v1022 = vunpack.c.l.b16 %v876
          %v1023 = vunpack.c.h.b16 %v876
          %v1024 = vunpack.c.l.b16 %v877
          %v1025 = vunpack.c.h.b16 %v877
          %v1026 = vunpack.c.l.b16 %v878
          %v1027 = vunpack.c.h.b16 %v878
          %v1028 = vunpack.c.l.b16 %v879
          %v1029 = vunpack.c.h.b16 %v879
          %v1030 = vunpack.c.l.b16 %v880
          %v1031 = vunpack.c.h.b16 %v880
          %v1032 = vunpack.c.l.b16 %v881
          %v1033 = vunpack.c.h.b16 %v881
          %v1034 = vunpack.c.l.b16 %v882
          %v1035 = vunpack.c.h.b16 %v882
          %v1036 = vunpack.c.l.b16 %v883
          %v1037 = vunpack.c.h.b16 %v883
          %v1038 = vunpack.c.l.b16 %v884
          %v1039 = vunpack.c.h.b16 %v884
          %v1040 = vunpack.c.l.b16 %v885
          %v1041 = vunpack.c.h.b16 %v885
          %v1042 = vpack.c.b16 %v1012, %v1006
          %v1043 = vpack.c.b16 %v1013, %v1007
          %v1044 = vpack.c.b16 %v1014, %v1008
          %v1045 = vpack.c.b16 %v1015, %v1009
          %v1046 = vpack.c.b16 %v1016, %v1010
          %v1047 = vpack.c.b16 %v1017, %v1011
          %v1048 = vpack.c.b16 %v1024, %v1018
          %v1049 = vpack.c.b16 %v1025, %v1019
          %v1050 = vpack.c.b16 %v1026, %v1020
          %v1051 = vpack.c.b16 %v1027, %v1021
          %v1052 = vpack.c.b16 %v1028, %v1022
          %v1053 = vpack.c.b16 %v1029, %v1023
          %v1054 = vpack.c.b16 %v1036, %v1030
          %v1055 = vpack.c.b16 %v1037, %v1031
          %v1056 = vpack.c.b16 %v1038, %v1032
          %v1057 = vpack.c.b16 %v1039, %v1033
          %v1058 = vpack.c.b16 %v1040, %v1034
          %v1059 = vpack.c.b16 %v1041, %v1035
          %v1174 = vunpack.c.l.b16 %v886
          %v1175 = vunpack.c.l.b16 %v887
          %v1176 = vunpack.c.l.b16 %v888
          %v1177 = vunpack.c.l.b16 %v889
          %v1178 = vunpack.c.l.b16 %v890
          %v1179 = vunpack.c.l.b16 %v891
          %v1180 = vunpack.c.l.b16 %v892
          %v1181 = vunpack.c.l.b16 %v893
          %v1182 = vunpack.c.l.b16 %v894
          %v1183 = vunpack.c.l.b16 %v895
          %v1184 = vunpack.c.l.b16 %v896
          %v1185 = vunpack.c.l.b16 %v897
          %v1186 = vunpack.c.l.b16 %v898
          %v1187 = vunpack.c.l.b16 %v899
          %v1188 = vunpack.c.l.b16 %v900
          %v1189 = vunpack.c.l.b16 %v901
          %v1190 = vunpack.c.l.b16 %v902
          %v1191 = vunpack.c.l.b16 %v903
          %v1192 = vunpack.c.l.b16 %v904
          %v1193 = vunpack.c.l.b16 %v905
          %v1194 = vunpack.c.l.b16 %v906
          %v1195 = vunpack.c.l.b16 %v907
          %v1196 = vunpack.c.l.b16 %v908
          %v1197 = vunpack.c.l.b16 %v909
          %v1198 = vunpack.c.l.b16 %v910
          %v1199 = vunpack.c.l.b16 %v911
          %v1200 = vunpack.c.l.b16 %v912
          %v1201 = vunpack.c.l.b16 %v913
          %v1202 = vunpack.c.l.b16 %v914
          %v1203 = vunpack.c.l.b16 %v915
          %v1204 = vunpack.c.l.b16 %v916
          %v1205 = vunpack.c.l.b16 %v917
          %v1206 = vunpack.c.l.b16 %v918
          %v1207 = vunpack.c.l.b16 %v919
          %v1208 = vunpack.c.l.b16 %v920
          %v1209 = vunpack.c.l.b16 %v921
          %v1210 = vunpack.c.l.b16 %v922
          %v1211 = vunpack.c.l.b16 %v923
          %v1212 = vunpack.c.l.b16 %v924
          %v1213 = vunpack.c.l.b16 %v925
          %v1214 = vunpack.c.l.b16 %v926
          %v1215 = vunpack.c.l.b16 %v927
          %v1216 = vunpack.c.l.b16 %v928
          %v1217 = vunpack.c.l.b16 %v929
          %v1218 = vunpack.c.l.b16 %v930
          %v1219 = vunpack.c.l.b16 %v931
          %v1220 = vunpack.c.l.b16 %v932
          %v1221 = vunpack.c.l.b16 %v933
          %v1222 = vunpack.c.l.b16 %v934
          %v1223 = vunpack.c.l.b16 %v935
          %v1224 = vunpack.c.l.b16 %v936
          %v1225 = vunpack.c.l.b16 %v937
          %v1226 = vunpack.c.l.b16 %v938
          %v1227 = vunpack.c.l.b16 %v939
          %v1228 = vunpack.c.l.b16 %v940
          %v1229 = vunpack.c.l.b16 %v941
          %v1230 = vunpack.c.l.b16 %v942
          %v1231 = vunpack.c.l.b16 %v943
          %v1232 = vunpack.c.l.b16 %v944
          %v1233 = vunpack.c.l.b16 %v945
          %v1234 = vunpack.c.l.b16 %v946
          %v1235 = vunpack.c.l.b16 %v947
          %v1236 = vunpack.c.l.b16 %v948
          %v1237 = vunpack.c.l.b16 %v949
          %v1238 = vunpack.c.l.b16 %v950
          %v1239 = vunpack.c.l.b16 %v951
          %v1240 = vunpack.c.l.b16 %v952
          %v1241 = vunpack.c.l.b16 %v953
          %v1242 = vunpack.c.l.b16 %v954
          %v1243 = vunpack.c.l.b16 %v955
          %v1244 = vunpack.c.l.b16 %v956
          %v1245 = vunpack.c.l.b16 %v957
          %v1246 = vunpack.c.l.b16 %v958
          %v1247 = vunpack.c.l.b16 %v959
          %v1248 = vunpack.c.l.b16 %v960
          %v1249 = vunpack.c.l.b16 %v961
          %v1250 = vunpack.c.l.b16 %v962
          %v1251 = vunpack.c.l.b16 %v963
          %v1252 = vunpack.c.l.b16 %v964
          %v1253 = vunpack.c.l.b16 %v965
          %v1254 = vunpack.c.l.b16 %v966
          %v1255 = vunpack.c.l.b16 %v967
          %v1256 = vunpack.c.l.b16 %v968
          %v1257 = vunpack.c.l.b16 %v969
          %v1258 = vunpack.c.l.b16 %v970
          %v1259 = vunpack.c.l.b16 %v971
          %v1260 = vunpack.c.l.b16 %v972
          %v1261 = vunpack.c.l.b16 %v973
          %v1262 = vunpack.c.l.b16 %v974
          %v1263 = vunpack.c.l.b16 %v975
          %v1264 = vunpack.c.l.b16 %v976
          %v1265 = vunpack.c.l.b16 %v977
          %v1266 = vunpack.c.l.b16 %v978
          %v1267 = vunpack.c.l.b16 %v979
          %v1268 = vunpack.c.l.b16 %v980
          %v1269 = vunpack.c.l.b16 %v981
          %v1270 = vpack.c.b16 %v1175, %v1174
          %v1271 = vpack.c.b16 %v1177, %v1176
          %v1272 = vpack.c.b16 %v1179, %v1178
          %v1273 = vpack.c.b16 %v1181, %v1180
          %v1274 = vpack.c.b16 %v1183, %v1182
          %v1275 = vpack.c.b16 %v1185, %v1184
          %v1276 = vpack.c.b16 %v1187, %v1186
          %v1277 = vpack.c.b16 %v1189, %v1188
          %v1278 = vpack.c.b16 %v1191, %v1190
          %v1279 = vpack.c.b16 %v1193, %v1192
          %v1280 = vpack.c.b16 %v1195, %v1194
          %v1281 = vpack.c.b16 %v1197, %v1196
          %v1282 = vpack.c.b16 %v1199, %v1198
          %v1283 = vpack.c.b16 %v1201, %v1200
          %v1284 = vpack.c.b16 %v1203, %v1202
          %v1285 = vpack.c.b16 %v1205, %v1204
          %v1286 = vpack.c.b16 %v1207, %v1206
          %v1287 = vpack.c.b16 %v1209, %v1208
          %v1288 = vpack.c.b16 %v1211, %v1210
          %v1289 = vpack.c.b16 %v1213, %v1212
          %v1290 = vpack.c.b16 %v1215, %v1214
          %v1291 = vpack.c.b16 %v1217, %v1216
          %v1292 = vpack.c.b16 %v1219, %v1218
          %v1293 = vpack.c.b16 %v1221, %v1220
          %v1294 = vpack.c.b16 %v1223, %v1222
          %v1295 = vpack.c.b16 %v1225, %v1224
          %v1296 = vpack.c.b16 %v1227, %v1226
          %v1297 = vpack.c.b16 %v1229, %v1228
          %v1298 = vpack.c.b16 %v1231, %v1230
          %v1299 = vpack.c.b16 %v1233, %v1232
          %v1300 = vpack.c.b16 %v1235, %v1234
          %v1301 = vpack.c.b16 %v1237, %v1236
          %v1302 = vpack.c.b16 %v1239, %v1238
          %v1303 = vpack.c.b16 %v1241, %v1240
          %v1304 = vpack.c.b16 %v1243, %v1242
          %v1305 = vpack.c.b16 %v1245, %v1244
          %v1306 = vpack.c.b16 %v1247, %v1246
          %v1307 = vpack.c.b16 %v1249, %v1248
          %v1308 = vpack.c.b16 %v1251, %v1250
          %v1309 = vpack.c.b16 %v1253, %v1252
          %v1310 = vpack.c.b16 %v1255, %v1254
          %v1311 = vpack.c.b16 %v1257, %v1256
          %v1312 = vpack.c.b16 %v1259, %v1258
          %v1313 = vpack.c.b16 %v1261, %v1260
          %v1314 = vpack.c.b16 %v1263, %v1262
          %v1315 = vpack.c.b16 %v1265, %v1264
          %v1316 = vpack.c.b16 %v1267, %v1266
          %v1317 = vpack.c.b16 %v1269, %v1268
          %1366 = vmatprep.subr.bf16.mxu0 0
          %1367 = vmatpush1.bf16.msra.mxu0 %v1270
          %1368 = vmatprep.subr.bf16.mxu0 0
          %1369 = vmatpush1.bf16.msra.mxu0 %v1271
          %1370 = vmatprep.subr.bf16.mxu0 0
          %1371 = vmatpush1.bf16.msra.mxu0 %v1272
          %1372 = vmatprep.subr.bf16.mxu0 0
          %1373 = vmatpush1.bf16.msra.mxu0 %v1273
          %1374 = vmatprep.subr.bf16.mxu0 0
          %1375 = vmatpush1.bf16.msra.mxu0 %v1274
          %1376 = vmatprep.subr.bf16.mxu0 0
          %1377 = vmatpush1.bf16.msra.mxu0 %v1275
          %1378 = vmatprep.subr.bf16.mxu0 0
          %1379 = vmatpush1.bf16.msra.mxu0 %v1276
          %1380 = vmatprep.subr.bf16.mxu0 0
          %1381 = vmatpush1.bf16.msra.mxu0 %v1277
          %1382 = vmatprep.subr.bf16.mxu0 0
          %1383 = vmatpush1.bf16.msra.mxu0 %v1278
          %1384 = vmatprep.subr.bf16.mxu0 0
          %1385 = vmatpush1.bf16.msra.mxu0 %v1279
          %1386 = vmatprep.subr.bf16.mxu0 0
          %1387 = vmatpush1.bf16.msra.mxu0 %v1280
          %1388 = vmatprep.subr.bf16.mxu0 0
          %1389 = vmatpush1.bf16.msra.mxu0 %v1281
          %1390 = vmatprep.subr.bf16.mxu0 0
          %1391 = vmatpush1.bf16.msra.mxu0 %v1282
          %1392 = vmatprep.subr.bf16.mxu0 0
          %1393 = vmatpush1.bf16.msra.mxu0 %v1283
          %1394 = vmatprep.subr.bf16.mxu0 0
          %1395 = vmatpush1.bf16.msra.mxu0 %v1284
          %1396 = vmatprep.subr.bf16.mxu0 0
          %1397 = vmatpush1.bf16.msra.mxu0 %v1285
          %1398 = vmatprep.mubr.bf16.mxu0 %v1043
          %1399 = vmatmul.mubr.bf16.gmra.mrb[0].mxu0 %v1042
          %v1400 = vpop.f32.mrb[0].mxu0
          %v1401 = vadd.f32 %v982, %v1400
          %v1402 = vpop.f32.mrb[0].mxu0
          %v1403 = vpop.f32.mrb[0].mxu0
          %v1404 = vadd.f32 %v983, %v1403
          %v1405 = vpop.f32.mrb[0].mxu0
          %1406 = vmatprep.mubr.bf16.mxu0 %v1049
          %1407 = vmatmul.mubr.bf16.gmra.mrb[0].mxu0 %v1048
          %v1408 = vpop.f32.mrb[0].mxu0
          %v1409 = vadd.f32 %v984, %v1408
          %v1410 = vpop.f32.mrb[0].mxu0
          %v1411 = vpop.f32.mrb[0].mxu0
          %v1412 = vadd.f32 %v985, %v1411
          %v1413 = vpop.f32.mrb[0].mxu0
          %1414 = vmatprep.mubr.bf16.mxu0 %v1055
          %1415 = vmatmul.mubr.bf16.gmra.mrb[0].mxu0 %v1054
          %v1416 = vpop.f32.mrb[0].mxu0
          %v1417 = vadd.f32 %v986, %v1416
          %v1418 = vpop.f32.mrb[0].mxu0
          %v1419 = vpop.f32.mrb[0].mxu0
          %v1420 = vadd.f32 %v987, %v1419
          %v1421 = vpop.f32.mrb[0].mxu0
          %1422 = vdwg.mxu0
          %1423 = vmatprep.subr.bf16.mxu0 0
          %1424 = vmatpush1.bf16.msra.mxu0 %v1286
          %1425 = vmatprep.subr.bf16.mxu0 0
          %1426 = vmatpush1.bf16.msra.mxu0 %v1287
          %1427 = vmatprep.subr.bf16.mxu0 0
          %1428 = vmatpush1.bf16.msra.mxu0 %v1288
          %1429 = vmatprep.subr.bf16.mxu0 0
          %1430 = vmatpush1.bf16.msra.mxu0 %v1289
          %1431 = vmatprep.subr.bf16.mxu0 0
          %1432 = vmatpush1.bf16.msra.mxu0 %v1290
          %1433 = vmatprep.subr.bf16.mxu0 0
          %1434 = vmatpush1.bf16.msra.mxu0 %v1291
          %1435 = vmatprep.subr.bf16.mxu0 0
          %1436 = vmatpush1.bf16.msra.mxu0 %v1292
          %1437 = vmatprep.subr.bf16.mxu0 0
          %1438 = vmatpush1.bf16.msra.mxu0 %v1293
          %1439 = vmatprep.subr.bf16.mxu0 0
          %1440 = vmatpush1.bf16.msra.mxu0 %v1294
          %1441 = vmatprep.subr.bf16.mxu0 0
          %1442 = vmatpush1.bf16.msra.mxu0 %v1295
          %1443 = vmatprep.subr.bf16.mxu0 0
          %1444 = vmatpush1.bf16.msra.mxu0 %v1296
          %1445 = vmatprep.subr.bf16.mxu0 0
          %1446 = vmatpush1.bf16.msra.mxu0 %v1297
          %1447 = vmatprep.subr.bf16.mxu0 0
          %1448 = vmatpush1.bf16.msra.mxu0 %v1298
          %1449 = vmatprep.subr.bf16.mxu0 0
          %1450 = vmatpush1.bf16.msra.mxu0 %v1299
          %1451 = vmatprep.subr.bf16.mxu0 0
          %1452 = vmatpush1.bf16.msra.mxu0 %v1300
          %1453 = vmatprep.subr.bf16.mxu0 0
          %1454 = vmatpush1.bf16.msra.mxu0 %v1301
          %1455 = vmatprep.mubr.bf16.mxu0 %v1045
          %1456 = vmatmul.mubr.bf16.gmra.mrb[0].mxu0 %v1044
          %v1457 = vpop.f32.mrb[0].mxu0
          %v1458 = vadd.f32 %v1401, %v1457
          %v1459 = vpop.f32.mrb[0].mxu0
          %v1460 = vpop.f32.mrb[0].mxu0
          %v1461 = vadd.f32 %v1404, %v1460
          %v1462 = vpop.f32.mrb[0].mxu0
          %1463 = vmatprep.mubr.bf16.mxu0 %v1051
          %1464 = vmatmul.mubr.bf16.gmra.mrb[0].mxu0 %v1050
          %v1465 = vpop.f32.mrb[0].mxu0
          %v1466 = vadd.f32 %v1409, %v1465
          %v1467 = vpop.f32.mrb[0].mxu0
          %v1468 = vpop.f32.mrb[0].mxu0
          %v1469 = vadd.f32 %v1412, %v1468
          %v1470 = vpop.f32.mrb[0].mxu0
          %1471 = vmatprep.mubr.bf16.mxu0 %v1057
          %1472 = vmatmul.mubr.bf16.gmra.mrb[0].mxu0 %v1056
          %v1473 = vpop.f32.mrb[0].mxu0
          %v1474 = vadd.f32 %v1417, %v1473
          %v1475 = vpop.f32.mrb[0].mxu0
          %v1476 = vpop.f32.mrb[0].mxu0
          %v1477 = vadd.f32 %v1420, %v1476
          %v1478 = vpop.f32.mrb[0].mxu0
          %1479 = vdwg.mxu0
          %1480 = vmatprep.subr.bf16.mxu0 0
          %1481 = vmatpush1.bf16.msra.mxu0 %v1302
          %1482 = vmatprep.subr.bf16.mxu0 0
          %1483 = vmatpush1.bf16.msra.mxu0 %v1303
          %1484 = vmatprep.subr.bf16.mxu0 0
          %1485 = vmatpush1.bf16.msra.mxu0 %v1304
          %1486 = vmatprep.subr.bf16.mxu0 0
          %1487 = vmatpush1.bf16.msra.mxu0 %v1305
          %1488 = vmatprep.subr.bf16.mxu0 0
          %1489 = vmatpush1.bf16.msra.mxu0 %v1306
          %1490 = vmatprep.subr.bf16.mxu0 0
          %1491 = vmatpush1.bf16.msra.mxu0 %v1307
          %1492 = vmatprep.subr.bf16.mxu0 0
          %1493 = vmatpush1.bf16.msra.mxu0 %v1308
          %1494 = vmatprep.subr.bf16.mxu0 0
          %1495 = vmatpush1.bf16.msra.mxu0 %v1309
          %1496 = vmatprep.subr.bf16.mxu0 0
          %1497 = vmatpush1.bf16.msra.mxu0 %v1310
          %1498 = vmatprep.subr.bf16.mxu0 0
          %1499 = vmatpush1.bf16.msra.mxu0 %v1311
          %1500 = vmatprep.subr.bf16.mxu0 0
          %1501 = vmatpush1.bf16.msra.mxu0 %v1312
          %1502 = vmatprep.subr.bf16.mxu0 0
          %1503 = vmatpush1.bf16.msra.mxu0 %v1313
          %1504 = vmatprep.subr.bf16.mxu0 0
          %1505 = vmatpush1.bf16.msra.mxu0 %v1314
          %1506 = vmatprep.subr.bf16.mxu0 0
          %1507 = vmatpush1.bf16.msra.mxu0 %v1315
          %1508 = vmatprep.subr.bf16.mxu0 0
          %1509 = vmatpush1.bf16.msra.mxu0 %v1316
          %1510 = vmatprep.subr.bf16.mxu0 0
          %1511 = vmatpush1.bf16.msra.mxu0 %v1317
          %1512 = vmatprep.mubr.bf16.mxu0 %v1047
          %1513 = vmatmul.mubr.bf16.gmra.mrb[0].mxu0 %v1046
          %v1514 = vpop.f32.mrb[0].mxu0
          %v1515 = vadd.f32 %v1458, %v1514
          %v1516 = vpop.f32.mrb[0].mxu0
          %v1517 = vpop.f32.mrb[0].mxu0
          %v1518 = vadd.f32 %v1461, %v1517
          %v1519 = vpop.f32.mrb[0].mxu0
          %1520 = vmatprep.mubr.bf16.mxu0 %v1053
          %1521 = vmatmul.mubr.bf16.gmra.mrb[0].mxu0 %v1052
          %v1522 = vpop.f32.mrb[0].mxu0
          %v1523 = vadd.f32 %v1466, %v1522
          %v1524 = vpop.f32.mrb[0].mxu0
          %v1525 = vpop.f32.mrb[0].mxu0
          %v1526 = vadd.f32 %v1469, %v1525
          %v1527 = vpop.f32.mrb[0].mxu0
          %1528 = vmatprep.mubr.bf16.mxu0 %v1059
          %1529 = vmatmul.mubr.bf16.gmra.mrb[0].mxu0 %v1058
          %v1530 = vpop.f32.mrb[0].mxu0
          %v1531 = vadd.f32 %v1474, %v1530
          %v1532 = vpop.f32.mrb[0].mxu0
          %v1533 = vpop.f32.mrb[0].mxu0
          %v1534 = vadd.f32 %v1477, %v1533
          %v1535 = vpop.f32.mrb[0].mxu0
          %1536 = vdwg.mxu0
          %vm1537 = vcmask 523264
          %1538 = vst.msk [vmem:[#allocation2] sm:$0xff] %vm1537, %v1515
          %1539 = vst.msk [vmem:[#allocation2 + $0x8] sm:$0xff] %vm1537, %v1518
          %1540 = vst.msk [vmem:[#allocation2 + $0x10] sm:$0xff] %vm1537, %v1523
          %1541 = vst.msk [vmem:[#allocation2 + $0x18] sm:$0xff] %vm1537, %v1526
          %1542 = vst.msk [vmem:[#allocation2 + $0x20] sm:$0xff] %vm1537, %v1531
          %1543 = vst.msk [vmem:[#allocation2 + $0x28] sm:$0xff] %vm1537, %v1534
        $region108: #{radar_model_forward.1} parent=103 // pred_fallthru
          _
        %v1544 = vld [vmem:[#allocation2] sm:$0xff]
        %v1545 = vld [vmem:[#allocation2 + $0x8] sm:$0xff]
        %v1546 = vld [vmem:[#allocation2 + $0x10] sm:$0xff]
        %v1547 = vld [vmem:[#allocation2 + $0x18] sm:$0xff]
        %v1548 = vld [vmem:[#allocation2 + $0x20] sm:$0xff]
        %v1549 = vld [vmem:[#allocation2 + $0x28] sm:$0xff]
        %v1550 = vld [vmem:[%s819] sm:$0x1]
        %v1551 = vld [vmem:[%s822] sm:$0x1]
        %vm1552 = vcmask 523264
        %v1553 = vsel %vm1552, %v1544, 0.0
        %1554 = vadd.xlane.f32.xlu0 %v1553
        %v1555 = vpop.xlane.xlu0 %1554
        %v1556 = vsel %vm1552, %v1545, 0.0
        %1557 = vadd.xlane.f32.xlu0 %v1556
        %v1558 = vpop.xlane.xlu0 %1557
        %v1559 = vsel %vm1552, %v1546, 0.0
        %1560 = vadd.xlane.f32.xlu0 %v1559
        %v1561 = vpop.xlane.xlu0 %1560
        %v1562 = vsel %vm1552, %v1547, 0.0
        %1563 = vadd.xlane.f32.xlu0 %v1562
        %v1564 = vpop.xlane.xlu0 %1563
        %v1565 = vsel %vm1552, %v1548, 0.0
        %1566 = vadd.xlane.f32.xlu0 %v1565
        %v1567 = vpop.xlane.xlu0 %1566
        %v1568 = vsel %vm1552, %v1549, 0.0
        %1569 = vadd.xlane.f32.xlu0 %v1568
        %v1570 = vpop.xlane.xlu0 %1569
        %v1571 = vrcp.pop 64.0
        %v1572 = vmul.f32 %v1555, %v1571
        %v1573 = vmul.f32 %v1558, %v1571
        %v1574 = vmul.f32 %v1561, %v1571
        %v1575 = vmul.f32 %v1564, %v1571
        %v1576 = vmul.f32 %v1567, %v1571
        %v1577 = vmul.f32 %v1570, %v1571
        %v1578 = vsub.f32 %v1544, %v1572
        %v1579 = vsub.f32 %v1545, %v1573
        %v1580 = vsub.f32 %v1546, %v1574
        %v1581 = vsub.f32 %v1547, %v1575
        %v1582 = vsub.f32 %v1548, %v1576
        %v1583 = vsub.f32 %v1549, %v1577
        %v1584 = vmul.f32 %v1578, %v1578
        %v1585 = vmul.f32 %v1579, %v1579
        %v1586 = vmul.f32 %v1580, %v1580
        %v1587 = vmul.f32 %v1581, %v1581
        %v1588 = vmul.f32 %v1582, %v1582
        %v1589 = vmul.f32 %v1583, %v1583
        %v1590 = vsel %vm1552, %v1584, 0.0
        %1591 = vadd.xlane.f32.xlu0 %v1590
        %v1592 = vpop.xlane.xlu0 %1591
        %v1593 = vsel %vm1552, %v1585, 0.0
        %1594 = vadd.xlane.f32.xlu0 %v1593
        %v1595 = vpop.xlane.xlu0 %1594
        %v1596 = vsel %vm1552, %v1586, 0.0
        %1597 = vadd.xlane.f32.xlu0 %v1596
        %v1598 = vpop.xlane.xlu0 %1597
        %v1599 = vsel %vm1552, %v1587, 0.0
        %1600 = vadd.xlane.f32.xlu0 %v1599
        %v1601 = vpop.xlane.xlu0 %1600
        %v1602 = vsel %vm1552, %v1588, 0.0
        %1603 = vadd.xlane.f32.xlu0 %v1602
        %v1604 = vpop.xlane.xlu0 %1603
        %v1605 = vsel %vm1552, %v1589, 0.0
        %1606 = vadd.xlane.f32.xlu0 %v1605
        %v1607 = vpop.xlane.xlu0 %1606
        %v1608 = vmul.f32 %v1592, %v1571
        %v1609 = vmul.f32 %v1595, %v1571
        %v1610 = vmul.f32 %v1598, %v1571
        %v1611 = vmul.f32 %v1601, %v1571
        %v1612 = vmul.f32 %v1604, %v1571
        %v1613 = vmul.f32 %v1607, %v1571
        %v1614 = vadd.f32 %v1608, 1e-06
        %v1615 = vadd.f32 %v1609, 1e-06
        %v1616 = vadd.f32 %v1610, 1e-06
        %v1617 = vadd.f32 %v1611, 1e-06
        %v1618 = vadd.f32 %v1612, 1e-06
        %v1619 = vadd.f32 %v1613, 1e-06
        %v1620 = vrsqrt.pop %v1614
        %v1621 = vrsqrt.pop %v1615
        %v1622 = vrsqrt.pop %v1616
        %v1623 = vrsqrt.pop %v1617
        %v1624 = vrsqrt.pop %v1618
        %v1625 = vrsqrt.pop %v1619
        %v1626 = vmul.f32 %v1578, %v1620
        %v1627 = vmul.f32 %v1579, %v1621
        %v1628 = vmul.f32 %v1580, %v1622
        %v1629 = vmul.f32 %v1581, %v1623
        %v1630 = vmul.f32 %v1582, %v1624
        %v1631 = vmul.f32 %v1583, %v1625
        %v1633 = vlaneseq
        %v1634 = vshrl.u32 %v1633, 7
        %v1635 = vsub.s32 0, %v1634
        %v1636 = vrot.slane %v1550, %v1635
        %v1638 = vmul.f32 %v1626, %v1636
        %v1639 = vmul.f32 %v1627, %v1636
        %v1640 = vmul.f32 %v1628, %v1636
        %v1641 = vmul.f32 %v1629, %v1636
        %v1642 = vmul.f32 %v1630, %v1636
        %v1643 = vmul.f32 %v1631, %v1636
        %v1645 = vlaneseq
        %v1646 = vshrl.u32 %v1645, 7
        %v1647 = vsub.s32 0, %v1646
        %v1648 = vrot.slane %v1551, %v1647
        %v1650 = vadd.f32 %v1638, %v1648
        %v1651 = vadd.f32 %v1639, %v1648
        %v1652 = vadd.f32 %v1640, %v1648
        %v1653 = vadd.f32 %v1641, %v1648
        %v1654 = vadd.f32 %v1642, %v1648
        %v1655 = vadd.f32 %v1643, %v1648
        %v1656 = vpack.c.bf16 %v1651, %v1650
        %v1657 = vpack.c.bf16 %v1653, %v1652
        %v1658 = vpack.c.bf16 %v1655, %v1654
        %v1659 = vld [vmem:[%s827] sm:$0xff]
        %v1660 = vld [vmem:[%s827 + $0x8] sm:$0xff]
        %v1661 = vld [vmem:[%s827 + $0x10] sm:$0xff]
        %v1662 = vld [vmem:[%s827 + $0x18] sm:$0xff]
        %v1663 = vld [vmem:[%s827 + $0x20] sm:$0xff]
        %v1664 = vld [vmem:[%s827 + $0x28] sm:$0xff]
        %v1665 = vld [vmem:[%s827 + $0x30] sm:$0xff]
        %v1666 = vld [vmem:[%s827 + $0x38] sm:$0xff]
        %v1667 = vld [vmem:[%s831] sm:$0x3]
        %v1669 = vlaneseq
        %v1670 = vshrl.u32 %v1669, 7
        %v1671 = vsub.s32 0, %v1670
        %v1672 = vrot.slane %v1667, %v1671
        %v1673 = vlaneseq
        %v1674 = vshrl.u32 %v1673, 7
        %v1675 = vsub.s32 1, %v1674
        %v1676 = vrot.slane %v1667, %v1675
        %v1687 = vunpack.c.l.b16 %v1659
        %v1688 = vunpack.c.h.b16 %v1659
        %v1689 = vunpack.c.l.b16 %v1660
        %v1690 = vunpack.c.h.b16 %v1660
        %v1691 = vunpack.c.l.b16 %v1661
        %v1692 = vunpack.c.h.b16 %v1661
        %v1693 = vunpack.c.l.b16 %v1662
        %v1694 = vunpack.c.h.b16 %v1662
        %v1695 = vunpack.c.l.b16 %v1663
        %v1696 = vunpack.c.h.b16 %v1663
        %v1697 = vunpack.c.l.b16 %v1664
        %v1698 = vunpack.c.h.b16 %v1664
        %v1699 = vunpack.c.l.b16 %v1665
        %v1700 = vunpack.c.h.b16 %v1665
        %v1701 = vunpack.c.l.b16 %v1666
        %v1702 = vunpack.c.h.b16 %v1666
        %v1703 = vpack.c.b16 %v1689, %v1687
        %v1704 = vpack.c.b16 %v1690, %v1688
        %v1705 = vpack.c.b16 %v1693, %v1691
        %v1706 = vpack.c.b16 %v1694, %v1692
        %v1707 = vpack.c.b16 %v1697, %v1695
        %v1708 = vpack.c.b16 %v1698, %v1696
        %v1709 = vpack.c.b16 %v1701, %v1699
        %v1710 = vpack.c.b16 %v1702, %v1700
        %v1720 = vsel %vm1552, %v1656, 0
        %v1723 = vsel %vm1552, %v1657, 0
        %v1726 = vsel %vm1552, %v1658, 0
        %1728 = vmatprep.subr.bf16.mxu0 %v1704
        %1729 = vmatpush1.bf16.msra.mxu0 %v1703
        %1730 = vmatprep.subr.bf16.mxu0 %v1706
        %1731 = vmatpush1.bf16.msra.mxu0 %v1705
        %1732 = vmatprep.subr.bf16.mxu0 %v1708
        %1733 = vmatpush1.bf16.msra.mxu0 %v1707
        %1734 = vmatprep.subr.bf16.mxu0 %v1710
        %1735 = vmatpush1.bf16.msra.mxu0 %v1709
        %1736 = vmatprep.subr.bf16.mxu0 0
        %1737 = vmatpush1.bf16.msra.mxu0 0
        %1738 = vmatprep.subr.bf16.mxu0 0
        %1739 = vmatpush1.bf16.msra.mxu0 0
        %1740 = vmatprep.subr.bf16.mxu0 0
        %1741 = vmatpush1.bf16.msra.mxu0 0
        %1742 = vmatprep.subr.bf16.mxu0 0
        %1743 = vmatpush1.bf16.msra.mxu0 0
        %1744 = vmatprep.subr.bf16.mxu0 0
        %1745 = vmatpush1.bf16.msra.mxu0 0
        %1746 = vmatprep.subr.bf16.mxu0 0
        %1747 = vmatpush1.bf16.msra.mxu0 0
        %1748 = vmatprep.subr.bf16.mxu0 0
        %1749 = vmatpush1.bf16.msra.mxu0 0
        %1750 = vmatprep.subr.bf16.mxu0 0
        %1751 = vmatpush1.bf16.msra.mxu0 0
        %1752 = vmatprep.subr.bf16.mxu0 0
        %1753 = vmatpush1.bf16.msra.mxu0 0
        %1754 = vmatprep.subr.bf16.mxu0 0
        %1755 = vmatpush1.bf16.msra.mxu0 0
        %1756 = vmatprep.subr.bf16.mxu0 0
        %1757 = vmatpush1.bf16.msra.mxu0 0
        %1758 = vmatprep.subr.bf16.mxu0 0
        %1759 = vmatpush1.bf16.msra.mxu0 0
        %1760 = vmatprep.mubr.bf16.mxu0 0
        %1761 = vmatmul.mubr.bf16.gmra.mrb[0].mxu0 %v1720
        %v1762 = vpop.f32.mrb[0].mxu0
        %v1763 = vadd.f32 %v1672, %v1762
        %v1764 = vpop.f32.mrb[0].mxu0
        %v1765 = vadd.f32 %v1676, %v1764
        %v1766 = vpop.f32.mrb[0].mxu0
        %v1767 = vadd.f32 %v1672, %v1766
        %v1768 = vpop.f32.mrb[0].mxu0
        %v1769 = vadd.f32 %v1676, %v1768
        %1770 = vmatprep.mubr.bf16.mxu0 0
        %1771 = vmatmul.mubr.bf16.gmra.mrb[0].mxu0 %v1723
        %v1772 = vpop.f32.mrb[0].mxu0
        %v1773 = vadd.f32 %v1672, %v1772
        %v1774 = vpop.f32.mrb[0].mxu0
        %v1775 = vadd.f32 %v1676, %v1774
        %v1776 = vpop.f32.mrb[0].mxu0
        %v1777 = vadd.f32 %v1672, %v1776
        %v1778 = vpop.f32.mrb[0].mxu0
        %v1779 = vadd.f32 %v1676, %v1778
        %1780 = vmatprep.mubr.bf16.mxu0 0
        %1781 = vmatmul.mubr.bf16.gmra.mrb[0].mxu0 %v1726
        %v1782 = vpop.f32.mrb[0].mxu0
        %v1783 = vadd.f32 %v1672, %v1782
        %v1784 = vpop.f32.mrb[0].mxu0
        %v1785 = vadd.f32 %v1676, %v1784
        %v1786 = vpop.f32.mrb[0].mxu0
        %v1787 = vadd.f32 %v1672, %v1786
        %v1788 = vpop.f32.mrb[0].mxu0
        %v1789 = vadd.f32 %v1676, %v1788
        %1790 = vdwg.mxu0
        %v1791 = vld [vmem:[%s3] sm:$0xff]
        %v1792 = vld [vmem:[%s3 + $0x8] sm:$0xff]
        %v1793 = vld [vmem:[%s3 + $0x10] sm:$0xff]
        %v1794 = vld [vmem:[%s3 + $0x18] sm:$0xff]
        %v1795 = vld [vmem:[%s3 + $0x20] sm:$0xff]
        %v1796 = vld [vmem:[%s3 + $0x28] sm:$0xff]
        %v1797 = vld [vmem:[%s836] sm:$0xf]
        %v1798 = vld [vmem:[%s836 + $0x4] sm:$0xf]
        %v1799 = vld [vmem:[%s836 + $0x8] sm:$0xf]
        %v1800 = vld [vmem:[%s836 + $0xc] sm:$0xf]
        %v1801 = vld [vmem:[%s836 + $0x10] sm:$0xf]
        %v1802 = vld [vmem:[%s836 + $0x14] sm:$0xf]
        %v1803 = vld [vmem:[%s836 + $0x18] sm:$0xf]
        %v1804 = vld [vmem:[%s836 + $0x1c] sm:$0xf]
        %v1805 = vmul.f32 %v1763, 0.25
        %v1806 = vmul.f32 %v1767, 0.25
        %v1807 = vmul.f32 %v1773, 0.25
        %v1808 = vmul.f32 %v1777, 0.25
        %v1809 = vmul.f32 %v1783, 0.25
        %v1810 = vmul.f32 %v1787, 0.25
        %1817 = vrot.lane.b32.xlu0 %v1763, 64
        %v1818 = vpop.permute.xlu0 %1817
        %1819 = vrot.lane.b32.xlu0 %v1767, 64
        %v1820 = vpop.permute.xlu0 %1819
        %1821 = vrot.lane.b32.xlu0 %v1773, 64
        %v1822 = vpop.permute.xlu0 %1821
        %1823 = vrot.lane.b32.xlu0 %v1777, 64
        %v1824 = vpop.permute.xlu0 %1823
        %1825 = vrot.lane.b32.xlu0 %v1783, 64
        %v1826 = vpop.permute.xlu0 %1825
        %1827 = vrot.lane.b32.xlu0 %v1787, 64
        %v1828 = vpop.permute.xlu0 %1827
        %vm1829 = vcmask 130048
        %v1831 = vsel %vm1829, %v1805, 0
        %v1834 = vsel %vm1829, %v1806, 0
        %v1837 = vsel %vm1829, %v1807, 0
        %v1840 = vsel %vm1829, %v1808, 0
        %v1843 = vsel %vm1829, %v1809, 0
        %v1846 = vsel %vm1829, %v1810, 0
        %v1848 = vsel %vm1829, %v1818, 0
        %v1850 = vsel %vm1829, %v1820, 0
        %v1852 = vsel %vm1829, %v1822, 0
        %v1854 = vsel %vm1829, %v1824, 0
        %v1856 = vsel %vm1829, %v1826, 0
        %v1858 = vsel %vm1829, %v1828, 0
        %1860 = vmatprep.subr.mxu0 0.0
        %1861 = vmatpush1.xpose.msra.mxu0 %v1848
        %1862 = vmatprep.subr.mxu0 0.0
        %1863 = vmatpush1.xpose.msra.mxu0 %v1850
        %1864 = vmatprep.subr.mxu0 0.0
        %1865 = vmatpush1.xpose.msra.mxu0 %v1852
        %1866 = vmatprep.subr.mxu0 0.0
        %1867 = vmatpush1.xpose.msra.mxu0 %v1854
        %1868 = vmatprep.subr.mxu0 0.0
        %1869 = vmatpush1.xpose.msra.mxu0 %v1856
        %1870 = vmatprep.subr.mxu0 0.0
        %1871 = vmatpush1.xpose.msra.mxu0 %v1858
        %1872 = vmatprep.subr.mxu0 0.0
        %1873 = vmatpush1.xpose.msra.mxu0 0.0
        %1874 = vmatprep.subr.mxu0 0.0
        %1875 = vmatpush1.xpose.msra.mxu0 0.0
        %1876 = vmatprep.subr.mxu0 0.0
        %1877 = vmatpush1.xpose.msra.mxu0 0.0
        %1878 = vmatprep.subr.mxu0 0.0
        %1879 = vmatpush1.xpose.msra.mxu0 0.0
        %1880 = vmatprep.subr.mxu0 0.0
        %1881 = vmatpush1.xpose.msra.mxu0 0.0
        %1882 = vmatprep.subr.mxu0 0.0
        %1883 = vmatpush1.xpose.msra.mxu0 0.0
        %1884 = vmatprep.subr.mxu0 0.0
        %1885 = vmatpush1.xpose.msra.mxu0 0.0
        %1886 = vmatprep.subr.mxu0 0.0
        %1887 = vmatpush1.xpose.msra.mxu0 0.0
        %1888 = vmatprep.subr.mxu0 0.0
        %1889 = vmatpush1.xpose.msra.mxu0 0.0
        %1890 = vmatprep.subr.mxu0 0.0
        %1891 = vmatpush1.xpose.msra.mxu0 0.0
        %1892 = vmatprep.subr.mxu0 0.0
        %1893 = vmatpush1.xpose.msra.mxu0 0.0
        %1894 = vmatprep.subr.mxu0 0.0
        %1895 = vmatpush1.xpose.msra.mxu0 0.0
        %1896 = vmatprep.subr.mxu0 0.0
        %1897 = vmatpush1.xpose.msra.mxu0 0.0
        %1898 = vmatprep.subr.mxu0 0.0
        %1899 = vmatpush1.xpose.msra.mxu0 0.0
        %1900 = vmatprep.subr.mxu0 0.0
        %1901 = vmatpush1.xpose.msra.mxu0 0.0
        %1902 = vmatprep.subr.mxu0 0.0
        %1903 = vmatpush1.xpose.msra.mxu0 0.0
        %1904 = vmatprep.subr.mxu0 0.0
        %1905 = vmatpush1.xpose.msra.mxu0 0.0
        %1906 = vmatprep.subr.mxu0 0.0
        %1907 = vmatpush1.xpose.msra.mxu0 0.0
        %1908 = vmatprep.subr.mxu0 0.0
        %1909 = vmatpush1.xpose.msra.mxu0 0.0
        %1910 = vmatprep.subr.mxu0 0.0
        %1911 = vmatpush1.xpose.msra.mxu0 0.0
        %1912 = vmatprep.subr.mxu0 0.0
        %1913 = vmatpush1.xpose.msra.mxu0 0.0
        %1914 = vmatprep.subr.mxu0 0.0
        %1915 = vmatpush1.xpose.msra.mxu0 0.0
        %1916 = vmatprep.subr.mxu0 0.0
        %1917 = vmatpush1.xpose.msra.mxu0 0.0
        %1918 = vmatprep.subr.mxu0 0.0
        %1919 = vmatpush1.xpose.msra.mxu0 0.0
        %1920 = vmatprep.subr.mxu0 0.0
        %1921 = vmatpush1.xpose.msra.mxu0 0.0
        %1922 = vmatprep.subr.mxu0 0.0
        %1923 = vmatpush1.xpose.msra.mxu0 0.0
        %1924 = vmatprep.mubr.f32.mxu0 0.0
        %1925 = vmatmul.mubr.f32.gmra.mrb[0].mxu0 %v1831
        %v1926 = vpop.f32.mrb[0].mxu0
        %v1927 = vadd.f32 %v1791, %v1926
        %v1928 = vpop.f32.mrb[0].mxu0
        %1929 = vmatprep.mubr.f32.mxu0 0.0
        %1930 = vmatmul.mubr.f32.gmra.mrb[0].mxu0 %v1834
        %v1931 = vpop.f32.mrb[0].mxu0
        %v1932 = vadd.f32 %v1792, %v1931
        %v1933 = vpop.f32.mrb[0].mxu0
        %1934 = vmatprep.mubr.f32.mxu0 0.0
        %1935 = vmatmul.mubr.f32.gmra.mrb[0].mxu0 %v1837
        %v1936 = vpop.f32.mrb[0].mxu0
        %v1937 = vadd.f32 %v1793, %v1936
        %v1938 = vpop.f32.mrb[0].mxu0
        %1939 = vmatprep.mubr.f32.mxu0 0.0
        %1940 = vmatmul.mubr.f32.gmra.mrb[0].mxu0 %v1840
        %v1941 = vpop.f32.mrb[0].mxu0
        %v1942 = vadd.f32 %v1794, %v1941
        %v1943 = vpop.f32.mrb[0].mxu0
        %1944 = vmatprep.mubr.f32.mxu0 0.0
        %1945 = vmatmul.mubr.f32.gmra.mrb[0].mxu0 %v1843
        %v1946 = vpop.f32.mrb[0].mxu0
        %v1947 = vadd.f32 %v1795, %v1946
        %v1948 = vpop.f32.mrb[0].mxu0
        %1949 = vmatprep.mubr.f32.mxu0 0.0
        %1950 = vmatmul.mubr.f32.gmra.mrb[0].mxu0 %v1846
        %v1951 = vpop.f32.mrb[0].mxu0
        %v1952 = vadd.f32 %v1796, %v1951
        %v1953 = vpop.f32.mrb[0].mxu0
        %1954 = vdwg.mxu0
        %vm1955 = vcmask 392192
        %v1956 = vsel %vm1955, %v1927, -inf
        %1957 = vmax.xlane.f32.xlu0 %v1956
        %v1958 = vpop.xlane.xlu0 %1957
        %v1959 = vsel %vm1955, %v1932, -inf
        %1960 = vmax.xlane.f32.xlu0 %v1959
        %v1961 = vpop.xlane.xlu0 %1960
        %v1962 = vsel %vm1955, %v1937, -inf
        %1963 = vmax.xlane.f32.xlu0 %v1962
        %v1964 = vpop.xlane.xlu0 %1963
        %v1965 = vsel %vm1955, %v1942, -inf
        %1966 = vmax.xlane.f32.xlu0 %v1965
        %v1967 = vpop.xlane.xlu0 %1966
        %v1968 = vsel %vm1955, %v1947, -inf
        %1969 = vmax.xlane.f32.xlu0 %v1968
        %v1970 = vpop.xlane.xlu0 %1969
        %v1971 = vsel %vm1955, %v1952, -inf
        %1972 = vmax.xlane.f32.xlu0 %v1971
        %v1973 = vpop.xlane.xlu0 %1972
        %v1974 = vsub.f32 %v1927, %v1958
        %v1975 = vsub.f32 %v1932, %v1961
        %v1976 = vsub.f32 %v1937, %v1964
        %v1977 = vsub.f32 %v1942, %v1967
        %v1978 = vsub.f32 %v1947, %v1970
        %v1979 = vsub.f32 %v1952, %v1973
        %v1980 = vmul.f32 %v1974, 1.442695
        %v1981 = vpow.pop %v1980
        %v1982 = vmul.f32 %v1975, 1.442695
        %v1983 = vpow.pop %v1982
        %v1984 = vmul.f32 %v1976, 1.442695
        %v1985 = vpow.pop %v1984
        %v1986 = vmul.f32 %v1977, 1.442695
        %v1987 = vpow.pop %v1986
        %v1988 = vmul.f32 %v1978, 1.442695
        %v1989 = vpow.pop %v1988
        %v1990 = vmul.f32 %v1979, 1.442695
        %v1991 = vpow.pop %v1990
        %v1992 = vsel %vm1955, %v1981, 0.0
        %1993 = vadd.xlane.f32.xlu0 %v1992
        %v1994 = vpop.xlane.xlu0 %1993
        %v1995 = vsel %vm1955, %v1983, 0.0
        %1996 = vadd.xlane.f32.xlu0 %v1995
        %v1997 = vpop.xlane.xlu0 %1996
        %v1998 = vsel %vm1955, %v1985, 0.0
        %1999 = vadd.xlane.f32.xlu0 %v1998
        %v2000 = vpop.xlane.xlu0 %1999
        %v2001 = vsel %vm1955, %v1987, 0.0
        %2002 = vadd.xlane.f32.xlu0 %v2001
        %v2003 = vpop.xlane.xlu0 %2002
        %v2004 = vsel %vm1955, %v1989, 0.0
        %2005 = vadd.xlane.f32.xlu0 %v2004
        %v2006 = vpop.xlane.xlu0 %2005
        %v2007 = vsel %vm1955, %v1991, 0.0
        %2008 = vadd.xlane.f32.xlu0 %v2007
        %v2009 = vpop.xlane.xlu0 %2008
        %v2010 = vrcp.pop %v1994
        %v2011 = vrcp.pop %v1997
        %v2012 = vrcp.pop %v2000
        %v2013 = vrcp.pop %v2003
        %v2014 = vrcp.pop %v2006
        %v2015 = vrcp.pop %v2009
        %v2016 = vmul.f32 %v1981, %v2010
        %v2017 = vmul.f32 %v1983, %v2011
        %v2018 = vmul.f32 %v1985, %v2012
        %v2019 = vmul.f32 %v1987, %v2013
        %v2020 = vmul.f32 %v1989, %v2014
        %v2021 = vmul.f32 %v1991, %v2015
        %v2023 = vsel %vm1955, %v2016, 0
        %v2026 = vsel %vm1955, %v2017, 0
        %v2029 = vsel %vm1955, %v2018, 0
        %v2032 = vsel %vm1955, %v2019, 0
        %v2035 = vsel %vm1955, %v2020, 0
        %v2038 = vsel %vm1955, %v2021, 0
        %2040 = vmatprep.subr.mxu0 0.0
        %2041 = vmatpush1.msra.mxu0 %v1765
        %2042 = vmatprep.subr.mxu0 0.0
        %2043 = vmatpush1.msra.mxu0 %v1769
        %2044 = vmatprep.subr.mxu0 0.0
        %2045 = vmatpush1.msra.mxu0 %v1775
        %2046 = vmatprep.subr.mxu0 0.0
        %2047 = vmatpush1.msra.mxu0 %v1779
        %2048 = vmatprep.subr.mxu0 0.0
        %2049 = vmatpush1.msra.mxu0 %v1785
        %2050 = vmatprep.subr.mxu0 0.0
        %2051 = vmatpush1.msra.mxu0 %v1789
        %2052 = vmatprep.subr.mxu0 0.0
        %2053 = vmatpush1.msra.mxu0 0.0
        %2054 = vmatprep.subr.mxu0 0.0
        %2055 = vmatpush1.msra.mxu0 0.0
        %2056 = vmatprep.subr.mxu0 0.0
        %2057 = vmatpush1.msra.mxu0 0.0
        %2058 = vmatprep.subr.mxu0 0.0
        %2059 = vmatpush1.msra.mxu0 0.0
        %2060 = vmatprep.subr.mxu0 0.0
        %2061 = vmatpush1.msra.mxu0 0.0
        %2062 = vmatprep.subr.mxu0 0.0
        %2063 = vmatpush1.msra.mxu0 0.0
        %2064 = vmatprep.subr.mxu0 0.0
        %2065 = vmatpush1.msra.mxu0 0.0
        %2066 = vmatprep.subr.mxu0 0.0
        %2067 = vmatpush1.msra.mxu0 0.0
        %2068 = vmatprep.subr.mxu0 0.0
        %2069 = vmatpush1.msra.mxu0 0.0
        %2070 = vmatprep.subr.mxu0 0.0
        %2071 = vmatpush1.msra.mxu0 0.0
        %2072 = vmatprep.subr.mxu0 0.0
        %2073 = vmatpush1.msra.mxu0 0.0
        %2074 = vmatprep.subr.mxu0 0.0
        %2075 = vmatpush1.msra.mxu0 0.0
        %2076 = vmatprep.subr.mxu0 0.0
        %2077 = vmatpush1.msra.mxu0 0.0
        %2078 = vmatprep.subr.mxu0 0.0
        %2079 = vmatpush1.msra.mxu0 0.0
        %2080 = vmatprep.subr.mxu0 0.0
        %2081 = vmatpush1.msra.mxu0 0.0
        %2082 = vmatprep.subr.mxu0 0.0
        %2083 = vmatpush1.msra.mxu0 0.0
        %2084 = vmatprep.subr.mxu0 0.0
        %2085 = vmatpush1.msra.mxu0 0.0
        %2086 = vmatprep.subr.mxu0 0.0
        %2087 = vmatpush1.msra.mxu0 0.0
        %2088 = vmatprep.subr.mxu0 0.0
        %2089 = vmatpush1.msra.mxu0 0.0
        %2090 = vmatprep.subr.mxu0 0.0
        %2091 = vmatpush1.msra.mxu0 0.0
        %2092 = vmatprep.subr.mxu0 0.0
        %2093 = vmatpush1.msra.mxu0 0.0
        %2094 = vmatprep.subr.mxu0 0.0
        %2095 = vmatpush1.msra.mxu0 0.0
        %2096 = vmatprep.subr.mxu0 0.0
        %2097 = vmatpush1.msra.mxu0 0.0
        %2098 = vmatprep.subr.mxu0 0.0
        %2099 = vmatpush1.msra.mxu0 0.0
        %2100 = vmatprep.subr.mxu0 0.0
        %2101 = vmatpush1.msra.mxu0 0.0
        %2102 = vmatprep.subr.mxu0 0.0
        %2103 = vmatpush1.msra.mxu0 0.0
        %2104 = vmatprep.mubr.f32.mxu0 0.0
        %2105 = vmatmul.mubr.f32.gmra.mrb[0].mxu0 %v2023
        %v2106 = vpop.f32.mrb[0].mxu0
        %v2107 = vadd.f32 0.0, %v2106
        %v2108 = vpop.f32.mrb[0].mxu0
        %2109 = vmatprep.mubr.f32.mxu0 0.0
        %2110 = vmatmul.mubr.f32.gmra.mrb[0].mxu0 %v2026
        %v2111 = vpop.f32.mrb[0].mxu0
        %v2112 = vadd.f32 0.0, %v2111
        %v2113 = vpop.f32.mrb[0].mxu0
        %2114 = vmatprep.mubr.f32.mxu0 0.0
        %2115 = vmatmul.mubr.f32.gmra.mrb[0].mxu0 %v2029
        %v2116 = vpop.f32.mrb[0].mxu0
        %v2117 = vadd.f32 0.0, %v2116
        %v2118 = vpop.f32.mrb[0].mxu0
        %2119 = vmatprep.mubr.f32.mxu0 0.0
        %2120 = vmatmul.mubr.f32.gmra.mrb[0].mxu0 %v2032
        %v2121 = vpop.f32.mrb[0].mxu0
        %v2122 = vadd.f32 0.0, %v2121
        %v2123 = vpop.f32.mrb[0].mxu0
        %2124 = vmatprep.mubr.f32.mxu0 0.0
        %2125 = vmatmul.mubr.f32.gmra.mrb[0].mxu0 %v2035
        %v2126 = vpop.f32.mrb[0].mxu0
        %v2127 = vadd.f32 0.0, %v2126
        %v2128 = vpop.f32.mrb[0].mxu0
        %2129 = vmatprep.mubr.f32.mxu0 0.0
        %2130 = vmatmul.mubr.f32.gmra.mrb[0].mxu0 %v2038
        %v2131 = vpop.f32.mrb[0].mxu0
        %v2132 = vadd.f32 0.0, %v2131
        %v2133 = vpop.f32.mrb[0].mxu0
        %2134 = vdwg.mxu0
        %v2135 = vpack.c.bf16 %v2112, %v2107
        %v2136 = vpack.c.bf16 %v2122, %v2117
        %v2137 = vpack.c.bf16 %v2132, %v2127
        %2138 = vrot.lane.b32.xlu0 %v1805, 112
        %v2139 = vpop.permute.xlu0 %2138
        %2140 = vrot.lane.b32.xlu0 %v1806, 112
        %v2141 = vpop.permute.xlu0 %2140
        %2142 = vrot.lane.b32.xlu0 %v1807, 112
        %v2143 = vpop.permute.xlu0 %2142
        %2144 = vrot.lane.b32.xlu0 %v1808, 112
        %v2145 = vpop.permute.xlu0 %2144
        %2146 = vrot.lane.b32.xlu0 %v1809, 112
        %v2147 = vpop.permute.xlu0 %2146
        %2148 = vrot.lane.b32.xlu0 %v1810, 112
        %v2149 = vpop.permute.xlu0 %2148
        %2150 = vrot.lane.b32.xlu0 %v1763, 48
        %v2151 = vpop.permute.xlu0 %2150
        %2152 = vrot.lane.b32.xlu0 %v1767, 48
        %v2153 = vpop.permute.xlu0 %2152
        %2154 = vrot.lane.b32.xlu0 %v1773, 48
        %v2155 = vpop.permute.xlu0 %2154
        %2156 = vrot.lane.b32.xlu0 %v1777, 48
        %v2157 = vpop.permute.xlu0 %2156
        %2158 = vrot.lane.b32.xlu0 %v1783, 48
        %v2159 = vpop.permute.xlu0 %2158
        %2160 = vrot.lane.b32.xlu0 %v1787, 48
        %v2161 = vpop.permute.xlu0 %2160
        %v2162 = vsel %vm1829, %v2139, 0
        %v2164 = vsel %vm1829, %v2141, 0
        %v2166 = vsel %vm1829, %v2143, 0
        %v2168 = vsel %vm1829, %v2145, 0
        %v2170 = vsel %vm1829, %v2147, 0
        %v2172 = vsel %vm1829, %v2149, 0
        %v2174 = vsel %vm1829, %v2151, 0
        %v2176 = vsel %vm1829, %v2153, 0
        %v2178 = vsel %vm1829, %v2155, 0
        %v2180 = vsel %vm1829, %v2157, 0
        %v2182 = vsel %vm1829, %v2159, 0
        %v2184 = vsel %vm1829, %v2161, 0
        %2186 = vmatprep.subr.mxu0 0.0
        %2187 = vmatpush1.xpose.msra.mxu0 %v2174
        %2188 = vmatprep.subr.mxu0 0.0
        %2189 = vmatpush1.xpose.msra.mxu0 %v2176
        %2190 = vmatprep.subr.mxu0 0.0
        %2191 = vmatpush1.xpose.msra.mxu0 %v2178
        %2192 = vmatprep.subr.mxu0 0.0
        %2193 = vmatpush1.xpose.msra.mxu0 %v2180
        %2194 = vmatprep.subr.mxu0 0.0
        %2195 = vmatpush1.xpose.msra.mxu0 %v2182
        %2196 = vmatprep.subr.mxu0 0.0
        %2197 = vmatpush1.xpose.msra.mxu0 %v2184
        %2198 = vmatprep.subr.mxu0 0.0
        %2199 = vmatpush1.xpose.msra.mxu0 0.0
        %2200 = vmatprep.subr.mxu0 0.0
        %2201 = vmatpush1.xpose.msra.mxu0 0.0
        %2202 = vmatprep.subr.mxu0 0.0
        %2203 = vmatpush1.xpose.msra.mxu0 0.0
        %2204 = vmatprep.subr.mxu0 0.0
        %2205 = vmatpush1.xpose.msra.mxu0 0.0
        %2206 = vmatprep.subr.mxu0 0.0
        %2207 = vmatpush1.xpose.msra.mxu0 0.0
        %2208 = vmatprep.subr.mxu0 0.0
        %2209 = vmatpush1.xpose.msra.mxu0 0.0
        %2210 = vmatprep.subr.mxu0 0.0
        %2211 = vmatpush1.xpose.msra.mxu0 0.0
        %2212 = vmatprep.subr.mxu0 0.0
        %2213 = vmatpush1.xpose.msra.mxu0 0.0
        %2214 = vmatprep.subr.mxu0 0.0
        %2215 = vmatpush1.xpose.msra.mxu0 0.0
        %2216 = vmatprep.subr.mxu0 0.0
        %2217 = vmatpush1.xpose.msra.mxu0 0.0
        %2218 = vmatprep.subr.mxu0 0.0
        %2219 = vmatpush1.xpose.msra.mxu0 0.0
        %2220 = vmatprep.subr.mxu0 0.0
        %2221 = vmatpush1.xpose.msra.mxu0 0.0
        %2222 = vmatprep.subr.mxu0 0.0
        %2223 = vmatpush1.xpose.msra.mxu0 0.0
        %2224 = vmatprep.subr.mxu0 0.0
        %2225 = vmatpush1.xpose.msra.mxu0 0.0
        %2226 = vmatprep.subr.mxu0 0.0
        %2227 = vmatpush1.xpose.msra.mxu0 0.0
        %2228 = vmatprep.subr.mxu0 0.0
        %2229 = vmatpush1.xpose.msra.mxu0 0.0
        %2230 = vmatprep.subr.mxu0 0.0
        %2231 = vmatpush1.xpose.msra.mxu0 0.0
        %2232 = vmatprep.subr.mxu0 0.0
        %2233 = vmatpush1.xpose.msra.mxu0 0.0
        %2234 = vmatprep.subr.mxu0 0.0
        %2235 = vmatpush1.xpose.msra.mxu0 0.0
        %2236 = vmatprep.subr.mxu0 0.0
        %2237 = vmatpush1.xpose.msra.mxu0 0.0
        %2238 = vmatprep.subr.mxu0 0.0
        %2239 = vmatpush1.xpose.msra.mxu0 0.0
        %2240 = vmatprep.subr.mxu0 0.0
        %2241 = vmatpush1.xpose.msra.mxu0 0.0
        %2242 = vmatprep.subr.mxu0 0.0
        %2243 = vmatpush1.xpose.msra.mxu0 0.0
        %2244 = vmatprep.subr.mxu0 0.0
        %2245 = vmatpush1.xpose.msra.mxu0 0.0
        %2246 = vmatprep.subr.mxu0 0.0
        %2247 = vmatpush1.xpose.msra.mxu0 0.0
        %2248 = vmatprep.subr.mxu0 0.0
        %2249 = vmatpush1.xpose.msra.mxu0 0.0
        %2250 = vmatprep.mubr.f32.mxu0 0.0
        %2251 = vmatmul.mubr.f32.gmra.mrb[0].mxu0 %v2162
        %v2252 = vpop.f32.mrb[0].mxu0
        %v2253 = vadd.f32 %v1791, %v2252
        %v2254 = vpop.f32.mrb[0].mxu0
        %2255 = vmatprep.mubr.f32.mxu0 0.0
        %2256 = vmatmul.mubr.f32.gmra.mrb[0].mxu0 %v2164
        %v2257 = vpop.f32.mrb[0].mxu0
        %v2258 = vadd.f32 %v1792, %v2257
        %v2259 = vpop.f32.mrb[0].mxu0
        %2260 = vmatprep.mubr.f32.mxu0 0.0
        %2261 = vmatmul.mubr.f32.gmra.mrb[0].mxu0 %v2166
        %v2262 = vpop.f32.mrb[0].mxu0
        %v2263 = vadd.f32 %v1793, %v2262
        %v2264 = vpop.f32.mrb[0].mxu0
        %2265 = vmatprep.mubr.f32.mxu0 0.0
        %2266 = vmatmul.mubr.f32.gmra.mrb[0].mxu0 %v2168
        %v2267 = vpop.f32.mrb[0].mxu0
        %v2268 = vadd.f32 %v1794, %v2267
        %v2269 = vpop.f32.mrb[0].mxu0
        %2270 = vmatprep.mubr.f32.mxu0 0.0
        %2271 = vmatmul.mubr.f32.gmra.mrb[0].mxu0 %v2170
        %v2272 = vpop.f32.mrb[0].mxu0
        %v2273 = vadd.f32 %v1795, %v2272
        %v2274 = vpop.f32.mrb[0].mxu0
        %2275 = vmatprep.mubr.f32.mxu0 0.0
        %2276 = vmatmul.mubr.f32.gmra.mrb[0].mxu0 %v2172
        %v2277 = vpop.f32.mrb[0].mxu0
        %v2278 = vadd.f32 %v1796, %v2277
        %v2279 = vpop.f32.mrb[0].mxu0
        %2280 = vdwg.mxu0
        %v2281 = vsel %vm1955, %v2253, -inf
        %2282 = vmax.xlane.f32.xlu0 %v2281
        %v2283 = vpop.xlane.xlu0 %2282
        %v2284 = vsel %vm1955, %v2258, -inf
        %2285 = vmax.xlane.f32.xlu0 %v2284
        %v2286 = vpop.xlane.xlu0 %2285
        %v2287 = vsel %vm1955, %v2263, -inf
        %2288 = vmax.xlane.f32.xlu0 %v2287
        %v2289 = vpop.xlane.xlu0 %2288
        %v2290 = vsel %vm1955, %v2268, -inf
        %2291 = vmax.xlane.f32.xlu0 %v2290
        %v2292 = vpop.xlane.xlu0 %2291
        %v2293 = vsel %vm1955, %v2273, -inf
        %2294 = vmax.xlane.f32.xlu0 %v2293
        %v2295 = vpop.xlane.xlu0 %2294
        %v2296 = vsel %vm1955, %v2278, -inf
        %2297 = vmax.xlane.f32.xlu0 %v2296
        %v2298 = vpop.xlane.xlu0 %2297
        %v2299 = vsub.f32 %v2253, %v2283
        %v2300 = vsub.f32 %v2258, %v2286
        %v2301 = vsub.f32 %v2263, %v2289
        %v2302 = vsub.f32 %v2268, %v2292
        %v2303 = vsub.f32 %v2273, %v2295
        %v2304 = vsub.f32 %v2278, %v2298
        %v2305 = vmul.f32 %v2299, 1.442695
        %v2306 = vpow.pop %v2305
        %v2307 = vmul.f32 %v2300, 1.442695
        %v2308 = vpow.pop %v2307
        %v2309 = vmul.f32 %v2301, 1.442695
        %v2310 = vpow.pop %v2309
        %v2311 = vmul.f32 %v2302, 1.442695
        %v2312 = vpow.pop %v2311
        %v2313 = vmul.f32 %v2303, 1.442695
        %v2314 = vpow.pop %v2313
        %v2315 = vmul.f32 %v2304, 1.442695
        %v2316 = vpow.pop %v2315
        %v2317 = vsel %vm1955, %v2306, 0.0
        %2318 = vadd.xlane.f32.xlu0 %v2317
        %v2319 = vpop.xlane.xlu0 %2318
        %v2320 = vsel %vm1955, %v2308, 0.0
        %2321 = vadd.xlane.f32.xlu0 %v2320
        %v2322 = vpop.xlane.xlu0 %2321
        %v2323 = vsel %vm1955, %v2310, 0.0
        %2324 = vadd.xlane.f32.xlu0 %v2323
        %v2325 = vpop.xlane.xlu0 %2324
        %v2326 = vsel %vm1955, %v2312, 0.0
        %2327 = vadd.xlane.f32.xlu0 %v2326
        %v2328 = vpop.xlane.xlu0 %2327
        %v2329 = vsel %vm1955, %v2314, 0.0
        %2330 = vadd.xlane.f32.xlu0 %v2329
        %v2331 = vpop.xlane.xlu0 %2330
        %v2332 = vsel %vm1955, %v2316, 0.0
        %2333 = vadd.xlane.f32.xlu0 %v2332
        %v2334 = vpop.xlane.xlu0 %2333
        %v2335 = vrcp.pop %v2319
        %v2336 = vrcp.pop %v2322
        %v2337 = vrcp.pop %v2325
        %v2338 = vrcp.pop %v2328
        %v2339 = vrcp.pop %v2331
        %v2340 = vrcp.pop %v2334
        %v2341 = vmul.f32 %v2306, %v2335
        %v2342 = vmul.f32 %v2308, %v2336
        %v2343 = vmul.f32 %v2310, %v2337
        %v2344 = vmul.f32 %v2312, %v2338
        %v2345 = vmul.f32 %v2314, %v2339
        %v2346 = vmul.f32 %v2316, %v2340
        %2353 = vrot.lane.b32.xlu0 %v1765, 112
        %v2354 = vpop.permute.xlu0 %2353
        %2355 = vrot.lane.b32.xlu0 %v1769, 112
        %v2356 = vpop.permute.xlu0 %2355
        %2357 = vrot.lane.b32.xlu0 %v1775, 112
        %v2358 = vpop.permute.xlu0 %2357
        %2359 = vrot.lane.b32.xlu0 %v1779, 112
        %v2360 = vpop.permute.xlu0 %2359
        %2361 = vrot.lane.b32.xlu0 %v1785, 112
        %v2362 = vpop.permute.xlu0 %2361
        %2363 = vrot.lane.b32.xlu0 %v1789, 112
        %v2364 = vpop.permute.xlu0 %2363
        %v2372 = vsel %vm1955, %v2341, 0
        %v2375 = vsel %vm1955, %v2342, 0
        %v2378 = vsel %vm1955, %v2343, 0
        %v2381 = vsel %vm1955, %v2344, 0
        %v2384 = vsel %vm1955, %v2345, 0
        %v2387 = vsel %vm1955, %v2346, 0
        %2389 = vmatprep.subr.mxu0 0.0
        %2390 = vmatpush1.msra.mxu0 %v2354
        %2391 = vmatprep.subr.mxu0 0.0
        %2392 = vmatpush1.msra.mxu0 %v2356
        %2393 = vmatprep.subr.mxu0 0.0
        %2394 = vmatpush1.msra.mxu0 %v2358
        %2395 = vmatprep.subr.mxu0 0.0
        %2396 = vmatpush1.msra.mxu0 %v2360
        %2397 = vmatprep.subr.mxu0 0.0
        %2398 = vmatpush1.msra.mxu0 %v2362
        %2399 = vmatprep.subr.mxu0 0.0
        %2400 = vmatpush1.msra.mxu0 %v2364
        %2401 = vmatprep.subr.mxu0 0.0
        %2402 = vmatpush1.msra.mxu0 0.0
        %2403 = vmatprep.subr.mxu0 0.0
        %2404 = vmatpush1.msra.mxu0 0.0
        %2405 = vmatprep.subr.mxu0 0.0
        %2406 = vmatpush1.msra.mxu0 0.0
        %2407 = vmatprep.subr.mxu0 0.0
        %2408 = vmatpush1.msra.mxu0 0.0
        %2409 = vmatprep.subr.mxu0 0.0
        %2410 = vmatpush1.msra.mxu0 0.0
        %2411 = vmatprep.subr.mxu0 0.0
        %2412 = vmatpush1.msra.mxu0 0.0
        %2413 = vmatprep.subr.mxu0 0.0
        %2414 = vmatpush1.msra.mxu0 0.0
        %2415 = vmatprep.subr.mxu0 0.0
        %2416 = vmatpush1.msra.mxu0 0.0
        %2417 = vmatprep.subr.mxu0 0.0
        %2418 = vmatpush1.msra.mxu0 0.0
        %2419 = vmatprep.subr.mxu0 0.0
        %2420 = vmatpush1.msra.mxu0 0.0
        %2421 = vmatprep.subr.mxu0 0.0
        %2422 = vmatpush1.msra.mxu0 0.0
        %2423 = vmatprep.subr.mxu0 0.0
        %2424 = vmatpush1.msra.mxu0 0.0
        %2425 = vmatprep.subr.mxu0 0.0
        %2426 = vmatpush1.msra.mxu0 0.0
        %2427 = vmatprep.subr.mxu0 0.0
        %2428 = vmatpush1.msra.mxu0 0.0
        %2429 = vmatprep.subr.mxu0 0.0
        %2430 = vmatpush1.msra.mxu0 0.0
        %2431 = vmatprep.subr.mxu0 0.0
        %2432 = vmatpush1.msra.mxu0 0.0
        %2433 = vmatprep.subr.mxu0 0.0
        %2434 = vmatpush1.msra.mxu0 0.0
        %2435 = vmatprep.subr.mxu0 0.0
        %2436 = vmatpush1.msra.mxu0 0.0
        %2437 = vmatprep.subr.mxu0 0.0
        %2438 = vmatpush1.msra.mxu0 0.0
        %2439 = vmatprep.subr.mxu0 0.0
        %2440 = vmatpush1.msra.mxu0 0.0
        %2441 = vmatprep.subr.mxu0 0.0
        %2442 = vmatpush1.msra.mxu0 0.0
        %2443 = vmatprep.subr.mxu0 0.0
        %2444 = vmatpush1.msra.mxu0 0.0
        %2445 = vmatprep.subr.mxu0 0.0
        %2446 = vmatpush1.msra.mxu0 0.0
        %2447 = vmatprep.subr.mxu0 0.0
        %2448 = vmatpush1.msra.mxu0 0.0
        %2449 = vmatprep.subr.mxu0 0.0
        %2450 = vmatpush1.msra.mxu0 0.0
        %2451 = vmatprep.subr.mxu0 0.0
        %2452 = vmatpush1.msra.mxu0 0.0
        %2453 = vmatprep.mubr.f32.mxu0 0.0
        %2454 = vmatmul.mubr.f32.gmra.mrb[0].mxu0 %v2372
        %v2455 = vpop.f32.mrb[0].mxu0
        %v2456 = vadd.f32 0.0, %v2455
        %v2457 = vpop.f32.mrb[0].mxu0
        %2458 = vmatprep.mubr.f32.mxu0 0.0
        %2459 = vmatmul.mubr.f32.gmra.mrb[0].mxu0 %v2375
        %v2460 = vpop.f32.mrb[0].mxu0
        %v2461 = vadd.f32 0.0, %v2460
        %v2462 = vpop.f32.mrb[0].mxu0
        %2463 = vmatprep.mubr.f32.mxu0 0.0
        %2464 = vmatmul.mubr.f32.gmra.mrb[0].mxu0 %v2378
        %v2465 = vpop.f32.mrb[0].mxu0
        %v2466 = vadd.f32 0.0, %v2465
        %v2467 = vpop.f32.mrb[0].mxu0
        %2468 = vmatprep.mubr.f32.mxu0 0.0
        %2469 = vmatmul.mubr.f32.gmra.mrb[0].mxu0 %v2381
        %v2470 = vpop.f32.mrb[0].mxu0
        %v2471 = vadd.f32 0.0, %v2470
        %v2472 = vpop.f32.mrb[0].mxu0
        %2473 = vmatprep.mubr.f32.mxu0 0.0
        %2474 = vmatmul.mubr.f32.gmra.mrb[0].mxu0 %v2384
        %v2475 = vpop.f32.mrb[0].mxu0
        %v2476 = vadd.f32 0.0, %v2475
        %v2477 = vpop.f32.mrb[0].mxu0
        %2478 = vmatprep.mubr.f32.mxu0 0.0
        %2479 = vmatmul.mubr.f32.gmra.mrb[0].mxu0 %v2387
        %v2480 = vpop.f32.mrb[0].mxu0
        %v2481 = vadd.f32 0.0, %v2480
        %v2482 = vpop.f32.mrb[0].mxu0
        %2483 = vdwg.mxu0
        %v2484 = vpack.c.bf16 %v2461, %v2456
        %v2485 = vpack.c.bf16 %v2471, %v2466
        %v2486 = vpack.c.bf16 %v2481, %v2476
        %v2489 = vunpack.c.l.b16 %v1799
        %v2490 = vunpack.c.l.b16 %v1800
        %v2491 = vpack.c.b16 %v2490, %v2489
        %v2494 = vsel %vm1829, %v2484, 0
        %v2497 = vsel %vm1829, %v2485, 0
        %v2500 = vsel %vm1829, %v2486, 0
        %2502 = vmatprep.subr.bf16.mxu0 0
        %2503 = vmatpush1.bf16.msra.mxu0 %v2491
        %2504 = vmatprep.subr.bf16.mxu0 0
        %2505 = vmatpush1.bf16.msra.mxu0 0
        %2506 = vmatprep.subr.bf16.mxu0 0
        %2507 = vmatpush1.bf16.msra.mxu0 0
        %2508 = vmatprep.subr.bf16.mxu0 0
        %2509 = vmatpush1.bf16.msra.mxu0 0
        %2510 = vmatprep.subr.bf16.mxu0 0
        %2511 = vmatpush1.bf16.msra.mxu0 0
        %2512 = vmatprep.subr.bf16.mxu0 0
        %2513 = vmatpush1.bf16.msra.mxu0 0
        %2514 = vmatprep.subr.bf16.mxu0 0
        %2515 = vmatpush1.bf16.msra.mxu0 0
        %2516 = vmatprep.subr.bf16.mxu0 0
        %2517 = vmatpush1.bf16.msra.mxu0 0
        %2518 = vmatprep.subr.bf16.mxu0 0
        %2519 = vmatpush1.bf16.msra.mxu0 0
        %2520 = vmatprep.subr.bf16.mxu0 0
        %2521 = vmatpush1.bf16.msra.mxu0 0
        %2522 = vmatprep.subr.bf16.mxu0 0
        %2523 = vmatpush1.bf16.msra.mxu0 0
        %2524 = vmatprep.subr.bf16.mxu0 0
        %2525 = vmatpush1.bf16.msra.mxu0 0
        %2526 = vmatprep.subr.bf16.mxu0 0
        %2527 = vmatpush1.bf16.msra.mxu0 0
        %2528 = vmatprep.subr.bf16.mxu0 0
        %2529 = vmatpush1.bf16.msra.mxu0 0
        %2530 = vmatprep.subr.bf16.mxu0 0
        %2531 = vmatpush1.bf16.msra.mxu0 0
        %2532 = vmatprep.subr.bf16.mxu0 0
        %2533 = vmatpush1.bf16.msra.mxu0 0
        %2534 = vmatprep.mubr.bf16.mxu0 0
        %2535 = vmatmul.mubr.bf16.gmra.mrb[0].mxu0 %v2494
        %v2536 = vpop.f32.mrb[0].mxu0
        %v2537 = vadd.f32 0.0, %v2536
        %v2538 = vpop.f32.mrb[0].mxu0
        %v2539 = vpop.f32.mrb[0].mxu0
        %v2540 = vadd.f32 0.0, %v2539
        %v2541 = vpop.f32.mrb[0].mxu0
        %2542 = vmatprep.mubr.bf16.mxu0 0
        %2543 = vmatmul.mubr.bf16.gmra.mrb[0].mxu0 %v2497
        %v2544 = vpop.f32.mrb[0].mxu0
        %v2545 = vadd.f32 0.0, %v2544
        %v2546 = vpop.f32.mrb[0].mxu0
        %v2547 = vpop.f32.mrb[0].mxu0
        %v2548 = vadd.f32 0.0, %v2547
        %v2549 = vpop.f32.mrb[0].mxu0
        %2550 = vmatprep.mubr.bf16.mxu0 0
        %2551 = vmatmul.mubr.bf16.gmra.mrb[0].mxu0 %v2500
        %v2552 = vpop.f32.mrb[0].mxu0
        %v2553 = vadd.f32 0.0, %v2552
        %v2554 = vpop.f32.mrb[0].mxu0
        %v2555 = vpop.f32.mrb[0].mxu0
        %v2556 = vadd.f32 0.0, %v2555
        %v2557 = vpop.f32.mrb[0].mxu0
        %2558 = vdwg.mxu0
        %v2561 = vunpack.c.l.b16 %v1797
        %v2562 = vunpack.c.l.b16 %v1798
        %v2563 = vpack.c.b16 %v2562, %v2561
        %v2566 = vsel %vm1829, %v2135, 0
        %v2569 = vsel %vm1829, %v2136, 0
        %v2572 = vsel %vm1829, %v2137, 0
        %2574 = vmatprep.subr.bf16.mxu0 0
        %2575 = vmatpush1.bf16.msra.mxu0 %v2563
        %2576 = vmatprep.subr.bf16.mxu0 0
        %2577 = vmatpush1.bf16.msra.mxu0 0
        %2578 = vmatprep.subr.bf16.mxu0 0
        %2579 = vmatpush1.bf16.msra.mxu0 0
        %2580 = vmatprep.subr.bf16.mxu0 0
        %2581 = vmatpush1.bf16.msra.mxu0 0
        %2582 = vmatprep.subr.bf16.mxu0 0
        %2583 = vmatpush1.bf16.msra.mxu0 0
        %2584 = vmatprep.subr.bf16.mxu0 0
        %2585 = vmatpush1.bf16.msra.mxu0 0
        %2586 = vmatprep.subr.bf16.mxu0 0
        %2587 = vmatpush1.bf16.msra.mxu0 0
        %2588 = vmatprep.subr.bf16.mxu0 0
        %2589 = vmatpush1.bf16.msra.mxu0 0
        %2590 = vmatprep.subr.bf16.mxu0 0
        %2591 = vmatpush1.bf16.msra.mxu0 0
        %2592 = vmatprep.subr.bf16.mxu0 0
        %2593 = vmatpush1.bf16.msra.mxu0 0
        %2594 = vmatprep.subr.bf16.mxu0 0
        %2595 = vmatpush1.bf16.msra.mxu0 0
        %2596 = vmatprep.subr.bf16.mxu0 0
        %2597 = vmatpush1.bf16.msra.mxu0 0
        %2598 = vmatprep.subr.bf16.mxu0 0
        %2599 = vmatpush1.bf16.msra.mxu0 0
        %2600 = vmatprep.subr.bf16.mxu0 0
        %2601 = vmatpush1.bf16.msra.mxu0 0
        %2602 = vmatprep.subr.bf16.mxu0 0
        %2603 = vmatpush1.bf16.msra.mxu0 0
        %2604 = vmatprep.subr.bf16.mxu0 0
        %2605 = vmatpush1.bf16.msra.mxu0 0
        %2606 = vmatprep.mubr.bf16.mxu0 0
        %2607 = vmatmul.mubr.bf16.gmra.mrb[0].mxu0 %v2566
        %v2608 = vpop.f32.mrb[0].mxu0
        %v2609 = vadd.f32 %v2537, %v2608
        %v2610 = vpop.f32.mrb[0].mxu0
        %v2611 = vpop.f32.mrb[0].mxu0
        %v2612 = vadd.f32 %v2540, %v2611
        %v2613 = vpop.f32.mrb[0].mxu0
        %2614 = vmatprep.mubr.bf16.mxu0 0
        %2615 = vmatmul.mubr.bf16.gmra.mrb[0].mxu0 %v2569
        %v2616 = vpop.f32.mrb[0].mxu0
        %v2617 = vadd.f32 %v2545, %v2616
        %v2618 = vpop.f32.mrb[0].mxu0
        %v2619 = vpop.f32.mrb[0].mxu0
        %v2620 = vadd.f32 %v2548, %v2619
        %v2621 = vpop.f32.mrb[0].mxu0
        %2622 = vmatprep.mubr.bf16.mxu0 0
        %2623 = vmatmul.mubr.bf16.gmra.mrb[0].mxu0 %v2572
        %v2624 = vpop.f32.mrb[0].mxu0
        %v2625 = vadd.f32 %v2553, %v2624
        %v2626 = vpop.f32.mrb[0].mxu0
        %v2627 = vpop.f32.mrb[0].mxu0
        %v2628 = vadd.f32 %v2556, %v2627
        %v2629 = vpop.f32.mrb[0].mxu0
        %2630 = vdwg.mxu0
        %2631 = vrot.lane.b32.xlu0 %v1805, 96
        %v2632 = vpop.permute.xlu0 %2631
        %2633 = vrot.lane.b32.xlu0 %v1806, 96
        %v2634 = vpop.permute.xlu0 %2633
        %2635 = vrot.lane.b32.xlu0 %v1807, 96
        %v2636 = vpop.permute.xlu0 %2635
        %2637 = vrot.lane.b32.xlu0 %v1808, 96
        %v2638 = vpop.permute.xlu0 %2637
        %2639 = vrot.lane.b32.xlu0 %v1809, 96
        %v2640 = vpop.permute.xlu0 %2639
        %2641 = vrot.lane.b32.xlu0 %v1810, 96
        %v2642 = vpop.permute.xlu0 %2641
        %2643 = vrot.lane.b32.xlu0 %v1763, 32
        %v2644 = vpop.permute.xlu0 %2643
        %2645 = vrot.lane.b32.xlu0 %v1767, 32
        %v2646 = vpop.permute.xlu0 %2645
        %2647 = vrot.lane.b32.xlu0 %v1773, 32
        %v2648 = vpop.permute.xlu0 %2647
        %2649 = vrot.lane.b32.xlu0 %v1777, 32
        %v2650 = vpop.permute.xlu0 %2649
        %2651 = vrot.lane.b32.xlu0 %v1783, 32
        %v2652 = vpop.permute.xlu0 %2651
        %2653 = vrot.lane.b32.xlu0 %v1787, 32
        %v2654 = vpop.permute.xlu0 %2653
        %v2655 = vsel %vm1829, %v2632, 0
        %v2657 = vsel %vm1829, %v2634, 0
        %v2659 = vsel %vm1829, %v2636, 0
        %v2661 = vsel %vm1829, %v2638, 0
        %v2663 = vsel %vm1829, %v2640, 0
        %v2665 = vsel %vm1829, %v2642, 0
        %v2667 = vsel %vm1829, %v2644, 0
        %v2669 = vsel %vm1829, %v2646, 0
        %v2671 = vsel %vm1829, %v2648, 0
        %v2673 = vsel %vm1829, %v2650, 0
        %v2675 = vsel %vm1829, %v2652, 0
        %v2677 = vsel %vm1829, %v2654, 0
        %2679 = vmatprep.subr.mxu0 0.0
        %2680 = vmatpush1.xpose.msra.mxu0 %v2667
        %2681 = vmatprep.subr.mxu0 0.0
        %2682 = vmatpush1.xpose.msra.mxu0 %v2669
        %2683 = vmatprep.subr.mxu0 0.0
        %2684 = vmatpush1.xpose.msra.mxu0 %v2671
        %2685 = vmatprep.subr.mxu0 0.0
        %2686 = vmatpush1.xpose.msra.mxu0 %v2673
        %2687 = vmatprep.subr.mxu0 0.0
        %2688 = vmatpush1.xpose.msra.mxu0 %v2675
        %2689 = vmatprep.subr.mxu0 0.0
        %2690 = vmatpush1.xpose.msra.mxu0 %v2677
        %2691 = vmatprep.subr.mxu0 0.0
        %2692 = vmatpush1.xpose.msra.mxu0 0.0
        %2693 = vmatprep.subr.mxu0 0.0
        %2694 = vmatpush1.xpose.msra.mxu0 0.0
        %2695 = vmatprep.subr.mxu0 0.0
        %2696 = vmatpush1.xpose.msra.mxu0 0.0
        %2697 = vmatprep.subr.mxu0 0.0
        %2698 = vmatpush1.xpose.msra.mxu0 0.0
        %2699 = vmatprep.subr.mxu0 0.0
        %2700 = vmatpush1.xpose.msra.mxu0 0.0
        %2701 = vmatprep.subr.mxu0 0.0
        %2702 = vmatpush1.xpose.msra.mxu0 0.0
        %2703 = vmatprep.subr.mxu0 0.0
        %2704 = vmatpush1.xpose.msra.mxu0 0.0
        %2705 = vmatprep.subr.mxu0 0.0
        %2706 = vmatpush1.xpose.msra.mxu0 0.0
        %2707 = vmatprep.subr.mxu0 0.0
        %2708 = vmatpush1.xpose.msra.mxu0 0.0
        %2709 = vmatprep.subr.mxu0 0.0
        %2710 = vmatpush1.xpose.msra.mxu0 0.0
        %2711 = vmatprep.subr.mxu0 0.0
        %2712 = vmatpush1.xpose.msra.mxu0 0.0
        %2713 = vmatprep.subr.mxu0 0.0
        %2714 = vmatpush1.xpose.msra.mxu0 0.0
        %2715 = vmatprep.subr.mxu0 0.0
        %2716 = vmatpush1.xpose.msra.mxu0 0.0
        %2717 = vmatprep.subr.mxu0 0.0
        %2718 = vmatpush1.xpose.msra.mxu0 0.0
        %2719 = vmatprep.subr.mxu0 0.0
        %2720 = vmatpush1.xpose.msra.mxu0 0.0
        %2721 = vmatprep.subr.mxu0 0.0
        %2722 = vmatpush1.xpose.msra.mxu0 0.0
        %2723 = vmatprep.subr.mxu0 0.0
        %2724 = vmatpush1.xpose.msra.mxu0 0.0
        %2725 = vmatprep.subr.mxu0 0.0
        %2726 = vmatpush1.xpose.msra.mxu0 0.0
        %2727 = vmatprep.subr.mxu0 0.0
        %2728 = vmatpush1.xpose.msra.mxu0 0.0
        %2729 = vmatprep.subr.mxu0 0.0
        %2730 = vmatpush1.xpose.msra.mxu0 0.0
        %2731 = vmatprep.subr.mxu0 0.0
        %2732 = vmatpush1.xpose.msra.mxu0 0.0
        %2733 = vmatprep.subr.mxu0 0.0
        %2734 = vmatpush1.xpose.msra.mxu0 0.0
        %2735 = vmatprep.subr.mxu0 0.0
        %2736 = vmatpush1.xpose.msra.mxu0 0.0
        %2737 = vmatprep.subr.mxu0 0.0
        %2738 = vmatpush1.xpose.msra.mxu0 0.0
        %2739 = vmatprep.subr.mxu0 0.0
        %2740 = vmatpush1.xpose.msra.mxu0 0.0
        %2741 = vmatprep.subr.mxu0 0.0
        %2742 = vmatpush1.xpose.msra.mxu0 0.0
        %2743 = vmatprep.mubr.f32.mxu0 0.0
        %2744 = vmatmul.mubr.f32.gmra.mrb[0].mxu0 %v2655
        %v2745 = vpop.f32.mrb[0].mxu0
        %v2746 = vadd.f32 %v1791, %v2745
        %v2747 = vpop.f32.mrb[0].mxu0
        %2748 = vmatprep.mubr.f32.mxu0 0.0
        %2749 = vmatmul.mubr.f32.gmra.mrb[0].mxu0 %v2657
        %v2750 = vpop.f32.mrb[0].mxu0
        %v2751 = vadd.f32 %v1792, %v2750
        %v2752 = vpop.f32.mrb[0].mxu0
        %2753 = vmatprep.mubr.f32.mxu0 0.0
        %2754 = vmatmul.mubr.f32.gmra.mrb[0].mxu0 %v2659
        %v2755 = vpop.f32.mrb[0].mxu0
        %v2756 = vadd.f32 %v1793, %v2755
        %v2757 = vpop.f32.mrb[0].mxu0
        %2758 = vmatprep.mubr.f32.mxu0 0.0
        %2759 = vmatmul.mubr.f32.gmra.mrb[0].mxu0 %v2661
        %v2760 = vpop.f32.mrb[0].mxu0
        %v2761 = vadd.f32 %v1794, %v2760
        %v2762 = vpop.f32.mrb[0].mxu0
        %2763 = vmatprep.mubr.f32.mxu0 0.0
        %2764 = vmatmul.mubr.f32.gmra.mrb[0].mxu0 %v2663
        %v2765 = vpop.f32.mrb[0].mxu0
        %v2766 = vadd.f32 %v1795, %v2765
        %v2767 = vpop.f32.mrb[0].mxu0
        %2768 = vmatprep.mubr.f32.mxu0 0.0
        %2769 = vmatmul.mubr.f32.gmra.mrb[0].mxu0 %v2665
        %v2770 = vpop.f32.mrb[0].mxu0
        %v2771 = vadd.f32 %v1796, %v2770
        %v2772 = vpop.f32.mrb[0].mxu0
        %2773 = vdwg.mxu0
        %v2774 = vsel %vm1955, %v2746, -inf
        %2775 = vmax.xlane.f32.xlu0 %v2774
        %v2776 = vpop.xlane.xlu0 %2775
        %v2777 = vsel %vm1955, %v2751, -inf
        %2778 = vmax.xlane.f32.xlu0 %v2777
        %v2779 = vpop.xlane.xlu0 %2778
        %v2780 = vsel %vm1955, %v2756, -inf
        %2781 = vmax.xlane.f32.xlu0 %v2780
        %v2782 = vpop.xlane.xlu0 %2781
        %v2783 = vsel %vm1955, %v2761, -inf
        %2784 = vmax.xlane.f32.xlu0 %v2783
        %v2785 = vpop.xlane.xlu0 %2784
        %v2786 = vsel %vm1955, %v2766, -inf
        %2787 = vmax.xlane.f32.xlu0 %v2786
        %v2788 = vpop.xlane.xlu0 %2787
        %v2789 = vsel %vm1955, %v2771, -inf
        %2790 = vmax.xlane.f32.xlu0 %v2789
        %v2791 = vpop.xlane.xlu0 %2790
        %v2792 = vsub.f32 %v2746, %v2776
        %v2793 = vsub.f32 %v2751, %v2779
        %v2794 = vsub.f32 %v2756, %v2782
        %v2795 = vsub.f32 %v2761, %v2785
        %v2796 = vsub.f32 %v2766, %v2788
        %v2797 = vsub.f32 %v2771, %v2791
        %v2798 = vmul.f32 %v2792, 1.442695
        %v2799 = vpow.pop %v2798
        %v2800 = vmul.f32 %v2793, 1.442695
        %v2801 = vpow.pop %v2800
        %v2802 = vmul.f32 %v2794, 1.442695
        %v2803 = vpow.pop %v2802
        %v2804 = vmul.f32 %v2795, 1.442695
        %v2805 = vpow.pop %v2804
        %v2806 = vmul.f32 %v2796, 1.442695
        %v2807 = vpow.pop %v2806
        %v2808 = vmul.f32 %v2797, 1.442695
        %v2809 = vpow.pop %v2808
        %v2810 = vsel %vm1955, %v2799, 0.0
        %2811 = vadd.xlane.f32.xlu0 %v2810
        %v2812 = vpop.xlane.xlu0 %2811
        %v2813 = vsel %vm1955, %v2801, 0.0
        %2814 = vadd.xlane.f32.xlu0 %v2813
        %v2815 = vpop.xlane.xlu0 %2814
        %v2816 = vsel %vm1955, %v2803, 0.0
        %2817 = vadd.xlane.f32.xlu0 %v2816
        %v2818 = vpop.xlane.xlu0 %2817
        %v2819 = vsel %vm1955, %v2805, 0.0
        %2820 = vadd.xlane.f32.xlu0 %v2819
        %v2821 = vpop.xlane.xlu0 %2820
        %v2822 = vsel %vm1955, %v2807, 0.0
        %2823 = vadd.xlane.f32.xlu0 %v2822
        %v2824 = vpop.xlane.xlu0 %2823
        %v2825 = vsel %vm1955, %v2809, 0.0
        %2826 = vadd.xlane.f32.xlu0 %v2825
        %v2827 = vpop.xlane.xlu0 %2826
        %v2828 = vrcp.pop %v2812
        %v2829 = vrcp.pop %v2815
        %v2830 = vrcp.pop %v2818
        %v2831 = vrcp.pop %v2821
        %v2832 = vrcp.pop %v2824
        %v2833 = vrcp.pop %v2827
        %v2834 = vmul.f32 %v2799, %v2828
        %v2835 = vmul.f32 %v2801, %v2829
        %v2836 = vmul.f32 %v2803, %v2830
        %v2837 = vmul.f32 %v2805, %v2831
        %v2838 = vmul.f32 %v2807, %v2832
        %v2839 = vmul.f32 %v2809, %v2833
        %2840 = vrot.lane.b32.xlu0 %v1765, 96
        %v2841 = vpop.permute.xlu0 %2840
        %2842 = vrot.lane.b32.xlu0 %v1769, 96
        %v2843 = vpop.permute.xlu0 %2842
        %2844 = vrot.lane.b32.xlu0 %v1775, 96
        %v2845 = vpop.permute.xlu0 %2844
        %2846 = vrot.lane.b32.xlu0 %v1779, 96
        %v2847 = vpop.permute.xlu0 %2846
        %2848 = vrot.lane.b32.xlu0 %v1785, 96
        %v2849 = vpop.permute.xlu0 %2848
        %2850 = vrot.lane.b32.xlu0 %v1789, 96
        %v2851 = vpop.permute.xlu0 %2850
        %v2859 = vsel %vm1955, %v2834, 0
        %v2862 = vsel %vm1955, %v2835, 0
        %v2865 = vsel %vm1955, %v2836, 0
        %v2868 = vsel %vm1955, %v2837, 0
        %v2871 = vsel %vm1955, %v2838, 0
        %v2874 = vsel %vm1955, %v2839, 0
        %2876 = vmatprep.subr.mxu0 0.0
        %2877 = vmatpush1.msra.mxu0 %v2841
        %2878 = vmatprep.subr.mxu0 0.0
        %2879 = vmatpush1.msra.mxu0 %v2843
        %2880 = vmatprep.subr.mxu0 0.0
        %2881 = vmatpush1.msra.mxu0 %v2845
        %2882 = vmatprep.subr.mxu0 0.0
        %2883 = vmatpush1.msra.mxu0 %v2847
        %2884 = vmatprep.subr.mxu0 0.0
        %2885 = vmatpush1.msra.mxu0 %v2849
        %2886 = vmatprep.subr.mxu0 0.0
        %2887 = vmatpush1.msra.mxu0 %v2851
        %2888 = vmatprep.subr.mxu0 0.0
        %2889 = vmatpush1.msra.mxu0 0.0
        %2890 = vmatprep.subr.mxu0 0.0
        %2891 = vmatpush1.msra.mxu0 0.0
        %2892 = vmatprep.subr.mxu0 0.0
        %2893 = vmatpush1.msra.mxu0 0.0
        %2894 = vmatprep.subr.mxu0 0.0
        %2895 = vmatpush1.msra.mxu0 0.0
        %2896 = vmatprep.subr.mxu0 0.0
        %2897 = vmatpush1.msra.mxu0 0.0
        %2898 = vmatprep.subr.mxu0 0.0
        %2899 = vmatpush1.msra.mxu0 0.0
        %2900 = vmatprep.subr.mxu0 0.0
        %2901 = vmatpush1.msra.mxu0 0.0
        %2902 = vmatprep.subr.mxu0 0.0
        %2903 = vmatpush1.msra.mxu0 0.0
        %2904 = vmatprep.subr.mxu0 0.0
        %2905 = vmatpush1.msra.mxu0 0.0
        %2906 = vmatprep.subr.mxu0 0.0
        %2907 = vmatpush1.msra.mxu0 0.0
        %2908 = vmatprep.subr.mxu0 0.0
        %2909 = vmatpush1.msra.mxu0 0.0
        %2910 = vmatprep.subr.mxu0 0.0
        %2911 = vmatpush1.msra.mxu0 0.0
        %2912 = vmatprep.subr.mxu0 0.0
        %2913 = vmatpush1.msra.mxu0 0.0
        %2914 = vmatprep.subr.mxu0 0.0
        %2915 = vmatpush1.msra.mxu0 0.0
        %2916 = vmatprep.subr.mxu0 0.0
        %2917 = vmatpush1.msra.mxu0 0.0
        %2918 = vmatprep.subr.mxu0 0.0
        %2919 = vmatpush1.msra.mxu0 0.0
        %2920 = vmatprep.subr.mxu0 0.0
        %2921 = vmatpush1.msra.mxu0 0.0
        %2922 = vmatprep.subr.mxu0 0.0
        %2923 = vmatpush1.msra.mxu0 0.0
        %2924 = vmatprep.subr.mxu0 0.0
        %2925 = vmatpush1.msra.mxu0 0.0
        %2926 = vmatprep.subr.mxu0 0.0
        %2927 = vmatpush1.msra.mxu0 0.0
        %2928 = vmatprep.subr.mxu0 0.0
        %2929 = vmatpush1.msra.mxu0 0.0
        %2930 = vmatprep.subr.mxu0 0.0
        %2931 = vmatpush1.msra.mxu0 0.0
        %2932 = vmatprep.subr.mxu0 0.0
        %2933 = vmatpush1.msra.mxu0 0.0
        %2934 = vmatprep.subr.mxu0 0.0
        %2935 = vmatpush1.msra.mxu0 0.0
        %2936 = vmatprep.subr.mxu0 0.0
        %2937 = vmatpush1.msra.mxu0 0.0
        %2938 = vmatprep.subr.mxu0 0.0
        %2939 = vmatpush1.msra.mxu0 0.0
        %2940 = vmatprep.mubr.f32.mxu0 0.0
        %2941 = vmatmul.mubr.f32.gmra.mrb[0].mxu0 %v2859
        %v2942 = vpop.f32.mrb[0].mxu0
        %v2943 = vadd.f32 0.0, %v2942
        %v2944 = vpop.f32.mrb[0].mxu0
        %2945 = vmatprep.mubr.f32.mxu0 0.0
        %2946 = vmatmul.mubr.f32.gmra.mrb[0].mxu0 %v2862
        %v2947 = vpop.f32.mrb[0].mxu0
        %v2948 = vadd.f32 0.0, %v2947
        %v2949 = vpop.f32.mrb[0].mxu0
        %2950 = vmatprep.mubr.f32.mxu0 0.0
        %2951 = vmatmul.mubr.f32.gmra.mrb[0].mxu0 %v2865
        %v2952 = vpop.f32.mrb[0].mxu0
        %v2953 = vadd.f32 0.0, %v2952
        %v2954 = vpop.f32.mrb[0].mxu0
        %2955 = vmatprep.mubr.f32.mxu0 0.0
        %2956 = vmatmul.mubr.f32.gmra.mrb[0].mxu0 %v2868
        %v2957 = vpop.f32.mrb[0].mxu0
        %v2958 = vadd.f32 0.0, %v2957
        %v2959 = vpop.f32.mrb[0].mxu0
        %2960 = vmatprep.mubr.f32.mxu0 0.0
        %2961 = vmatmul.mubr.f32.gmra.mrb[0].mxu0 %v2871
        %v2962 = vpop.f32.mrb[0].mxu0
        %v2963 = vadd.f32 0.0, %v2962
        %v2964 = vpop.f32.mrb[0].mxu0
        %2965 = vmatprep.mubr.f32.mxu0 0.0
        %2966 = vmatmul.mubr.f32.gmra.mrb[0].mxu0 %v2874
        %v2967 = vpop.f32.mrb[0].mxu0
        %v2968 = vadd.f32 0.0, %v2967
        %v2969 = vpop.f32.mrb[0].mxu0
        %2970 = vdwg.mxu0
        %v2971 = vpack.c.bf16 %v2948, %v2943
        %v2972 = vpack.c.bf16 %v2958, %v2953
        %v2973 = vpack.c.bf16 %v2968, %v2963
        %v2976 = vunpack.c.l.b16 %v1801
        %v2977 = vunpack.c.l.b16 %v1802
        %v2978 = vpack.c.b16 %v2977, %v2976
        %v2981 = vsel %vm1829, %v2971, 0
        %v2984 = vsel %vm1829, %v2972, 0
        %v2987 = vsel %vm1829, %v2973, 0
        %2989 = vmatprep.subr.bf16.mxu0 0
        %2990 = vmatpush1.bf16.msra.mxu0 %v2978
        %2991 = vmatprep.subr.bf16.mxu0 0
        %2992 = vmatpush1.bf16.msra.mxu0 0
        %2993 = vmatprep.subr.bf16.mxu0 0
        %2994 = vmatpush1.bf16.msra.mxu0 0
        %2995 = vmatprep.subr.bf16.mxu0 0
        %2996 = vmatpush1.bf16.msra.mxu0 0
        %2997 = vmatprep.subr.bf16.mxu0 0
        %2998 = vmatpush1.bf16.msra.mxu0 0
        %2999 = vmatprep.subr.bf16.mxu0 0
        %3000 = vmatpush1.bf16.msra.mxu0 0
        %3001 = vmatprep.subr.bf16.mxu0 0
        %3002 = vmatpush1.bf16.msra.mxu0 0
        %3003 = vmatprep.subr.bf16.mxu0 0
        %3004 = vmatpush1.bf16.msra.mxu0 0
        %3005 = vmatprep.subr.bf16.mxu0 0
        %3006 = vmatpush1.bf16.msra.mxu0 0
        %3007 = vmatprep.subr.bf16.mxu0 0
        %3008 = vmatpush1.bf16.msra.mxu0 0
        %3009 = vmatprep.subr.bf16.mxu0 0
        %3010 = vmatpush1.bf16.msra.mxu0 0
        %3011 = vmatprep.subr.bf16.mxu0 0
        %3012 = vmatpush1.bf16.msra.mxu0 0
        %3013 = vmatprep.subr.bf16.mxu0 0
        %3014 = vmatpush1.bf16.msra.mxu0 0
        %3015 = vmatprep.subr.bf16.mxu0 0
        %3016 = vmatpush1.bf16.msra.mxu0 0
        %3017 = vmatprep.subr.bf16.mxu0 0
        %3018 = vmatpush1.bf16.msra.mxu0 0
        %3019 = vmatprep.subr.bf16.mxu0 0
        %3020 = vmatpush1.bf16.msra.mxu0 0
        %3021 = vmatprep.mubr.bf16.mxu0 0
        %3022 = vmatmul.mubr.bf16.gmra.mrb[0].mxu0 %v2981
        %v3023 = vpop.f32.mrb[0].mxu0
        %v3024 = vadd.f32 0.0, %v3023
        %v3025 = vpop.f32.mrb[0].mxu0
        %v3026 = vpop.f32.mrb[0].mxu0
        %v3027 = vadd.f32 0.0, %v3026
        %v3028 = vpop.f32.mrb[0].mxu0
        %3029 = vmatprep.mubr.bf16.mxu0 0
        %3030 = vmatmul.mubr.bf16.gmra.mrb[0].mxu0 %v2984
        %v3031 = vpop.f32.mrb[0].mxu0
        %v3032 = vadd.f32 0.0, %v3031
        %v3033 = vpop.f32.mrb[0].mxu0
        %v3034 = vpop.f32.mrb[0].mxu0
        %v3035 = vadd.f32 0.0, %v3034
        %v3036 = vpop.f32.mrb[0].mxu0
        %3037 = vmatprep.mubr.bf16.mxu0 0
        %3038 = vmatmul.mubr.bf16.gmra.mrb[0].mxu0 %v2987
        %v3039 = vpop.f32.mrb[0].mxu0
        %v3040 = vadd.f32 0.0, %v3039
        %v3041 = vpop.f32.mrb[0].mxu0
        %v3042 = vpop.f32.mrb[0].mxu0
        %v3043 = vadd.f32 0.0, %v3042
        %v3044 = vpop.f32.mrb[0].mxu0
        %3045 = vdwg.mxu0
        %v3046 = vadd.f32 %v2609, %v3024
        %v3047 = vadd.f32 %v2612, %v3027
        %v3048 = vadd.f32 %v2617, %v3032
        %v3049 = vadd.f32 %v2620, %v3035
        %v3050 = vadd.f32 %v2625, %v3040
        %v3051 = vadd.f32 %v2628, %v3043
        %3052 = vrot.lane.b32.xlu0 %v1805, 80
        %v3053 = vpop.permute.xlu0 %3052
        %3054 = vrot.lane.b32.xlu0 %v1806, 80
        %v3055 = vpop.permute.xlu0 %3054
        %3056 = vrot.lane.b32.xlu0 %v1807, 80
        %v3057 = vpop.permute.xlu0 %3056
        %3058 = vrot.lane.b32.xlu0 %v1808, 80
        %v3059 = vpop.permute.xlu0 %3058
        %3060 = vrot.lane.b32.xlu0 %v1809, 80
        %v3061 = vpop.permute.xlu0 %3060
        %3062 = vrot.lane.b32.xlu0 %v1810, 80
        %v3063 = vpop.permute.xlu0 %3062
        %3064 = vrot.lane.b32.xlu0 %v1763, 16
        %v3065 = vpop.permute.xlu0 %3064
        %3066 = vrot.lane.b32.xlu0 %v1767, 16
        %v3067 = vpop.permute.xlu0 %3066
        %3068 = vrot.lane.b32.xlu0 %v1773, 16
        %v3069 = vpop.permute.xlu0 %3068
        %3070 = vrot.lane.b32.xlu0 %v1777, 16
        %v3071 = vpop.permute.xlu0 %3070
        %3072 = vrot.lane.b32.xlu0 %v1783, 16
        %v3073 = vpop.permute.xlu0 %3072
        %3074 = vrot.lane.b32.xlu0 %v1787, 16
        %v3075 = vpop.permute.xlu0 %3074
        %v3076 = vsel %vm1829, %v3053, 0
        %v3078 = vsel %vm1829, %v3055, 0
        %v3080 = vsel %vm1829, %v3057, 0
        %v3082 = vsel %vm1829, %v3059, 0
        %v3084 = vsel %vm1829, %v3061, 0
        %v3086 = vsel %vm1829, %v3063, 0
        %v3088 = vsel %vm1829, %v3065, 0
        %v3090 = vsel %vm1829, %v3067, 0
        %v3092 = vsel %vm1829, %v3069, 0
        %v3094 = vsel %vm1829, %v3071, 0
        %v3096 = vsel %vm1829, %v3073, 0
        %v3098 = vsel %vm1829, %v3075, 0
        %3100 = vmatprep.subr.mxu0 0.0
        %3101 = vmatpush1.xpose.msra.mxu0 %v3088
        %3102 = vmatprep.subr.mxu0 0.0
        %3103 = vmatpush1.xpose.msra.mxu0 %v3090
        %3104 = vmatprep.subr.mxu0 0.0
        %3105 = vmatpush1.xpose.msra.mxu0 %v3092
        %3106 = vmatprep.subr.mxu0 0.0
        %3107 = vmatpush1.xpose.msra.mxu0 %v3094
        %3108 = vmatprep.subr.mxu0 0.0
        %3109 = vmatpush1.xpose.msra.mxu0 %v3096
        %3110 = vmatprep.subr.mxu0 0.0
        %3111 = vmatpush1.xpose.msra.mxu0 %v3098
        %3112 = vmatprep.subr.mxu0 0.0
        %3113 = vmatpush1.xpose.msra.mxu0 0.0
        %3114 = vmatprep.subr.mxu0 0.0
        %3115 = vmatpush1.xpose.msra.mxu0 0.0
        %3116 = vmatprep.subr.mxu0 0.0
        %3117 = vmatpush1.xpose.msra.mxu0 0.0
        %3118 = vmatprep.subr.mxu0 0.0
        %3119 = vmatpush1.xpose.msra.mxu0 0.0
        %3120 = vmatprep.subr.mxu0 0.0
        %3121 = vmatpush1.xpose.msra.mxu0 0.0
        %3122 = vmatprep.subr.mxu0 0.0
        %3123 = vmatpush1.xpose.msra.mxu0 0.0
        %3124 = vmatprep.subr.mxu0 0.0
        %3125 = vmatpush1.xpose.msra.mxu0 0.0
        %3126 = vmatprep.subr.mxu0 0.0
        %3127 = vmatpush1.xpose.msra.mxu0 0.0
        %3128 = vmatprep.subr.mxu0 0.0
        %3129 = vmatpush1.xpose.msra.mxu0 0.0
        %3130 = vmatprep.subr.mxu0 0.0
        %3131 = vmatpush1.xpose.msra.mxu0 0.0
        %3132 = vmatprep.subr.mxu0 0.0
        %3133 = vmatpush1.xpose.msra.mxu0 0.0
        %3134 = vmatprep.subr.mxu0 0.0
        %3135 = vmatpush1.xpose.msra.mxu0 0.0
        %3136 = vmatprep.subr.mxu0 0.0
        %3137 = vmatpush1.xpose.msra.mxu0 0.0
        %3138 = vmatprep.subr.mxu0 0.0
        %3139 = vmatpush1.xpose.msra.mxu0 0.0
        %3140 = vmatprep.subr.mxu0 0.0
        %3141 = vmatpush1.xpose.msra.mxu0 0.0
        %3142 = vmatprep.subr.mxu0 0.0
        %3143 = vmatpush1.xpose.msra.mxu0 0.0
        %3144 = vmatprep.subr.mxu0 0.0
        %3145 = vmatpush1.xpose.msra.mxu0 0.0
        %3146 = vmatprep.subr.mxu0 0.0
        %3147 = vmatpush1.xpose.msra.mxu0 0.0
        %3148 = vmatprep.subr.mxu0 0.0
        %3149 = vmatpush1.xpose.msra.mxu0 0.0
        %3150 = vmatprep.subr.mxu0 0.0
        %3151 = vmatpush1.xpose.msra.mxu0 0.0
        %3152 = vmatprep.subr.mxu0 0.0
        %3153 = vmatpush1.xpose.msra.mxu0 0.0
        %3154 = vmatprep.subr.mxu0 0.0
        %3155 = vmatpush1.xpose.msra.mxu0 0.0
        %3156 = vmatprep.subr.mxu0 0.0
        %3157 = vmatpush1.xpose.msra.mxu0 0.0
        %3158 = vmatprep.subr.mxu0 0.0
        %3159 = vmatpush1.xpose.msra.mxu0 0.0
        %3160 = vmatprep.subr.mxu0 0.0
        %3161 = vmatpush1.xpose.msra.mxu0 0.0
        %3162 = vmatprep.subr.mxu0 0.0
        %3163 = vmatpush1.xpose.msra.mxu0 0.0
        %3164 = vmatprep.mubr.f32.mxu0 0.0
        %3165 = vmatmul.mubr.f32.gmra.mrb[0].mxu0 %v3076
        %v3166 = vpop.f32.mrb[0].mxu0
        %v3167 = vadd.f32 %v1791, %v3166
        %v3168 = vpop.f32.mrb[0].mxu0
        %3169 = vmatprep.mubr.f32.mxu0 0.0
        %3170 = vmatmul.mubr.f32.gmra.mrb[0].mxu0 %v3078
        %v3171 = vpop.f32.mrb[0].mxu0
        %v3172 = vadd.f32 %v1792, %v3171
        %v3173 = vpop.f32.mrb[0].mxu0
        %3174 = vmatprep.mubr.f32.mxu0 0.0
        %3175 = vmatmul.mubr.f32.gmra.mrb[0].mxu0 %v3080
        %v3176 = vpop.f32.mrb[0].mxu0
        %v3177 = vadd.f32 %v1793, %v3176
        %v3178 = vpop.f32.mrb[0].mxu0
        %3179 = vmatprep.mubr.f32.mxu0 0.0
        %3180 = vmatmul.mubr.f32.gmra.mrb[0].mxu0 %v3082
        %v3181 = vpop.f32.mrb[0].mxu0
        %v3182 = vadd.f32 %v1794, %v3181
        %v3183 = vpop.f32.mrb[0].mxu0
        %3184 = vmatprep.mubr.f32.mxu0 0.0
        %3185 = vmatmul.mubr.f32.gmra.mrb[0].mxu0 %v3084
        %v3186 = vpop.f32.mrb[0].mxu0
        %v3187 = vadd.f32 %v1795, %v3186
        %v3188 = vpop.f32.mrb[0].mxu0
        %3189 = vmatprep.mubr.f32.mxu0 0.0
        %3190 = vmatmul.mubr.f32.gmra.mrb[0].mxu0 %v3086
        %v3191 = vpop.f32.mrb[0].mxu0
        %v3192 = vadd.f32 %v1796, %v3191
        %v3193 = vpop.f32.mrb[0].mxu0
        %3194 = vdwg.mxu0
        %v3195 = vsel %vm1955, %v3167, -inf
        %3196 = vmax.xlane.f32.xlu0 %v3195
        %v3197 = vpop.xlane.xlu0 %3196
        %v3198 = vsel %vm1955, %v3172, -inf
        %3199 = vmax.xlane.f32.xlu0 %v3198
        %v3200 = vpop.xlane.xlu0 %3199
        %v3201 = vsel %vm1955, %v3177, -inf
        %3202 = vmax.xlane.f32.xlu0 %v3201
        %v3203 = vpop.xlane.xlu0 %3202
        %v3204 = vsel %vm1955, %v3182, -inf
        %3205 = vmax.xlane.f32.xlu0 %v3204
        %v3206 = vpop.xlane.xlu0 %3205
        %v3207 = vsel %vm1955, %v3187, -inf
        %3208 = vmax.xlane.f32.xlu0 %v3207
        %v3209 = vpop.xlane.xlu0 %3208
        %v3210 = vsel %vm1955, %v3192, -inf
        %3211 = vmax.xlane.f32.xlu0 %v3210
        %v3212 = vpop.xlane.xlu0 %3211
        %v3213 = vsub.f32 %v3167, %v3197
        %v3214 = vsub.f32 %v3172, %v3200
        %v3215 = vsub.f32 %v3177, %v3203
        %v3216 = vsub.f32 %v3182, %v3206
        %v3217 = vsub.f32 %v3187, %v3209
        %v3218 = vsub.f32 %v3192, %v3212
        %v3219 = vmul.f32 %v3213, 1.442695
        %v3220 = vpow.pop %v3219
        %v3221 = vmul.f32 %v3214, 1.442695
        %v3222 = vpow.pop %v3221
        %v3223 = vmul.f32 %v3215, 1.442695
        %v3224 = vpow.pop %v3223
        %v3225 = vmul.f32 %v3216, 1.442695
        %v3226 = vpow.pop %v3225
        %v3227 = vmul.f32 %v3217, 1.442695
        %v3228 = vpow.pop %v3227
        %v3229 = vmul.f32 %v3218, 1.442695
        %v3230 = vpow.pop %v3229
        %v3231 = vsel %vm1955, %v3220, 0.0
        %3232 = vadd.xlane.f32.xlu0 %v3231
        %v3233 = vpop.xlane.xlu0 %3232
        %v3234 = vsel %vm1955, %v3222, 0.0
        %3235 = vadd.xlane.f32.xlu0 %v3234
        %v3236 = vpop.xlane.xlu0 %3235
        %v3237 = vsel %vm1955, %v3224, 0.0
        %3238 = vadd.xlane.f32.xlu0 %v3237
        %v3239 = vpop.xlane.xlu0 %3238
        %v3240 = vsel %vm1955, %v3226, 0.0
        %3241 = vadd.xlane.f32.xlu0 %v3240
        %v3242 = vpop.xlane.xlu0 %3241
        %v3243 = vsel %vm1955, %v3228, 0.0
        %3244 = vadd.xlane.f32.xlu0 %v3243
        %v3245 = vpop.xlane.xlu0 %3244
        %v3246 = vsel %vm1955, %v3230, 0.0
        %3247 = vadd.xlane.f32.xlu0 %v3246
        %v3248 = vpop.xlane.xlu0 %3247
        %v3249 = vrcp.pop %v3233
        %v3250 = vrcp.pop %v3236
        %v3251 = vrcp.pop %v3239
        %v3252 = vrcp.pop %v3242
        %v3253 = vrcp.pop %v3245
        %v3254 = vrcp.pop %v3248
        %v3255 = vmul.f32 %v3220, %v3249
        %v3256 = vmul.f32 %v3222, %v3250
        %v3257 = vmul.f32 %v3224, %v3251
        %v3258 = vmul.f32 %v3226, %v3252
        %v3259 = vmul.f32 %v3228, %v3253
        %v3260 = vmul.f32 %v3230, %v3254
        %3261 = vrot.lane.b32.xlu0 %v1765, 80
        %v3262 = vpop.permute.xlu0 %3261
        %3263 = vrot.lane.b32.xlu0 %v1769, 80
        %v3264 = vpop.permute.xlu0 %3263
        %3265 = vrot.lane.b32.xlu0 %v1775, 80
        %v3266 = vpop.permute.xlu0 %3265
        %3267 = vrot.lane.b32.xlu0 %v1779, 80
        %v3268 = vpop.permute.xlu0 %3267
        %3269 = vrot.lane.b32.xlu0 %v1785, 80
        %v3270 = vpop.permute.xlu0 %3269
        %3271 = vrot.lane.b32.xlu0 %v1789, 80
        %v3272 = vpop.permute.xlu0 %3271
        %v3280 = vsel %vm1955, %v3255, 0
        %v3283 = vsel %vm1955, %v3256, 0
        %v3286 = vsel %vm1955, %v3257, 0
        %v3289 = vsel %vm1955, %v3258, 0
        %v3292 = vsel %vm1955, %v3259, 0
        %v3295 = vsel %vm1955, %v3260, 0
        %3297 = vmatprep.subr.mxu0 0.0
        %3298 = vmatpush1.msra.mxu0 %v3262
        %3299 = vmatprep.subr.mxu0 0.0
        %3300 = vmatpush1.msra.mxu0 %v3264
        %3301 = vmatprep.subr.mxu0 0.0
        %3302 = vmatpush1.msra.mxu0 %v3266
        %3303 = vmatprep.subr.mxu0 0.0
        %3304 = vmatpush1.msra.mxu0 %v3268
        %3305 = vmatprep.subr.mxu0 0.0
        %3306 = vmatpush1.msra.mxu0 %v3270
        %3307 = vmatprep.subr.mxu0 0.0
        %3308 = vmatpush1.msra.mxu0 %v3272
        %3309 = vmatprep.subr.mxu0 0.0
        %3310 = vmatpush1.msra.mxu0 0.0
        %3311 = vmatprep.subr.mxu0 0.0
        %3312 = vmatpush1.msra.mxu0 0.0
        %3313 = vmatprep.subr.mxu0 0.0
        %3314 = vmatpush1.msra.mxu0 0.0
        %3315 = vmatprep.subr.mxu0 0.0
        %3316 = vmatpush1.msra.mxu0 0.0
        %3317 = vmatprep.subr.mxu0 0.0
        %3318 = vmatpush1.msra.mxu0 0.0
        %3319 = vmatprep.subr.mxu0 0.0
        %3320 = vmatpush1.msra.mxu0 0.0
        %3321 = vmatprep.subr.mxu0 0.0
        %3322 = vmatpush1.msra.mxu0 0.0
        %3323 = vmatprep.subr.mxu0 0.0
        %3324 = vmatpush1.msra.mxu0 0.0
        %3325 = vmatprep.subr.mxu0 0.0
        %3326 = vmatpush1.msra.mxu0 0.0
        %3327 = vmatprep.subr.mxu0 0.0
        %3328 = vmatpush1.msra.mxu0 0.0
        %3329 = vmatprep.subr.mxu0 0.0
        %3330 = vmatpush1.msra.mxu0 0.0
        %3331 = vmatprep.subr.mxu0 0.0
        %3332 = vmatpush1.msra.mxu0 0.0
        %3333 = vmatprep.subr.mxu0 0.0
        %3334 = vmatpush1.msra.mxu0 0.0
        %3335 = vmatprep.subr.mxu0 0.0
        %3336 = vmatpush1.msra.mxu0 0.0
        %3337 = vmatprep.subr.mxu0 0.0
        %3338 = vmatpush1.msra.mxu0 0.0
        %3339 = vmatprep.subr.mxu0 0.0
        %3340 = vmatpush1.msra.mxu0 0.0
        %3341 = vmatprep.subr.mxu0 0.0
        %3342 = vmatpush1.msra.mxu0 0.0
        %3343 = vmatprep.subr.mxu0 0.0
        %3344 = vmatpush1.msra.mxu0 0.0
        %3345 = vmatprep.subr.mxu0 0.0
        %3346 = vmatpush1.msra.mxu0 0.0
        %3347 = vmatprep.subr.mxu0 0.0
        %3348 = vmatpush1.msra.mxu0 0.0
        %3349 = vmatprep.subr.mxu0 0.0
        %3350 = vmatpush1.msra.mxu0 0.0
        %3351 = vmatprep.subr.mxu0 0.0
        %3352 = vmatpush1.msra.mxu0 0.0
        %3353 = vmatprep.subr.mxu0 0.0
        %3354 = vmatpush1.msra.mxu0 0.0
        %3355 = vmatprep.subr.mxu0 0.0
        %3356 = vmatpush1.msra.mxu0 0.0
        %3357 = vmatprep.subr.mxu0 0.0
        %3358 = vmatpush1.msra.mxu0 0.0
        %3359 = vmatprep.subr.mxu0 0.0
        %3360 = vmatpush1.msra.mxu0 0.0
        %3361 = vmatprep.mubr.f32.mxu0 0.0
        %3362 = vmatmul.mubr.f32.gmra.mrb[0].mxu0 %v3280
        %v3363 = vpop.f32.mrb[0].mxu0
        %v3364 = vadd.f32 0.0, %v3363
        %v3365 = vpop.f32.mrb[0].mxu0
        %3366 = vmatprep.mubr.f32.mxu0 0.0
        %3367 = vmatmul.mubr.f32.gmra.mrb[0].mxu0 %v3283
        %v3368 = vpop.f32.mrb[0].mxu0
        %v3369 = vadd.f32 0.0, %v3368
        %v3370 = vpop.f32.mrb[0].mxu0
        %3371 = vmatprep.mubr.f32.mxu0 0.0
        %3372 = vmatmul.mubr.f32.gmra.mrb[0].mxu0 %v3286
        %v3373 = vpop.f32.mrb[0].mxu0
        %v3374 = vadd.f32 0.0, %v3373
        %v3375 = vpop.f32.mrb[0].mxu0
        %3376 = vmatprep.mubr.f32.mxu0 0.0
        %3377 = vmatmul.mubr.f32.gmra.mrb[0].mxu0 %v3289
        %v3378 = vpop.f32.mrb[0].mxu0
        %v3379 = vadd.f32 0.0, %v3378
        %v3380 = vpop.f32.mrb[0].mxu0
        %3381 = vmatprep.mubr.f32.mxu0 0.0
        %3382 = vmatmul.mubr.f32.gmra.mrb[0].mxu0 %v3292
        %v3383 = vpop.f32.mrb[0].mxu0
        %v3384 = vadd.f32 0.0, %v3383
        %v3385 = vpop.f32.mrb[0].mxu0
        %3386 = vmatprep.mubr.f32.mxu0 0.0
        %3387 = vmatmul.mubr.f32.gmra.mrb[0].mxu0 %v3295
        %v3388 = vpop.f32.mrb[0].mxu0
        %v3389 = vadd.f32 0.0, %v3388
        %v3390 = vpop.f32.mrb[0].mxu0
        %3391 = vdwg.mxu0
        %v3392 = vpack.c.bf16 %v3369, %v3364
        %v3393 = vpack.c.bf16 %v3379, %v3374
        %v3394 = vpack.c.bf16 %v3389, %v3384
        %v3397 = vunpack.c.l.b16 %v1803
        %v3398 = vunpack.c.l.b16 %v1804
        %v3399 = vpack.c.b16 %v3398, %v3397
        %v3402 = vsel %vm1829, %v3392, 0
        %v3405 = vsel %vm1829, %v3393, 0
        %v3408 = vsel %vm1829, %v3394, 0
        %3410 = vmatprep.subr.bf16.mxu0 0
        %3411 = vmatpush1.bf16.msra.mxu0 %v3399
        %3412 = vmatprep.subr.bf16.mxu0 0
        %3413 = vmatpush1.bf16.msra.mxu0 0
        %3414 = vmatprep.subr.bf16.mxu0 0
        %3415 = vmatpush1.bf16.msra.mxu0 0
        %3416 = vmatprep.subr.bf16.mxu0 0
        %3417 = vmatpush1.bf16.msra.mxu0 0
        %3418 = vmatprep.subr.bf16.mxu0 0
        %3419 = vmatpush1.bf16.msra.mxu0 0
        %3420 = vmatprep.subr.bf16.mxu0 0
        %3421 = vmatpush1.bf16.msra.mxu0 0
        %3422 = vmatprep.subr.bf16.mxu0 0
        %3423 = vmatpush1.bf16.msra.mxu0 0
        %3424 = vmatprep.subr.bf16.mxu0 0
        %3425 = vmatpush1.bf16.msra.mxu0 0
        %3426 = vmatprep.subr.bf16.mxu0 0
        %3427 = vmatpush1.bf16.msra.mxu0 0
        %3428 = vmatprep.subr.bf16.mxu0 0
        %3429 = vmatpush1.bf16.msra.mxu0 0
        %3430 = vmatprep.subr.bf16.mxu0 0
        %3431 = vmatpush1.bf16.msra.mxu0 0
        %3432 = vmatprep.subr.bf16.mxu0 0
        %3433 = vmatpush1.bf16.msra.mxu0 0
        %3434 = vmatprep.subr.bf16.mxu0 0
        %3435 = vmatpush1.bf16.msra.mxu0 0
        %3436 = vmatprep.subr.bf16.mxu0 0
        %3437 = vmatpush1.bf16.msra.mxu0 0
        %3438 = vmatprep.subr.bf16.mxu0 0
        %3439 = vmatpush1.bf16.msra.mxu0 0
        %3440 = vmatprep.subr.bf16.mxu0 0
        %3441 = vmatpush1.bf16.msra.mxu0 0
        %3442 = vmatprep.mubr.bf16.mxu0 0
        %3443 = vmatmul.mubr.bf16.gmra.mrb[0].mxu0 %v3402
        %v3444 = vpop.f32.mrb[0].mxu0
        %v3445 = vadd.f32 0.0, %v3444
        %v3446 = vpop.f32.mrb[0].mxu0
        %v3447 = vpop.f32.mrb[0].mxu0
        %v3448 = vadd.f32 0.0, %v3447
        %v3449 = vpop.f32.mrb[0].mxu0
        %3450 = vmatprep.mubr.bf16.mxu0 0
        %3451 = vmatmul.mubr.bf16.gmra.mrb[0].mxu0 %v3405
        %v3452 = vpop.f32.mrb[0].mxu0
        %v3453 = vadd.f32 0.0, %v3452
        %v3454 = vpop.f32.mrb[0].mxu0
        %v3455 = vpop.f32.mrb[0].mxu0
        %v3456 = vadd.f32 0.0, %v3455
        %v3457 = vpop.f32.mrb[0].mxu0
        %3458 = vmatprep.mubr.bf16.mxu0 0
        %3459 = vmatmul.mubr.bf16.gmra.mrb[0].mxu0 %v3408
        %v3460 = vpop.f32.mrb[0].mxu0
        %v3461 = vadd.f32 0.0, %v3460
        %v3462 = vpop.f32.mrb[0].mxu0
        %v3463 = vpop.f32.mrb[0].mxu0
        %v3464 = vadd.f32 0.0, %v3463
        %v3465 = vpop.f32.mrb[0].mxu0
        %3466 = vdwg.mxu0
        %v3467 = vadd.f32 %v3046, %v3445
        %v3468 = vadd.f32 %v3047, %v3448
        %v3469 = vadd.f32 %v3048, %v3453
        %v3470 = vadd.f32 %v3049, %v3456
        %v3471 = vadd.f32 %v3050, %v3461
        %v3472 = vadd.f32 %v3051, %v3464
        %v3473 = vadd.f32 %v1544, %v3467
        %v3474 = vadd.f32 %v1545, %v3468
        %v3475 = vadd.f32 %v1546, %v3469
        %v3476 = vadd.f32 %v1547, %v3470
        %v3477 = vadd.f32 %v1548, %v3471
        %v3478 = vadd.f32 %v1549, %v3472
        %v3479 = vld [vmem:[%s839] sm:$0x1]
        %v3481 = vlaneseq
        %v3482 = vshrl.u32 %v3481, 7
        %v3483 = vsub.s32 0, %v3482
        %v3484 = vrot.slane %v3479, %v3483
        %v3486 = vadd.f32 %v3473, %v3484
        %v3487 = vadd.f32 %v3474, %v3484
        %v3488 = vadd.f32 %v3475, %v3484
        %v3489 = vadd.f32 %v3476, %v3484
        %v3490 = vadd.f32 %v3477, %v3484
        %v3491 = vadd.f32 %v3478, %v3484
        %v3492 = vld [vmem:[%s842] sm:$0x1]
        %v3493 = vld [vmem:[%s845] sm:$0x1]
        %v3494 = vsel %vm1552, %v3486, 0.0
        %3495 = vadd.xlane.f32.xlu0 %v3494
        %v3496 = vpop.xlane.xlu0 %3495
        %v3497 = vsel %vm1552, %v3487, 0.0
        %3498 = vadd.xlane.f32.xlu0 %v3497
        %v3499 = vpop.xlane.xlu0 %3498
        %v3500 = vsel %vm1552, %v3488, 0.0
        %3501 = vadd.xlane.f32.xlu0 %v3500
        %v3502 = vpop.xlane.xlu0 %3501
        %v3503 = vsel %vm1552, %v3489, 0.0
        %3504 = vadd.xlane.f32.xlu0 %v3503
        %v3505 = vpop.xlane.xlu0 %3504
        %v3506 = vsel %vm1552, %v3490, 0.0
        %3507 = vadd.xlane.f32.xlu0 %v3506
        %v3508 = vpop.xlane.xlu0 %3507
        %v3509 = vsel %vm1552, %v3491, 0.0
        %3510 = vadd.xlane.f32.xlu0 %v3509
        %v3511 = vpop.xlane.xlu0 %3510
        %v3512 = vmul.f32 %v3496, %v1571
        %v3513 = vmul.f32 %v3499, %v1571
        %v3514 = vmul.f32 %v3502, %v1571
        %v3515 = vmul.f32 %v3505, %v1571
        %v3516 = vmul.f32 %v3508, %v1571
        %v3517 = vmul.f32 %v3511, %v1571
        %v3518 = vsub.f32 %v3486, %v3512
        %v3519 = vsub.f32 %v3487, %v3513
        %v3520 = vsub.f32 %v3488, %v3514
        %v3521 = vsub.f32 %v3489, %v3515
        %v3522 = vsub.f32 %v3490, %v3516
        %v3523 = vsub.f32 %v3491, %v3517
        %v3524 = vmul.f32 %v3518, %v3518
        %v3525 = vmul.f32 %v3519, %v3519
        %v3526 = vmul.f32 %v3520, %v3520
        %v3527 = vmul.f32 %v3521, %v3521
        %v3528 = vmul.f32 %v3522, %v3522
        %v3529 = vmul.f32 %v3523, %v3523
        %v3530 = vsel %vm1552, %v3524, 0.0
        %3531 = vadd.xlane.f32.xlu0 %v3530
        %v3532 = vpop.xlane.xlu0 %3531
        %v3533 = vsel %vm1552, %v3525, 0.0
        %3534 = vadd.xlane.f32.xlu0 %v3533
        %v3535 = vpop.xlane.xlu0 %3534
        %v3536 = vsel %vm1552, %v3526, 0.0
        %3537 = vadd.xlane.f32.xlu0 %v3536
        %v3538 = vpop.xlane.xlu0 %3537
        %v3539 = vsel %vm1552, %v3527, 0.0
        %3540 = vadd.xlane.f32.xlu0 %v3539
        %v3541 = vpop.xlane.xlu0 %3540
        %v3542 = vsel %vm1552, %v3528, 0.0
        %3543 = vadd.xlane.f32.xlu0 %v3542
        %v3544 = vpop.xlane.xlu0 %3543
        %v3545 = vsel %vm1552, %v3529, 0.0
        %3546 = vadd.xlane.f32.xlu0 %v3545
        %v3547 = vpop.xlane.xlu0 %3546
        %v3548 = vmul.f32 %v3532, %v1571
        %v3549 = vmul.f32 %v3535, %v1571
        %v3550 = vmul.f32 %v3538, %v1571
        %v3551 = vmul.f32 %v3541, %v1571
        %v3552 = vmul.f32 %v3544, %v1571
        %v3553 = vmul.f32 %v3547, %v1571
        %v3554 = vadd.f32 %v3548, 1e-06
        %v3555 = vadd.f32 %v3549, 1e-06
        %v3556 = vadd.f32 %v3550, 1e-06
        %v3557 = vadd.f32 %v3551, 1e-06
        %v3558 = vadd.f32 %v3552, 1e-06
        %v3559 = vadd.f32 %v3553, 1e-06
        %v3560 = vrsqrt.pop %v3554
        %v3561 = vrsqrt.pop %v3555
        %v3562 = vrsqrt.pop %v3556
        %v3563 = vrsqrt.pop %v3557
        %v3564 = vrsqrt.pop %v3558
        %v3565 = vrsqrt.pop %v3559
        %v3566 = vmul.f32 %v3518, %v3560
        %v3567 = vmul.f32 %v3519, %v3561
        %v3568 = vmul.f32 %v3520, %v3562
        %v3569 = vmul.f32 %v3521, %v3563
        %v3570 = vmul.f32 %v3522, %v3564
        %v3571 = vmul.f32 %v3523, %v3565
        %v3573 = vlaneseq
        %v3574 = vshrl.u32 %v3573, 7
        %v3575 = vsub.s32 0, %v3574
        %v3576 = vrot.slane %v3492, %v3575
        %v3578 = vmul.f32 %v3566, %v3576
        %v3579 = vmul.f32 %v3567, %v3576
        %v3580 = vmul.f32 %v3568, %v3576
        %v3581 = vmul.f32 %v3569, %v3576
        %v3582 = vmul.f32 %v3570, %v3576
        %v3583 = vmul.f32 %v3571, %v3576
        %v3585 = vlaneseq
        %v3586 = vshrl.u32 %v3585, 7
        %v3587 = vsub.s32 0, %v3586
        %v3588 = vrot.slane %v3493, %v3587
        %v3590 = vadd.f32 %v3578, %v3588
        %v3591 = vadd.f32 %v3579, %v3588
        %v3592 = vadd.f32 %v3580, %v3588
        %v3593 = vadd.f32 %v3581, %v3588
        %v3594 = vadd.f32 %v3582, %v3588
        %v3595 = vadd.f32 %v3583, %v3588
        %v3596 = vpack.c.bf16 %v3591, %v3590
        %v3597 = vpack.c.bf16 %v3593, %v3592
        %v3598 = vpack.c.bf16 %v3595, %v3594
        %v3599 = vld [vmem:[%s850] sm:$0xff]
        %v3600 = vld [vmem:[%s850 + $0x8] sm:$0xff]
        %v3601 = vld [vmem:[%s850 + $0x10] sm:$0xff]
        %v3602 = vld [vmem:[%s850 + $0x18] sm:$0xff]
        %v3603 = vld [vmem:[%s850 + $0x20] sm:$0xff]
        %v3604 = vld [vmem:[%s850 + $0x28] sm:$0xff]
        %v3605 = vld [vmem:[%s850 + $0x30] sm:$0xff]
        %v3606 = vld [vmem:[%s850 + $0x38] sm:$0xff]
        %v3607 = vld [vmem:[%s854] sm:$0x3]
        %v3609 = vlaneseq
        %v3610 = vshrl.u32 %v3609, 7
        %v3611 = vsub.s32 0, %v3610
        %v3612 = vrot.slane %v3607, %v3611
        %v3613 = vlaneseq
        %v3614 = vshrl.u32 %v3613, 7
        %v3615 = vsub.s32 1, %v3614
        %v3616 = vrot.slane %v3607, %v3615
        %v3627 = vunpack.c.l.b16 %v3599
        %v3628 = vunpack.c.h.b16 %v3599
        %v3629 = vunpack.c.l.b16 %v3600
        %v3630 = vunpack.c.h.b16 %v3600
        %v3631 = vunpack.c.l.b16 %v3601
        %v3632 = vunpack.c.h.b16 %v3601
        %v3633 = vunpack.c.l.b16 %v3602
        %v3634 = vunpack.c.h.b16 %v3602
        %v3635 = vunpack.c.l.b16 %v3603
        %v3636 = vunpack.c.h.b16 %v3603
        %v3637 = vunpack.c.l.b16 %v3604
        %v3638 = vunpack.c.h.b16 %v3604
        %v3639 = vunpack.c.l.b16 %v3605
        %v3640 = vunpack.c.h.b16 %v3605
        %v3641 = vunpack.c.l.b16 %v3606
        %v3642 = vunpack.c.h.b16 %v3606
        %v3643 = vpack.c.b16 %v3629, %v3627
        %v3644 = vpack.c.b16 %v3630, %v3628
        %v3645 = vpack.c.b16 %v3633, %v3631
        %v3646 = vpack.c.b16 %v3634, %v3632
        %v3647 = vpack.c.b16 %v3637, %v3635
        %v3648 = vpack.c.b16 %v3638, %v3636
        %v3649 = vpack.c.b16 %v3641, %v3639
        %v3650 = vpack.c.b16 %v3642, %v3640
        %v3660 = vsel %vm1552, %v3596, 0
        %v3663 = vsel %vm1552, %v3597, 0
        %v3666 = vsel %vm1552, %v3598, 0
        %3668 = vmatprep.subr.bf16.mxu0 %v3644
        %3669 = vmatpush1.bf16.msra.mxu0 %v3643
        %3670 = vmatprep.subr.bf16.mxu0 %v3646
        %3671 = vmatpush1.bf16.msra.mxu0 %v3645
        %3672 = vmatprep.subr.bf16.mxu0 %v3648
        %3673 = vmatpush1.bf16.msra.mxu0 %v3647
        %3674 = vmatprep.subr.bf16.mxu0 %v3650
        %3675 = vmatpush1.bf16.msra.mxu0 %v3649
        %3676 = vmatprep.subr.bf16.mxu0 0
        %3677 = vmatpush1.bf16.msra.mxu0 0
        %3678 = vmatprep.subr.bf16.mxu0 0
        %3679 = vmatpush1.bf16.msra.mxu0 0
        %3680 = vmatprep.subr.bf16.mxu0 0
        %3681 = vmatpush1.bf16.msra.mxu0 0
        %3682 = vmatprep.subr.bf16.mxu0 0
        %3683 = vmatpush1.bf16.msra.mxu0 0
        %3684 = vmatprep.subr.bf16.mxu0 0
        %3685 = vmatpush1.bf16.msra.mxu0 0
        %3686 = vmatprep.subr.bf16.mxu0 0
        %3687 = vmatpush1.bf16.msra.mxu0 0
        %3688 = vmatprep.subr.bf16.mxu0 0
        %3689 = vmatpush1.bf16.msra.mxu0 0
        %3690 = vmatprep.subr.bf16.mxu0 0
        %3691 = vmatpush1.bf16.msra.mxu0 0
        %3692 = vmatprep.subr.bf16.mxu0 0
        %3693 = vmatpush1.bf16.msra.mxu0 0
        %3694 = vmatprep.subr.bf16.mxu0 0
        %3695 = vmatpush1.bf16.msra.mxu0 0
        %3696 = vmatprep.subr.bf16.mxu0 0
        %3697 = vmatpush1.bf16.msra.mxu0 0
        %3698 = vmatprep.subr.bf16.mxu0 0
        %3699 = vmatpush1.bf16.msra.mxu0 0
        %3700 = vmatprep.mubr.bf16.mxu0 0
        %3701 = vmatmul.mubr.bf16.gmra.mrb[0].mxu0 %v3660
        %v3702 = vpop.f32.mrb[0].mxu0
        %v3703 = vadd.f32 %v3612, %v3702
        %v3704 = vpop.f32.mrb[0].mxu0
        %v3705 = vadd.f32 %v3616, %v3704
        %v3706 = vpop.f32.mrb[0].mxu0
        %v3707 = vadd.f32 %v3612, %v3706
        %v3708 = vpop.f32.mrb[0].mxu0
        %v3709 = vadd.f32 %v3616, %v3708
        %3710 = vmatprep.mubr.bf16.mxu0 0
        %3711 = vmatmul.mubr.bf16.gmra.mrb[0].mxu0 %v3663
        %v3712 = vpop.f32.mrb[0].mxu0
        %v3713 = vadd.f32 %v3612, %v3712
        %v3714 = vpop.f32.mrb[0].mxu0
        %v3715 = vadd.f32 %v3616, %v3714
        %v3716 = vpop.f32.mrb[0].mxu0
        %v3717 = vadd.f32 %v3612, %v3716
        %v3718 = vpop.f32.mrb[0].mxu0
        %v3719 = vadd.f32 %v3616, %v3718
        %3720 = vmatprep.mubr.bf16.mxu0 0
        %3721 = vmatmul.mubr.bf16.gmra.mrb[0].mxu0 %v3666
        %v3722 = vpop.f32.mrb[0].mxu0
        %v3723 = vadd.f32 %v3612, %v3722
        %v3724 = vpop.f32.mrb[0].mxu0
        %v3725 = vadd.f32 %v3616, %v3724
        %v3726 = vpop.f32.mrb[0].mxu0
        %v3727 = vadd.f32 %v3612, %v3726
        %v3728 = vpop.f32.mrb[0].mxu0
        %v3729 = vadd.f32 %v3616, %v3728
        %3730 = vdwg.mxu0
        %v3731 = vmul.f32 %v3703, 0.5
        %v3732 = vmul.f32 %v3705, 0.5
        %v3733 = vmul.f32 %v3707, 0.5
        %v3734 = vmul.f32 %v3709, 0.5
        %v3735 = vmul.f32 %v3713, 0.5
        %v3736 = vmul.f32 %v3715, 0.5
        %v3737 = vmul.f32 %v3717, 0.5
        %v3738 = vmul.f32 %v3719, 0.5
        %v3739 = vmul.f32 %v3723, 0.5
        %v3740 = vmul.f32 %v3725, 0.5
        %v3741 = vmul.f32 %v3727, 0.5
        %v3742 = vmul.f32 %v3729, 0.5
        %v3743 = vmul.f32 %v3703, 0.70710677
        %v3744 = vmul.f32 %v3705, 0.70710677
        %v3745 = vmul.f32 %v3707, 0.70710677
        %v3746 = vmul.f32 %v3709, 0.70710677
        %v3747 = vmul.f32 %v3713, 0.70710677
        %v3748 = vmul.f32 %v3715, 0.70710677
        %v3749 = vmul.f32 %v3717, 0.70710677
        %v3750 = vmul.f32 %v3719, 0.70710677
        %v3751 = vmul.f32 %v3723, 0.70710677
        %v3752 = vmul.f32 %v3725, 0.70710677
        %v3753 = vmul.f32 %v3727, 0.70710677
        %v3754 = vmul.f32 %v3729, 0.70710677
        %v3755 = verf.f32.pop %v3743
        %v3756 = verf.f32.pop %v3744
        %v3757 = verf.f32.pop %v3745
        %v3758 = verf.f32.pop %v3746
        %v3759 = verf.f32.pop %v3747
        %v3760 = verf.f32.pop %v3748
        %v3761 = verf.f32.pop %v3749
        %v3762 = verf.f32.pop %v3750
        %v3763 = verf.f32.pop %v3751
        %v3764 = verf.f32.pop %v3752
        %v3765 = verf.f32.pop %v3753
        %v3766 = verf.f32.pop %v3754
        %v3767 = vadd.f32 %v3755, 1.0
        %v3768 = vadd.f32 %v3756, 1.0
        %v3769 = vadd.f32 %v3757, 1.0
        %v3770 = vadd.f32 %v3758, 1.0
        %v3771 = vadd.f32 %v3759, 1.0
        %v3772 = vadd.f32 %v3760, 1.0
        %v3773 = vadd.f32 %v3761, 1.0
        %v3774 = vadd.f32 %v3762, 1.0
        %v3775 = vadd.f32 %v3763, 1.0
        %v3776 = vadd.f32 %v3764, 1.0
        %v3777 = vadd.f32 %v3765, 1.0
        %v3778 = vadd.f32 %v3766, 1.0
        %v3779 = vmul.f32 %v3731, %v3767
        %v3780 = vmul.f32 %v3732, %v3768
        %v3781 = vmul.f32 %v3733, %v3769
        %v3782 = vmul.f32 %v3734, %v3770
        %v3783 = vmul.f32 %v3735, %v3771
        %v3784 = vmul.f32 %v3736, %v3772
        %v3785 = vmul.f32 %v3737, %v3773
        %v3786 = vmul.f32 %v3738, %v3774
        %v3787 = vmul.f32 %v3739, %v3775
        %v3788 = vmul.f32 %v3740, %v3776
        %v3789 = vmul.f32 %v3741, %v3777
        %v3790 = vmul.f32 %v3742, %v3778
        %v3791 = vpack.c.bf16 %v3781, %v3779
        %v3792 = vpack.c.bf16 %v3782, %v3780
        %v3793 = vpack.c.bf16 %v3785, %v3783
        %v3794 = vpack.c.bf16 %v3786, %v3784
        %v3795 = vpack.c.bf16 %v3789, %v3787
        %v3796 = vpack.c.bf16 %v3790, %v3788
        %v3797 = vld [vmem:[%s859] sm:$0xf]
        %v3798 = vld [vmem:[%s859 + $0x4] sm:$0xf]
        %v3799 = vld [vmem:[%s859 + $0x8] sm:$0xf]
        %v3800 = vld [vmem:[%s859 + $0xc] sm:$0xf]
        %v3801 = vld [vmem:[%s859 + $0x10] sm:$0xf]
        %v3802 = vld [vmem:[%s859 + $0x14] sm:$0xf]
        %v3803 = vld [vmem:[%s859 + $0x18] sm:$0xf]
        %v3804 = vld [vmem:[%s859 + $0x1c] sm:$0xf]
        %v3805 = vld [vmem:[%s859 + $0x20] sm:$0xf]
        %v3806 = vld [vmem:[%s859 + $0x24] sm:$0xf]
        %v3807 = vld [vmem:[%s859 + $0x28] sm:$0xf]
        %v3808 = vld [vmem:[%s859 + $0x2c] sm:$0xf]
        %v3809 = vld [vmem:[%s859 + $0x30] sm:$0xf]
        %v3810 = vld [vmem:[%s859 + $0x34] sm:$0xf]
        %v3811 = vld [vmem:[%s859 + $0x38] sm:$0xf]
        %v3812 = vld [vmem:[%s859 + $0x3c] sm:$0xf]
        %v3813 = vld [vmem:[%s859 + $0x40] sm:$0xf]
        %v3814 = vld [vmem:[%s859 + $0x44] sm:$0xf]
        %v3815 = vld [vmem:[%s859 + $0x48] sm:$0xf]
        %v3816 = vld [vmem:[%s859 + $0x4c] sm:$0xf]
        %v3817 = vld [vmem:[%s859 + $0x50] sm:$0xf]
        %v3818 = vld [vmem:[%s859 + $0x54] sm:$0xf]
        %v3819 = vld [vmem:[%s859 + $0x58] sm:$0xf]
        %v3820 = vld [vmem:[%s859 + $0x5c] sm:$0xf]
        %v3821 = vld [vmem:[%s859 + $0x60] sm:$0xf]
        %v3822 = vld [vmem:[%s859 + $0x64] sm:$0xf]
        %v3823 = vld [vmem:[%s859 + $0x68] sm:$0xf]
        %v3824 = vld [vmem:[%s859 + $0x6c] sm:$0xf]
        %v3825 = vld [vmem:[%s859 + $0x70] sm:$0xf]
        %v3826 = vld [vmem:[%s859 + $0x74] sm:$0xf]
        %v3827 = vld [vmem:[%s859 + $0x78] sm:$0xf]
        %v3828 = vld [vmem:[%s859 + $0x7c] sm:$0xf]
        %v3829 = vld [vmem:[%s862] sm:$0x1]
        %v3831 = vlaneseq
        %v3832 = vshrl.u32 %v3831, 7
        %v3833 = vsub.s32 0, %v3832
        %v3834 = vrot.slane %v3829, %v3833
        %v3868 = vunpack.c.l.b16 %v3797
        %v3869 = vunpack.c.l.b16 %v3798
        %v3870 = vunpack.c.l.b16 %v3799
        %v3871 = vunpack.c.l.b16 %v3800
        %v3872 = vunpack.c.l.b16 %v3801
        %v3873 = vunpack.c.l.b16 %v3802
        %v3874 = vunpack.c.l.b16 %v3803
        %v3875 = vunpack.c.l.b16 %v3804
        %v3876 = vunpack.c.l.b16 %v3805
        %v3877 = vunpack.c.l.b16 %v3806
        %v3878 = vunpack.c.l.b16 %v3807
        %v3879 = vunpack.c.l.b16 %v3808
        %v3880 = vunpack.c.l.b16 %v3809
        %v3881 = vunpack.c.l.b16 %v3810
        %v3882 = vunpack.c.l.b16 %v3811
        %v3883 = vunpack.c.l.b16 %v3812
        %v3884 = vunpack.c.l.b16 %v3813
        %v3885 = vunpack.c.l.b16 %v3814
        %v3886 = vunpack.c.l.b16 %v3815
        %v3887 = vunpack.c.l.b16 %v3816
        %v3888 = vunpack.c.l.b16 %v3817
        %v3889 = vunpack.c.l.b16 %v3818
        %v3890 = vunpack.c.l.b16 %v3819
        %v3891 = vunpack.c.l.b16 %v3820
        %v3892 = vunpack.c.l.b16 %v3821
        %v3893 = vunpack.c.l.b16 %v3822
        %v3894 = vunpack.c.l.b16 %v3823
        %v3895 = vunpack.c.l.b16 %v3824
        %v3896 = vunpack.c.l.b16 %v3825
        %v3897 = vunpack.c.l.b16 %v3826
        %v3898 = vunpack.c.l.b16 %v3827
        %v3899 = vunpack.c.l.b16 %v3828
        %v3900 = vpack.c.b16 %v3869, %v3868
        %v3901 = vpack.c.b16 %v3871, %v3870
        %v3902 = vpack.c.b16 %v3873, %v3872
        %v3903 = vpack.c.b16 %v3875, %v3874
        %v3904 = vpack.c.b16 %v3877, %v3876
        %v3905 = vpack.c.b16 %v3879, %v3878
        %v3906 = vpack.c.b16 %v3881, %v3880
        %v3907 = vpack.c.b16 %v3883, %v3882
        %v3908 = vpack.c.b16 %v3885, %v3884
        %v3909 = vpack.c.b16 %v3887, %v3886
        %v3910 = vpack.c.b16 %v3889, %v3888
        %v3911 = vpack.c.b16 %v3891, %v3890
        %v3912 = vpack.c.b16 %v3893, %v3892
        %v3913 = vpack.c.b16 %v3895, %v3894
        %v3914 = vpack.c.b16 %v3897, %v3896
        %v3915 = vpack.c.b16 %v3899, %v3898
        %3932 = vmatprep.subr.bf16.mxu0 0
        %3933 = vmatpush1.bf16.msra.mxu0 %v3900
        %3934 = vmatprep.subr.bf16.mxu0 0
        %3935 = vmatpush1.bf16.msra.mxu0 %v3901
        %3936 = vmatprep.subr.bf16.mxu0 0
        %3937 = vmatpush1.bf16.msra.mxu0 %v3902
        %3938 = vmatprep.subr.bf16.mxu0 0
        %3939 = vmatpush1.bf16.msra.mxu0 %v3903
        %3940 = vmatprep.subr.bf16.mxu0 0
        %3941 = vmatpush1.bf16.msra.mxu0 %v3904
        %3942 = vmatprep.subr.bf16.mxu0 0
        %3943 = vmatpush1.bf16.msra.mxu0 %v3905
        %3944 = vmatprep.subr.bf16.mxu0 0
        %3945 = vmatpush1.bf16.msra.mxu0 %v3906
        %3946 = vmatprep.subr.bf16.mxu0 0
        %3947 = vmatpush1.bf16.msra.mxu0 %v3907
        %3948 = vmatprep.subr.bf16.mxu0 0
        %3949 = vmatpush1.bf16.msra.mxu0 %v3908
        %3950 = vmatprep.subr.bf16.mxu0 0
        %3951 = vmatpush1.bf16.msra.mxu0 %v3909
        %3952 = vmatprep.subr.bf16.mxu0 0
        %3953 = vmatpush1.bf16.msra.mxu0 %v3910
        %3954 = vmatprep.subr.bf16.mxu0 0
        %3955 = vmatpush1.bf16.msra.mxu0 %v3911
        %3956 = vmatprep.subr.bf16.mxu0 0
        %3957 = vmatpush1.bf16.msra.mxu0 %v3912
        %3958 = vmatprep.subr.bf16.mxu0 0
        %3959 = vmatpush1.bf16.msra.mxu0 %v3913
        %3960 = vmatprep.subr.bf16.mxu0 0
        %3961 = vmatpush1.bf16.msra.mxu0 %v3914
        %3962 = vmatprep.subr.bf16.mxu0 0
        %3963 = vmatpush1.bf16.msra.mxu0 %v3915
        %3964 = vmatprep.mubr.bf16.mxu0 %v3792
        %3965 = vmatmul.mubr.bf16.gmra.mrb[0].mxu0 %v3791
        %v3966 = vpop.f32.mrb[0].mxu0
        %v3967 = vadd.f32 %v3834, %v3966
        %v3968 = vpop.f32.mrb[0].mxu0
        %v3969 = vpop.f32.mrb[0].mxu0
        %v3970 = vadd.f32 %v3834, %v3969
        %v3971 = vpop.f32.mrb[0].mxu0
        %3972 = vmatprep.mubr.bf16.mxu0 %v3794
        %3973 = vmatmul.mubr.bf16.gmra.mrb[0].mxu0 %v3793
        %v3974 = vpop.f32.mrb[0].mxu0
        %v3975 = vadd.f32 %v3834, %v3974
        %v3976 = vpop.f32.mrb[0].mxu0
        %v3977 = vpop.f32.mrb[0].mxu0
        %v3978 = vadd.f32 %v3834, %v3977
        %v3979 = vpop.f32.mrb[0].mxu0
        %3980 = vmatprep.mubr.bf16.mxu0 %v3796
        %3981 = vmatmul.mubr.bf16.gmra.mrb[0].mxu0 %v3795
        %v3982 = vpop.f32.mrb[0].mxu0
        %v3983 = vadd.f32 %v3834, %v3982
        %v3984 = vpop.f32.mrb[0].mxu0
        %v3985 = vpop.f32.mrb[0].mxu0
        %v3986 = vadd.f32 %v3834, %v3985
        %v3987 = vpop.f32.mrb[0].mxu0
        %3988 = vdwg.mxu0
        %v3989 = vadd.f32 %v3486, %v3967
        %v3990 = vadd.f32 %v3487, %v3970
        %v3991 = vadd.f32 %v3488, %v3975
        %v3992 = vadd.f32 %v3489, %v3978
        %v3993 = vadd.f32 %v3490, %v3983
        %v3994 = vadd.f32 %v3491, %v3986
        %3995 = vst.msk [vmem:[#allocation2] sm:$0xff] %vm1552, %v3989
        %3996 = vst.msk [vmem:[#allocation2 + $0x8] sm:$0xff] %vm1552, %v3990
        %3997 = vst.msk [vmem:[#allocation2 + $0x10] sm:$0xff] %vm1552, %v3991
        %3998 = vst.msk [vmem:[#allocation2 + $0x18] sm:$0xff] %vm1552, %v3992
        %3999 = vst.msk [vmem:[#allocation2 + $0x20] sm:$0xff] %vm1552, %v3993
        %4000 = vst.msk [vmem:[#allocation2 + $0x28] sm:$0xff] %vm1552, %v3994
        %p4001 = scmp.eq.s32.totalorder %s38, 1
        // Predicated region
        $region109: #{radar_model_forward.1} parent=103 // pred_check
          %p4002 = pneg %p4001
        $region110: #{radar_model_forward.1} parent=103 // pred_check_branch
          %4004 = sbr.rel (%p4002) target = $region112
        $region111: #{radar_model_forward.1} parent=103 // pred_region
          %v4005 = vld [vmem:[%s16] sm:$0x3]
          %v4007 = vsel %vm1955, %v4005, 0
          %4009 = vmatprep.subr.mxu0 0.0
          %4010 = vmatpush1.msra.mxu0 %v3989
          %4011 = vmatprep.subr.mxu0 0.0
          %4012 = vmatpush1.msra.mxu0 %v3990
          %4013 = vmatprep.subr.mxu0 0.0
          %4014 = vmatpush1.msra.mxu0 %v3991
          %4015 = vmatprep.subr.mxu0 0.0
          %4016 = vmatpush1.msra.mxu0 %v3992
          %4017 = vmatprep.subr.mxu0 0.0
          %4018 = vmatpush1.msra.mxu0 %v3993
          %4019 = vmatprep.subr.mxu0 0.0
          %4020 = vmatpush1.msra.mxu0 %v3994
          %4021 = vmatprep.subr.mxu0 0.0
          %4022 = vmatpush1.msra.mxu0 0.0
          %4023 = vmatprep.subr.mxu0 0.0
          %4024 = vmatpush1.msra.mxu0 0.0
          %4025 = vmatprep.subr.mxu0 0.0
          %4026 = vmatpush1.msra.mxu0 0.0
          %4027 = vmatprep.subr.mxu0 0.0
          %4028 = vmatpush1.msra.mxu0 0.0
          %4029 = vmatprep.subr.mxu0 0.0
          %4030 = vmatpush1.msra.mxu0 0.0
          %4031 = vmatprep.subr.mxu0 0.0
          %4032 = vmatpush1.msra.mxu0 0.0
          %4033 = vmatprep.subr.mxu0 0.0
          %4034 = vmatpush1.msra.mxu0 0.0
          %4035 = vmatprep.subr.mxu0 0.0
          %4036 = vmatpush1.msra.mxu0 0.0
          %4037 = vmatprep.subr.mxu0 0.0
          %4038 = vmatpush1.msra.mxu0 0.0
          %4039 = vmatprep.subr.mxu0 0.0
          %4040 = vmatpush1.msra.mxu0 0.0
          %4041 = vmatprep.subr.mxu0 0.0
          %4042 = vmatpush1.msra.mxu0 0.0
          %4043 = vmatprep.subr.mxu0 0.0
          %4044 = vmatpush1.msra.mxu0 0.0
          %4045 = vmatprep.subr.mxu0 0.0
          %4046 = vmatpush1.msra.mxu0 0.0
          %4047 = vmatprep.subr.mxu0 0.0
          %4048 = vmatpush1.msra.mxu0 0.0
          %4049 = vmatprep.subr.mxu0 0.0
          %4050 = vmatpush1.msra.mxu0 0.0
          %4051 = vmatprep.subr.mxu0 0.0
          %4052 = vmatpush1.msra.mxu0 0.0
          %4053 = vmatprep.subr.mxu0 0.0
          %4054 = vmatpush1.msra.mxu0 0.0
          %4055 = vmatprep.subr.mxu0 0.0
          %4056 = vmatpush1.msra.mxu0 0.0
          %4057 = vmatprep.subr.mxu0 0.0
          %4058 = vmatpush1.msra.mxu0 0.0
          %4059 = vmatprep.subr.mxu0 0.0
          %4060 = vmatpush1.msra.mxu0 0.0
          %4061 = vmatprep.subr.mxu0 0.0
          %4062 = vmatpush1.msra.mxu0 0.0
          %4063 = vmatprep.subr.mxu0 0.0
          %4064 = vmatpush1.msra.mxu0 0.0
          %4065 = vmatprep.subr.mxu0 0.0
          %4066 = vmatpush1.msra.mxu0 0.0
          %4067 = vmatprep.subr.mxu0 0.0
          %4068 = vmatpush1.msra.mxu0 0.0
          %4069 = vmatprep.subr.mxu0 0.0
          %4070 = vmatpush1.msra.mxu0 0.0
          %4071 = vmatprep.subr.mxu0 0.0
          %4072 = vmatpush1.msra.mxu0 0.0
          %4073 = vmatprep.mubr.f32.mxu0 0.0
          %4074 = vmatmul.mubr.f32.gmra.mrb[0].mxu0 %v4007
          %v4075 = vpop.f32.mrb[0].mxu0
          %v4076 = vadd.f32 0.0, %v4075
          %v4077 = vpop.f32.mrb[0].mxu0
          %4078 = vdwg.mxu0
          %v4079 = vld [vmem:[%s17] sm:$0x1]
          %v4080 = vld [vmem:[%s18] sm:$0x1]
          %vm4081 = vcmask 517120
          %v4082 = vsel %vm4081, %v4076, 0.0
          %4083 = vadd.xlane.f32.xlu0 %v4082
          %v4084 = vpop.xlane.xlu0 %4083
          %v4085 = vmul.f32 %v4084, %v1571
          %v4086 = vsub.f32 %v4076, %v4085
          %v4087 = vmul.f32 %v4086, %v4086
          %v4088 = vsel %vm4081, %v4087, 0.0
          %4089 = vadd.xlane.f32.xlu0 %v4088
          %v4090 = vpop.xlane.xlu0 %4089
          %v4091 = vmul.f32 %v4090, %v1571
          %v4092 = vadd.f32 %v4091, 1e-06
          %v4093 = vrsqrt.pop %v4092
          %v4094 = vmul.f32 %v4086, %v4093
          %v4096 = vlaneseq
          %v4097 = vshrl.u32 %v4096, 7
          %v4098 = vsub.s32 0, %v4097
          %v4099 = vrot.slane %v4079, %v4098
          %v4101 = vmul.f32 %v4094, %v4099
          %v4103 = vlaneseq
          %v4104 = vshrl.u32 %v4103, 7
          %v4105 = vsub.s32 0, %v4104
          %v4106 = vrot.slane %v4080, %v4105
          %v4108 = vadd.f32 %v4101, %v4106
          %v4109 = vpack.c.bf16 %v4108, %v4108
          %v4110 = vld [vmem:[%s19] sm:$0xf]
          %v4111 = vld [vmem:[%s19 + $0x4] sm:$0xf]
          %v4112 = vld [vmem:[%s19 + $0x8] sm:$0xf]
          %v4113 = vld [vmem:[%s19 + $0xc] sm:$0xf]
          %v4114 = vld [vmem:[%s19 + $0x10] sm:$0xf]
          %v4115 = vld [vmem:[%s19 + $0x14] sm:$0xf]
          %v4116 = vld [vmem:[%s19 + $0x18] sm:$0xf]
          %v4117 = vld [vmem:[%s19 + $0x1c] sm:$0xf]
          %v4118 = vld [vmem:[%s20] sm:$0x1]
          %v4120 = vlaneseq
          %v4121 = vshrl.u32 %v4120, 7
          %v4122 = vsub.s32 0, %v4121
          %v4123 = vrot.slane %v4118, %v4122
          %v4133 = vunpack.c.l.b16 %v4110
          %v4134 = vunpack.c.l.b16 %v4111
          %v4135 = vunpack.c.l.b16 %v4112
          %v4136 = vunpack.c.l.b16 %v4113
          %v4137 = vunpack.c.l.b16 %v4114
          %v4138 = vunpack.c.l.b16 %v4115
          %v4139 = vunpack.c.l.b16 %v4116
          %v4140 = vunpack.c.l.b16 %v4117
          %v4141 = vpack.c.b16 %v4134, %v4133
          %v4142 = vpack.c.b16 %v4136, %v4135
          %v4143 = vpack.c.b16 %v4138, %v4137
          %v4144 = vpack.c.b16 %v4140, %v4139
          %v4150 = vsel %vm1552, %v4109, 0
          %4152 = vmatprep.subr.bf16.mxu0 0
          %4153 = vmatpush1.bf16.msra.mxu0 %v4141
          %4154 = vmatprep.subr.bf16.mxu0 0
          %4155 = vmatpush1.bf16.msra.mxu0 %v4142
          %4156 = vmatprep.subr.bf16.mxu0 0
          %4157 = vmatpush1.bf16.msra.mxu0 %v4143
          %4158 = vmatprep.subr.bf16.mxu0 0
          %4159 = vmatpush1.bf16.msra.mxu0 %v4144
          %4160 = vmatprep.subr.bf16.mxu0 0
          %4161 = vmatpush1.bf16.msra.mxu0 0
          %4162 = vmatprep.subr.bf16.mxu0 0
          %4163 = vmatpush1.bf16.msra.mxu0 0
          %4164 = vmatprep.subr.bf16.mxu0 0
          %4165 = vmatpush1.bf16.msra.mxu0 0
          %4166 = vmatprep.subr.bf16.mxu0 0
          %4167 = vmatpush1.bf16.msra.mxu0 0
          %4168 = vmatprep.subr.bf16.mxu0 0
          %4169 = vmatpush1.bf16.msra.mxu0 0
          %4170 = vmatprep.subr.bf16.mxu0 0
          %4171 = vmatpush1.bf16.msra.mxu0 0
          %4172 = vmatprep.subr.bf16.mxu0 0
          %4173 = vmatpush1.bf16.msra.mxu0 0
          %4174 = vmatprep.subr.bf16.mxu0 0
          %4175 = vmatpush1.bf16.msra.mxu0 0
          %4176 = vmatprep.subr.bf16.mxu0 0
          %4177 = vmatpush1.bf16.msra.mxu0 0
          %4178 = vmatprep.subr.bf16.mxu0 0
          %4179 = vmatpush1.bf16.msra.mxu0 0
          %4180 = vmatprep.subr.bf16.mxu0 0
          %4181 = vmatpush1.bf16.msra.mxu0 0
          %4182 = vmatprep.subr.bf16.mxu0 0
          %4183 = vmatpush1.bf16.msra.mxu0 0
          %4184 = vmatprep.mubr.bf16.mxu0 0
          %4185 = vmatmul.mubr.bf16.gmra.mrb[0].mxu0 %v4150
          %v4186 = vpop.f32.mrb[0].mxu0
          %v4187 = vadd.f32 %v4123, %v4186
          %v4188 = vpop.f32.mrb[0].mxu0
          %v4189 = vpop.f32.mrb[0].mxu0
          %v4190 = vpop.f32.mrb[0].mxu0
          %4191 = vdwg.mxu0
          %4192 = vst [vmem:[#allocation3] sm:$0x3] %v4187
        $region112: #{radar_model_forward.1} parent=103 // pred_fallthru
          _
        // Predicated region
        $region113: #{radar_model_forward.1} parent=103 // pred_check
          %p4193 = pneg %p569
        $region114: #{radar_model_forward.1} parent=103 // pred_check_branch
          %4195 = sbr.rel (%p4193) target = $region116
        $region115: #{radar_model_forward.1} parent=103 // pred_region
          %s4197 = ssub.s32 32, 32
          %4198 = vsyncadd [#allocation4], %s4197
          %s4199 = smul.addr %s37, 32
          %s4200 = scalar_lea.hbm %s21, %s4199
          %s4202 = sshll.u32 [#allocation3], 4
          %s4203 = int_to_ptr.vmem [resolvable:$true] %s4202
          %4205 = dma.vmem_to_hbm [thread:$0]  %s4203, 32, %s4200, [#allocation4]
        $region116: #{radar_model_forward.1} parent=103 // pred_fallthru
          _
        // Predicated region
        $region117: #{radar_model_forward.1} parent=103 // pred_check
          %p4206 = pneg %p569
        $region118: #{radar_model_forward.1} parent=103 // pred_check_branch
          %4208 = sbr.rel (%p4206) target = $region120
        $region119: #{radar_model_forward.1} parent=103 // pred_region
          %4209 = dma.done [#allocation4], 32
        $region120: #{radar_model_forward.1} parent=103 // pred_fallthru
          _
      $region104: #{radar_model_forward.1} parent=5 // pred_fallthru
        _
      %p4210 = scmp.le.s32.totalorder 2, %s28
      // Predicated region
      $region121: #{radar_model_forward.1} parent=5 // pred_check
        %p4211 = pneg %p4210
      $region122: #{radar_model_forward.1} parent=5 // pred_check_branch
        %4213 = sbr.rel (%p4211) target = $region124
      $region123: #{radar_model_forward.1} parent=5 // pred_region
        %s4214 = ssub.s32 %s28, 2
      $region124: #{radar_model_forward.1} parent=5 // pred_fallthru
        _
    $region6: #{radar_model_forward.1} parent=1 // loop_footer
      %s32 = sadd.s32 1, %s28
    $region7: #{radar_model_forward.1} parent=1 // loop_footer_branch
      %27 = sbr.rel target = $region3
    $region8: #{radar_model_forward.1} parent=1 // loop_exit
      _
    %4215 = vsyncpa [#allocation4], 1
    %s4216 = scalar_lea.sflag [#allocation4], 1
    %4217 = vsyncpa %s4216, 1

</llo_original>
